<compile_context>
chip_gen: v7x
topology: tpu7x:2x2x1
jax: 0.10.0
libtpu: 0.0.40
codegen_flags: <defaults>
</compile_context>

<pallas_src>
import math
import numpy as np
import jax
import jax.numpy as jnp
from jax.experimental import pallas as pl
from jax.experimental.pallas import tpu as pltpu

# ---------------- small, module-consistent config ----------------
IMG = 16          # img_size
PATCH = 4         # patch_size
IN_CHANS = 4      # in_chans
EMBED = 32        # embed_dim
DEPTH = 2         # depth
HEADS = 4         # n_heads
MLP_RATIO = 4.0
BATCH = 2

GRID = IMG // PATCH
N_PATCHES = GRID * GRID                  # 16
HEAD_DIM = EMBED // HEADS                # 8
HIDDEN = int(EMBED * MLP_RATIO)          # 128
PATCH_DIM = IN_CHANS * PATCH * PATCH     # 64
LN_EPS_BLOCK = 1e-5                      # nn.LayerNorm default (inside Block)
LN_EPS_FINAL = 1e-6                      # explicit eps of the final norm
ATTN_SCALE = HEAD_DIM ** -0.5

# bf16 operands on the MXU (f32 accumulation).  Set to jnp.float32 for exact parity with
# the f32 PyTorch reference (small numeric deviation otherwise, ~1e-3 relative).
MXU_DTYPE = jnp.bfloat16

# One image per grid step -> v7x's 2 TensorCores each take half the batch ("parallel"
# grid axis).  On single-TC chips (v5e/v6e) this only adds ~0.35us of step overhead
# (weights are not re-fetched: constant block index); set to 1 to fold the whole batch
# into a single step there.
NUM_TOKEN_BLOCKS = min(BATCH, 2)


# ---------------- in-kernel math helpers (all f32) ----------------
def _erf(x):
    # Abramowitz & Stegun 7.1.26, |abs err| < 1.5e-7 -> float32-accurate erf.
    a1, a2, a3, a4, a5 = 0.254829592, -0.284496736, 1.421413741, -1.453152027, 1.061405429
    p = 0.3275911
    ax = jnp.abs(x)
    t = 1.0 / (1.0 + p * ax)
    poly = ((((a5 * t + a4) * t + a3) * t + a2) * t + a1)
    y = 1.0 - poly * t * jnp.exp(-ax * ax)
    return jnp.where(x >= 0, y, -y)


def _gelu_exact(x):
    # torch.nn.GELU default (erf-based) GELU.
    return 0.5 * x * (1.0 + _erf(x * (1.0 / math.sqrt(2.0))))


def _layernorm(x, w, b, eps):
    mu = jnp.mean(x, axis=-1, keepdims=True)
    var = jnp.mean((x - mu) ** 2, axis=-1, keepdims=True)
    return (x - mu) * jax.lax.rsqrt(var + eps) * w + b


# ---------------- fused whole-network Pallas kernel ----------------
def make_vit_fused_kernel(b_blk):
    """b_blk = images handled per grid step (static)."""
    tokens_blk = b_blk * N_PATCHES
    mm = MXU_DTYPE

    def kernel(patches_ref, pw_ref, pb_ref, pos_ref,
               ln1w_ref, ln1b_ref, wqkv_ref, bqkv_ref, wproj_ref, bproj_ref,
               ln2w_ref, ln2b_ref, wfc1_ref, bfc1_ref, wfc2_ref, bfc2_ref,
               nw_ref, nb_ref, o_ref):
        # ---- patch embed: Conv2d(k=s=P) lowered to one dense (T, C*P*P)@(C*P*P, E) matmul ----
        x = jnp.dot(patches_ref[...].astype(mm), pw_ref[...],
                    preferred_element_type=jnp.float32) + pb_ref[...]        # (T, E) f32
        # sincos positional embedding, batch-independent (N, E) table broadcast over images.
        if b_blk == 1:
            x = x + pos_ref[...]
        else:
            x = (x.reshape(b_blk, N_PATCHES, EMBED) + pos_ref[...][None, :, :]
                 ).reshape(tokens_blk, EMBED)
        # pos_drop with p=0.0 is the identity.

        for d in range(DEPTH):                                               # static unroll
            # -------- multi-head self-attention (pre-norm) --------
            xn = _layernorm(x, ln1w_ref[d], ln1b_ref[d], LN_EPS_BLOCK)       # (T, E) f32
            # fused QKV: one lane-dense (T, E)@(E, 3E) matmul (q | k | v, heads in lanes).
            qkv = jnp.dot(xn.astype(mm), wqkv_ref[d],
                          preferred_element_type=jnp.float32) + bqkv_ref[d]  # (T, 3E) f32
            qkv_m = qkv.astype(mm)

            ctx_heads = []
            for h in range(HEADS):                                           # static unroll
                o = h * HEAD_DIM
                q_h = qkv_m[:, o:o + HEAD_DIM].reshape(b_blk, N_PATCHES, HEAD_DIM)
                k_h = qkv_m[:, EMBED + o:EMBED + o + HEAD_DIM].reshape(b_blk, N_PATCHES, HEAD_DIM)
                v_h = qkv_m[:, 2 * EMBED + o:2 * EMBED + o + HEAD_DIM].reshape(b_blk, N_PATCHES, HEAD_DIM)

                s = jnp.einsum('bqd,bkd->bqk', q_h, k_h,
                               preferred_element_type=jnp.float32) * ATTN_SCALE   # (b, N, N)
                s = s - jnp.max(s, axis=-1, keepdims=True)                   # stable softmax
                e = jnp.exp(s)
                p = e / jnp.sum(e, axis=-1, keepdims=True)                   # exact divide (parity)
                ctx = jnp.einsum('bqk,bkd->bqd', p.astype(mm), v_h,
                                 preferred_element_type=jnp.float32)         # (b, N, hd)
                ctx_heads.append(ctx.reshape(tokens_blk, HEAD_DIM))

            # head merge (lane concat) + one dense (T, E)@(E, E) output projection.
            ctx_all = jnp.concatenate(ctx_heads, axis=-1)                    # (T, E) f32
            attn = jnp.dot(ctx_all.astype(mm), wproj_ref[d],
                           preferred_element_type=jnp.float32) + bproj_ref[d]
            x = x + attn

            # -------- MLP (pre-norm) --------
            xn = _layernorm(x, ln2w_ref[d], ln2b_ref[d], LN_EPS_BLOCK)
            h1 = jnp.dot(xn.astype(mm), wfc1_ref[d],
                         preferred_element_type=jnp.float32) + bfc1_ref[d]   # (T, HIDDEN)
            h1 = _gelu_exact(h1)
            h2 = jnp.dot(h1.astype(mm), wfc2_ref[d],
                         preferred_element_type=jnp.float32) + bfc2_ref[d]
            x = x + h2

        # ---- final LayerNorm ----
        o_ref[...] = _layernorm(x, nw_ref[...], nb_ref[...], LN_EPS_FINAL)

    return kernel


_WEIGHT_NAMES = ['patch_w', 'patch_b', 'pos', 'ln1_w', 'ln1_b', 'w_qkv', 'b_qkv',
                 'w_proj', 'b_proj', 'ln2_w', 'ln2_b',
                 'w_fc1', 'b_fc1', 'w_fc2', 'b_fc2', 'norm_w', 'norm_b']


def vit_fused_call(patches2d, kp, num_blocks):
    tokens_total = patches2d.shape[0]
    batch = tokens_total // N_PATCHES
    assert batch * N_PATCHES == tokens_total
    assert batch % num_blocks == 0, "batch must be divisible by NUM_TOKEN_BLOCKS"
    b_blk = batch // num_blocks
    tokens_blk = b_blk * N_PATCHES

    kernel = make_vit_fused_kernel(b_blk)
    weights = [kp[n] for n in _WEIGHT_NAMES]

    def full_spec(a):
        nd = a.ndim
        # whole-array block, constant index -> DMA'd once, VMEM-resident across grid steps.
        return pl.BlockSpec(a.shape, lambda i, _n=nd: (0,) * _n)

    in_specs = ([pl.BlockSpec((tokens_blk, PATCH_DIM), lambda i: (i, 0))]
                + [full_spec(w) for w in weights])
    out_specs = pl.BlockSpec((tokens_blk, EMBED), lambda i: (i, 0))

    # Advisory cost estimate for XLA's scheduler.
    T = tokens_total
    flops = (2 * T * PATCH_DIM * EMBED
             + DEPTH * (2 * T * EMBED * 3 * EMBED                           # fused qkv
                        + 4 * batch * HEADS * N_PATCHES * N_PATCHES * HEAD_DIM  # scores + ctx
                        + 2 * T * EMBED * EMBED                             # proj
                        + 4 * T * EMBED * HIDDEN))                          # fc1 + fc2
    transcendentals = DEPTH * (batch * HEADS * N_PATCHES * N_PATCHES + T * HIDDEN)
    bytes_accessed = int(patches2d.size * patches2d.dtype.itemsize
                         + T * EMBED * 4
                         + sum(w.size * w.dtype.itemsize for w in weights))

    return pl.pallas_call(
        kernel,
        grid=(num_blocks,),
        in_specs=in_specs,
        out_specs=out_specs,
        out_shape=jax.ShapeDtypeStruct((tokens_total, EMBED), jnp.float32),
        compiler_params=pltpu.CompilerParams(dimension_semantics=("parallel",)),
        cost_estimate=pl.CostEstimate(flops=flops, transcendentals=transcendentals,
                                      bytes_accessed=bytes_accessed),
    )(patches2d, *weights)


# ---------------- parameters & pos-embed ----------------
def _1d_sincos(embed_dim, pos):
    omega = np.arange(embed_dim // 2, dtype=np.float64) / (embed_dim / 2.0)
    omega = 1.0 / (10000 ** omega)
    out = np.einsum('m,d->md', pos.reshape(-1).astype(np.float64), omega)
    return np.concatenate([np.sin(out), np.cos(out)], axis=1)


def get_2d_sincos_pos_embed(embed_dim, grid_size):
    grid_h = np.arange(grid_size, dtype=np.float32)
    grid_w = np.arange(grid_size, dtype=np.float32)
    grid = np.meshgrid(grid_w, grid_h)                 # w first (reference convention)
    grid = np.stack(grid, axis=0).reshape([2, 1, grid_size, grid_size])
    emb_h = _1d_sincos(embed_dim // 2, grid[0])
    emb_w = _1d_sincos(embed_dim // 2, grid[1])
    return np.concatenate([emb_h, emb_w], axis=1).astype(np.float32)   # (grid**2, embed_dim)


def init_params(key):
    """Logical (PyTorch-layout) parameters."""
    std = 0.02
    keys = jax.random.split(key, 2 + DEPTH)
    params = {
        # conv weight (E, C, P, P) stored pre-reshaped/transposed as (C*P*P, E) for x @ W
        'patch_w': jax.random.normal(keys[0], (PATCH_DIM, EMBED), jnp.float32) * std,
        'patch_b': jax.random.normal(keys[1], (EMBED,), jnp.float32) * std,
        'norm_w': jnp.ones((EMBED,), jnp.float32),
        'norm_b': jnp.zeros((EMBED,), jnp.float32),
        'blocks': [],
    }
    for d in range(DEPTH):
        k = jax.random.split(keys[2 + d], 8)
        params['blocks'].append(dict(
            ln1_w=jnp.ones((EMBED,), jnp.float32),
            ln1_b=jnp.zeros((EMBED,), jnp.float32),
            w_qkv=jax.random.normal(k[0], (EMBED, 3 * EMBED), jnp.float32) * std,
            b_qkv=jax.random.normal(k[1], (3 * EMBED,), jnp.float32) * std,
            w_proj=jax.random.normal(k[2], (EMBED, EMBED), jnp.float32) * std,
            b_proj=jax.random.normal(k[3], (EMBED,), jnp.float32) * std,
            ln2_w=jnp.ones((EMBED,), jnp.float32),
            ln2_b=jnp.zeros((EMBED,), jnp.float32),
            w_fc1=jax.random.normal(k[4], (EMBED, HIDDEN), jnp.float32) * std,
            b_fc1=jax.random.normal(k[5], (HIDDEN,), jnp.float32) * std,
            w_fc2=jax.random.normal(k[6], (HIDDEN, EMBED), jnp.float32) * std,
            b_fc2=jax.random.normal(k[7], (EMBED,), jnp.float32) * std,
        ))
    return params


def prepare_kernel_params(params, pos_embed):
    """Repack logical params for the fused kernel (batch-independent):
       - per-depth tensors stacked along a leading DEPTH axis,
       - matmul weights pre-cast to MXU_DTYPE (halves weight DMA when bf16),
       - biases / LN params / pos kept in f32."""
    mm = MXU_DTYPE
    blocks = params['blocks']

    def stk(name):
        return jnp.stack([b[name] for b in blocks], axis=0)

    kp = {
        'patch_w': params['patch_w'].astype(mm),                         # (C*P*P, E)
        'patch_b': params['patch_b'].reshape(1, EMBED),
        'pos': jnp.asarray(pos_embed, jnp.float32),                      # (N, E)
        'ln1_w': stk('ln1_w').reshape(DEPTH, 1, EMBED),
        'ln1_b': stk('ln1_b').reshape(DEPTH, 1, EMBED),
        'w_qkv': stk('w_qkv').astype(mm),                                # (D, E, 3E)
        'b_qkv': stk('b_qkv').reshape(DEPTH, 1, 3 * EMBED),
        'w_proj': stk('w_proj').astype(mm),                              # (D, E, E)
        'b_proj': stk('b_proj').reshape(DEPTH, 1, EMBED),
        'ln2_w': stk('ln2_w').reshape(DEPTH, 1, EMBED),
        'ln2_b': stk('ln2_b').reshape(DEPTH, 1, EMBED),
        'w_fc1': stk('w_fc1').astype(mm),                                # (D, E, HIDDEN)
        'b_fc1': stk('b_fc1').reshape(DEPTH, 1, HIDDEN),
        'w_fc2': stk('w_fc2').astype(mm),                                # (D, HIDDEN, E)
        'b_fc2': stk('b_fc2').reshape(DEPTH, 1, EMBED),
        'norm_w': params['norm_w'].reshape(1, EMBED),
        'norm_b': params['norm_b'].reshape(1, EMBED),
    }
    return kp


# ---------------- forward ----------------
def _patchify(x):
    # patchify == Conv2d(kernel=stride=PATCH) lowered to a matmul; per-patch feature order
    # is (c, ph, pw), patch order row-major over (gh, gw) -> matches flatten(2).transpose(1,2).
    B, C, H, W = x.shape
    gh, gw = H // PATCH, W // PATCH
    return (x.reshape(B, C, gh, PATCH, gw, PATCH)
              .transpose(0, 2, 4, 1, 3, 5)
              .reshape(B * gh * gw, C * PATCH * PATCH)), gh, gw


def vit_forward(x, kparams, masks=None, num_blocks=NUM_TOKEN_BLOCKS):
    # x: (B, C, H, W) NCHW float32, matching the PyTorch module.
    # TODO(synk): apply_masks(x, masks) (context-mask token gather) not implemented; masks=None only.
    assert masks is None
    B = x.shape[0]
    patches, gh, gw = _patchify(x)
    assert gh * gw == N_PATCHES
    out2d = vit_fused_call(patches, kparams, num_blocks)                 # (B*N, E)
    return out2d.reshape(B, gh * gw, EMBED)


# ---------------- pure-JAX reference (same dtype policy) for self-check ----------------
def vit_reference(x, params, pos_embed):
    mm = MXU_DTYPE
    B = x.shape[0]
    patches, gh, gw = _patchify(x)
    patches = patches.reshape(B, gh * gw, PATCH_DIM)

    def ln(v, w, b, eps):
        mu = v.mean(-1, keepdims=True)
        var = ((v - mu) ** 2).mean(-1, keepdims=True)
        return (v - mu) * jax.lax.rsqrt(var + eps) * w + b

    xx = jnp.einsum('bnp,pe->bne', patches.astype(mm), params['patch_w'].astype(mm),
                    preferred_element_type=jnp.float32) + params['patch_b'][None, None]
    xx = xx + pos_embed[None]
    for blk in params['blocks']:
        xn = ln(xx, blk['ln1_w'], blk['ln1_b'], LN_EPS_BLOCK)
        qkv = jnp.einsum('bne,ef->bnf', xn.astype(mm), blk['w_qkv'].astype(mm),
                         preferred_element_type=jnp.float32) + blk['b_qkv']
        qkv = qkv.astype(mm)
        q, k, v = jnp.split(qkv, 3, axis=-1)
        def heads(t):
            return t.reshape(B, N_PATCHES, HEADS, HEAD_DIM).transpose(0, 2, 1, 3)
        q, k, v = heads(q), heads(k), heads(v)
        s = jnp.einsum('bhqd,bhkd->bhqk', q, k,
                       preferred_element_type=jnp.float32) * ATTN_SCALE
        s = s - s.max(-1, keepdims=True)
        e = jnp.exp(s)
        p = e / e.sum(-1, keepdims=True)
        ctx = jnp.einsum('bhqk,bhkd->bhqd', p.astype(mm), v,
                         preferred_element_type=jnp.float32)
        ctx = ctx.transpose(0, 2, 1, 3).reshape(B, N_PATCHES, EMBED)
        attn = jnp.einsum('bne,ef->bnf', ctx.astype(mm), blk['w_proj'].astype(mm),
                          preferred_element_type=jnp.float32) + blk['b_proj']
        xx = xx + attn
        xn = ln(xx, blk['ln2_w'], blk['ln2_b'], LN_EPS_BLOCK)
        h1 = jnp.einsum('bne,ef->bnf', xn.astype(mm), blk['w_fc1'].astype(mm),
                        preferred_element_type=jnp.float32) + blk['b_fc1']
        h1 = _gelu_exact(h1)
        h2 = jnp.einsum('bnf,fe->bne', h1.astype(mm), blk['w_fc2'].astype(mm),
                        preferred_element_type=jnp.float32) + blk['b_fc2']
        xx = xx + h2
    return ln(xx, params['norm_w'], params['norm_b'], LN_EPS_FINAL)


if __name__ == "__main__":
    key = jax.random.PRNGKey(0)
    k_param, k_x = jax.random.split(key)

    params = init_params(k_param)
    pos_embed = jnp.asarray(get_2d_sincos_pos_embed(EMBED, GRID))            # (N, E)
    kparams = prepare_kernel_params(params, pos_embed)                       # batch-independent
    x = jax.random.normal(k_x, (BATCH, IN_CHANS, IMG, IMG), jnp.float32)     # NCHW like PyTorch

    forward = jax.jit(vit_forward)
    out = jax.block_until_ready(forward(x, kparams))
    assert out.shape == (BATCH, N_PATCHES, EMBED), out.shape
    assert bool(jnp.all(jnp.isfinite(out)))

    # self-check against a pure-JAX reference using the same dtype policy
    ref = jax.block_until_ready(jax.jit(vit_reference)(x, params, pos_embed))
    assert bool(jnp.allclose(out, ref, rtol=5e-3, atol=5e-3)), \
        float(jnp.max(jnp.abs(out - ref)))

    print("KERNEL_OK")
</pallas_src>

<mosaic_0001>
module attributes {stable_mosaic.version = 11 : i64} {
  func.func @kernel(%arg0: i32, %arg1: memref<16x64xf32, #tpu.memory_space<vmem>>, %arg2: memref<64x32xbf16, #tpu.memory_space<vmem>>, %arg3: memref<1x32xf32, #tpu.memory_space<vmem>>, %arg4: memref<16x32xf32, #tpu.memory_space<vmem>>, %arg5: memref<2x1x32xf32, #tpu.memory_space<vmem>>, %arg6: memref<2x1x32xf32, #tpu.memory_space<vmem>>, %arg7: memref<2x32x96xbf16, #tpu.memory_space<vmem>>, %arg8: memref<2x1x96xf32, #tpu.memory_space<vmem>>, %arg9: memref<2x32x32xbf16, #tpu.memory_space<vmem>>, %arg10: memref<2x1x32xf32, #tpu.memory_space<vmem>>, %arg11: memref<2x1x32xf32, #tpu.memory_space<vmem>>, %arg12: memref<2x1x32xf32, #tpu.memory_space<vmem>>, %arg13: memref<2x32x128xbf16, #tpu.memory_space<vmem>>, %arg14: memref<2x1x128xf32, #tpu.memory_space<vmem>>, %arg15: memref<2x128x32xbf16, #tpu.memory_space<vmem>>, %arg16: memref<2x1x32xf32, #tpu.memory_space<vmem>>, %arg17: memref<1x32xf32, #tpu.memory_space<vmem>>, %arg18: memref<1x32xf32, #tpu.memory_space<vmem>>, %arg19: memref<16x32xf32, #tpu.memory_space<vmem>>) attributes {dimension_semantics = [#tpu.dimension_semantics<parallel>], iteration_bounds = array<i64: 2>, scalar_prefetch = 0 : i64, scratch_operands = 0 : i64, tpu.core_type = #tpu.core_type<tc>, window_params = [{transform_indices = @transform_0, window_bounds = array<i64: 16, 64>}, {pipeline_mode = #tpu.pipeline_mode<synchronous>, transform_indices = @transform_1, window_bounds = array<i64: 64, 32>}, {pipeline_mode = #tpu.pipeline_mode<synchronous>, transform_indices = @transform_2, window_bounds = array<i64: 1, 32>}, {pipeline_mode = #tpu.pipeline_mode<synchronous>, transform_indices = @transform_3, window_bounds = array<i64: 16, 32>}, {pipeline_mode = #tpu.pipeline_mode<synchronous>, transform_indices = @transform_4, window_bounds = array<i64: 2, 1, 32>}, {pipeline_mode = #tpu.pipeline_mode<synchronous>, transform_indices = @transform_5, window_bounds = array<i64: 2, 1, 32>}, {pipeline_mode = #tpu.pipeline_mode<synchronous>, transform_indices = @transform_6, window_bounds = array<i64: 2, 32, 96>}, {pipeline_mode = #tpu.pipeline_mode<synchronous>, transform_indices = @transform_7, window_bounds = array<i64: 2, 1, 96>}, {pipeline_mode = #tpu.pipeline_mode<synchronous>, transform_indices = @transform_8, window_bounds = array<i64: 2, 32, 32>}, {pipeline_mode = #tpu.pipeline_mode<synchronous>, transform_indices = @transform_9, window_bounds = array<i64: 2, 1, 32>}, {pipeline_mode = #tpu.pipeline_mode<synchronous>, transform_indices = @transform_10, window_bounds = array<i64: 2, 1, 32>}, {pipeline_mode = #tpu.pipeline_mode<synchronous>, transform_indices = @transform_11, window_bounds = array<i64: 2, 1, 32>}, {pipeline_mode = #tpu.pipeline_mode<synchronous>, transform_indices = @transform_12, window_bounds = array<i64: 2, 32, 128>}, {pipeline_mode = #tpu.pipeline_mode<synchronous>, transform_indices = @transform_13, window_bounds = array<i64: 2, 1, 128>}, {pipeline_mode = #tpu.pipeline_mode<synchronous>, transform_indices = @transform_14, window_bounds = array<i64: 2, 128, 32>}, {pipeline_mode = #tpu.pipeline_mode<synchronous>, transform_indices = @transform_15, window_bounds = array<i64: 2, 1, 32>}, {pipeline_mode = #tpu.pipeline_mode<synchronous>, transform_indices = @transform_16, window_bounds = array<i64: 1, 32>}, {pipeline_mode = #tpu.pipeline_mode<synchronous>, transform_indices = @transform_17, window_bounds = array<i64: 1, 32>}, {transform_indices = @transform_18, window_bounds = array<i64: 16, 32>}]} {
    %c0 = arith.constant 0 : index
    %c0_0 = arith.constant 0 : index
    %0 = vector.load %arg1[%c0, %c0_0] : memref<16x64xf32, #tpu.memory_space<vmem>>, vector<16x64xf32>
    %1 = arith.truncf %0 : vector<16x64xf32> to vector<16x64xbf16>
    %c0_1 = arith.constant 0 : index
    %c0_2 = arith.constant 0 : index
    %2 = vector.load %arg2[%c0_1, %c0_2] : memref<64x32xbf16, #tpu.memory_space<vmem>>, vector<64x32xbf16>
    %cst = arith.constant dense<0.000000e+00> : vector<16x32xf32>
    %3 = tpu.matmul %1, %2, %cst {dimension_numbers = #tpu.dot_dimension_numbers<[1], [0], [0], [1], [0, 0, 1, 1], [], []>} : vector<16x64xbf16>, vector<64x32xbf16>, vector<16x32xf32> -> vector<16x32xf32>
    %c0_3 = arith.constant 0 : index
    %c0_4 = arith.constant 0 : index
    %4 = vector.load %arg3[%c0_3, %c0_4] : memref<1x32xf32, #tpu.memory_space<vmem>>, vector<1x32xf32>
    %5 = vector.broadcast %4 : vector<1x32xf32> to vector<16x32xf32>
    %6 = arith.addf %3, %5 : vector<16x32xf32>
    %c0_5 = arith.constant 0 : index
    %c0_6 = arith.constant 0 : index
    %7 = vector.load %arg4[%c0_5, %c0_6] : memref<16x32xf32, #tpu.memory_space<vmem>>, vector<16x32xf32>
    %8 = arith.addf %6, %7 : vector<16x32xf32>
    %c0_7 = arith.constant 0 : index
    %c0_8 = arith.constant 0 : index
    %c0_9 = arith.constant 0 : index
    %9 = vector.load %arg5[%c0_7, %c0_8, %c0_9] : memref<2x1x32xf32, #tpu.memory_space<vmem>>, vector<1x1x32xf32>
    %10 = vector.shape_cast %9 : vector<1x1x32xf32> to vector<1x32xf32>
    %c0_10 = arith.constant 0 : index
    %c0_11 = arith.constant 0 : index
    %c0_12 = arith.constant 0 : index
    %11 = vector.load %arg6[%c0_10, %c0_11, %c0_12] : memref<2x1x32xf32, #tpu.memory_space<vmem>>, vector<1x1x32xf32>
    %12 = vector.shape_cast %11 : vector<1x1x32xf32> to vector<1x32xf32>
    %cst_13 = arith.constant dense<0.000000e+00> : vector<16xf32>
    %13 = vector.multi_reduction <add>, %8, %cst_13 [1] : vector<16x32xf32> to vector<16xf32>
    %14 = vector.shape_cast %13 : vector<16xf32> to vector<16x1xf32>
    %cst_14 = arith.constant 3.200000e+01 : f32
    %15 = vector.broadcast %cst_14 : f32 to vector<16x1xf32>
    %16 = arith.divf %14, %15 : vector<16x1xf32>
    %17 = vector.broadcast %16 : vector<16x1xf32> to vector<16x32xf32>
    %18 = arith.subf %8, %17 : vector<16x32xf32>
    %19 = arith.mulf %18, %18 : vector<16x32xf32>
    %cst_15 = arith.constant dense<0.000000e+00> : vector<16xf32>
    %20 = vector.multi_reduction <add>, %19, %cst_15 [1] : vector<16x32xf32> to vector<16xf32>
    %21 = vector.shape_cast %20 : vector<16xf32> to vector<16x1xf32>
    %cst_16 = arith.constant 3.200000e+01 : f32
    %22 = vector.broadcast %cst_16 : f32 to vector<16x1xf32>
    %23 = arith.divf %21, %22 : vector<16x1xf32>
    %24 = vector.broadcast %16 : vector<16x1xf32> to vector<16x32xf32>
    %25 = arith.subf %8, %24 : vector<16x32xf32>
    %cst_17 = arith.constant 9.99999974E-6 : f32
    %26 = vector.broadcast %cst_17 : f32 to vector<16x1xf32>
    %27 = arith.addf %23, %26 : vector<16x1xf32>
    %28 = math.rsqrt %27 : vector<16x1xf32>
    %29 = vector.broadcast %28 : vector<16x1xf32> to vector<16x32xf32>
    %30 = arith.mulf %25, %29 : vector<16x32xf32>
    %31 = vector.broadcast %10 : vector<1x32xf32> to vector<16x32xf32>
    %32 = arith.mulf %30, %31 : vector<16x32xf32>
    %33 = vector.broadcast %12 : vector<1x32xf32> to vector<16x32xf32>
    %34 = arith.addf %32, %33 : vector<16x32xf32>
    %35 = arith.truncf %34 : vector<16x32xf32> to vector<16x32xbf16>
    %c0_18 = arith.constant 0 : index
    %c0_19 = arith.constant 0 : index
    %c0_20 = arith.constant 0 : index
    %36 = vector.load %arg7[%c0_18, %c0_19, %c0_20] : memref<2x32x96xbf16, #tpu.memory_space<vmem>>, vector<1x32x96xbf16>
    %37 = vector.shape_cast %36 : vector<1x32x96xbf16> to vector<32x96xbf16>
    %cst_21 = arith.constant dense<0.000000e+00> : vector<16x96xf32>
    %38 = tpu.matmul %35, %37, %cst_21 {dimension_numbers = #tpu.dot_dimension_numbers<[1], [0], [0], [1], [0, 0, 1, 1], [], []>} : vector<16x32xbf16>, vector<32x96xbf16>, vector<16x96xf32> -> vector<16x96xf32>
    %c0_22 = arith.constant 0 : index
    %c0_23 = arith.constant 0 : index
    %c0_24 = arith.constant 0 : index
    %39 = vector.load %arg8[%c0_22, %c0_23, %c0_24] : memref<2x1x96xf32, #tpu.memory_space<vmem>>, vector<1x1x96xf32>
    %40 = vector.shape_cast %39 : vector<1x1x96xf32> to vector<1x96xf32>
    %41 = vector.broadcast %40 : vector<1x96xf32> to vector<16x96xf32>
    %42 = arith.addf %38, %41 : vector<16x96xf32>
    %43 = arith.truncf %42 : vector<16x96xf32> to vector<16x96xbf16>
    %44 = vector.extract_strided_slice %43 {offsets = [0, 0], sizes = [16, 8], strides = [1, 1]} : vector<16x96xbf16> to vector<16x8xbf16>
    %45 = vector.shape_cast %44 : vector<16x8xbf16> to vector<1x16x8xbf16>
    %46 = vector.extract_strided_slice %43 {offsets = [0, 32], sizes = [16, 8], strides = [1, 1]} : vector<16x96xbf16> to vector<16x8xbf16>
    %47 = vector.shape_cast %46 : vector<16x8xbf16> to vector<1x16x8xbf16>
    %48 = vector.extract_strided_slice %43 {offsets = [0, 64], sizes = [16, 8], strides = [1, 1]} : vector<16x96xbf16> to vector<16x8xbf16>
    %49 = vector.shape_cast %48 : vector<16x8xbf16> to vector<1x16x8xbf16>
    "tpu.trace_start"() <{level = 10 : i32, message = "bqd,bkd->bqk"}> : () -> ()
    %cst_25 = arith.constant dense<0.000000e+00> : vector<1x16x16xf32>
    %50 = tpu.matmul %45, %47, %cst_25 {dimension_numbers = #tpu.dot_dimension_numbers<[2], [2], [1], [1], [0, 0, 0, 1, 1, 1], [0], [0]>} : vector<1x16x8xbf16>, vector<1x16x8xbf16>, vector<1x16x16xf32> -> vector<1x16x16xf32>
    "tpu.trace_stop"() : () -> ()
    %cst_26 = arith.constant 0.353553385 : f32
    %51 = vector.broadcast %cst_26 : f32 to vector<1x16x16xf32>
    %52 = arith.mulf %50, %51 : vector<1x16x16xf32>
    %cst_27 = arith.constant dense<0xFF800000> : vector<1x16xf32>
    %53 = vector.multi_reduction <maximumf>, %52, %cst_27 [2] : vector<1x16x16xf32> to vector<1x16xf32>
    %54 = vector.shape_cast %53 : vector<1x16xf32> to vector<1x16x1xf32>
    %55 = vector.broadcast %54 : vector<1x16x1xf32> to vector<1x16x16xf32>
    %56 = arith.subf %52, %55 : vector<1x16x16xf32>
    %57 = math.exp %56 : vector<1x16x16xf32>
    %cst_28 = arith.constant dense<0.000000e+00> : vector<1x16xf32>
    %58 = vector.multi_reduction <add>, %57, %cst_28 [2] : vector<1x16x16xf32> to vector<1x16xf32>
    %59 = vector.shape_cast %58 : vector<1x16xf32> to vector<1x16x1xf32>
    %60 = vector.broadcast %59 : vector<1x16x1xf32> to vector<1x16x16xf32>
    %61 = arith.divf %57, %60 : vector<1x16x16xf32>
    %62 = arith.truncf %61 : vector<1x16x16xf32> to vector<1x16x16xbf16>
    "tpu.trace_start"() <{level = 10 : i32, message = "bqk,bkd->bqd"}> : () -> ()
    %cst_29 = arith.constant dense<0.000000e+00> : vector<1x16x8xf32>
    %63 = tpu.matmul %62, %49, %cst_29 {dimension_numbers = #tpu.dot_dimension_numbers<[2], [1], [1], [2], [0, 0, 0, 1, 1, 2], [0], [0]>} : vector<1x16x16xbf16>, vector<1x16x8xbf16>, vector<1x16x8xf32> -> vector<1x16x8xf32>
    "tpu.trace_stop"() : () -> ()
    %64 = vector.shape_cast %63 : vector<1x16x8xf32> to vector<16x8xf32>
    %65 = vector.extract_strided_slice %43 {offsets = [0, 8], sizes = [16, 8], strides = [1, 1]} : vector<16x96xbf16> to vector<16x8xbf16>
    %66 = vector.shape_cast %65 : vector<16x8xbf16> to vector<1x16x8xbf16>
    %67 = vector.extract_strided_slice %43 {offsets = [0, 40], sizes = [16, 8], strides = [1, 1]} : vector<16x96xbf16> to vector<16x8xbf16>
    %68 = vector.shape_cast %67 : vector<16x8xbf16> to vector<1x16x8xbf16>
    %69 = vector.extract_strided_slice %43 {offsets = [0, 72], sizes = [16, 8], strides = [1, 1]} : vector<16x96xbf16> to vector<16x8xbf16>
    %70 = vector.shape_cast %69 : vector<16x8xbf16> to vector<1x16x8xbf16>
    "tpu.trace_start"() <{level = 10 : i32, message = "bqd,bkd->bqk"}> : () -> ()
    %cst_30 = arith.constant dense<0.000000e+00> : vector<1x16x16xf32>
    %71 = tpu.matmul %66, %68, %cst_30 {dimension_numbers = #tpu.dot_dimension_numbers<[2], [2], [1], [1], [0, 0, 0, 1, 1, 1], [0], [0]>} : vector<1x16x8xbf16>, vector<1x16x8xbf16>, vector<1x16x16xf32> -> vector<1x16x16xf32>
    "tpu.trace_stop"() : () -> ()
    %cst_31 = arith.constant 0.353553385 : f32
    %72 = vector.broadcast %cst_31 : f32 to vector<1x16x16xf32>
    %73 = arith.mulf %71, %72 : vector<1x16x16xf32>
    %cst_32 = arith.constant dense<0xFF800000> : vector<1x16xf32>
    %74 = vector.multi_reduction <maximumf>, %73, %cst_32 [2] : vector<1x16x16xf32> to vector<1x16xf32>
    %75 = vector.shape_cast %74 : vector<1x16xf32> to vector<1x16x1xf32>
    %76 = vector.broadcast %75 : vector<1x16x1xf32> to vector<1x16x16xf32>
    %77 = arith.subf %73, %76 : vector<1x16x16xf32>
    %78 = math.exp %77 : vector<1x16x16xf32>
    %cst_33 = arith.constant dense<0.000000e+00> : vector<1x16xf32>
    %79 = vector.multi_reduction <add>, %78, %cst_33 [2] : vector<1x16x16xf32> to vector<1x16xf32>
    %80 = vector.shape_cast %79 : vector<1x16xf32> to vector<1x16x1xf32>
    %81 = vector.broadcast %80 : vector<1x16x1xf32> to vector<1x16x16xf32>
    %82 = arith.divf %78, %81 : vector<1x16x16xf32>
    %83 = arith.truncf %82 : vector<1x16x16xf32> to vector<1x16x16xbf16>
    "tpu.trace_start"() <{level = 10 : i32, message = "bqk,bkd->bqd"}> : () -> ()
    %cst_34 = arith.constant dense<0.000000e+00> : vector<1x16x8xf32>
    %84 = tpu.matmul %83, %70, %cst_34 {dimension_numbers = #tpu.dot_dimension_numbers<[2], [1], [1], [2], [0, 0, 0, 1, 1, 2], [0], [0]>} : vector<1x16x16xbf16>, vector<1x16x8xbf16>, vector<1x16x8xf32> -> vector<1x16x8xf32>
    "tpu.trace_stop"() : () -> ()
    %85 = vector.shape_cast %84 : vector<1x16x8xf32> to vector<16x8xf32>
    %86 = vector.extract_strided_slice %43 {offsets = [0, 16], sizes = [16, 8], strides = [1, 1]} : vector<16x96xbf16> to vector<16x8xbf16>
    %87 = vector.shape_cast %86 : vector<16x8xbf16> to vector<1x16x8xbf16>
    %88 = vector.extract_strided_slice %43 {offsets = [0, 48], sizes = [16, 8], strides = [1, 1]} : vector<16x96xbf16> to vector<16x8xbf16>
    %89 = vector.shape_cast %88 : vector<16x8xbf16> to vector<1x16x8xbf16>
    %90 = vector.extract_strided_slice %43 {offsets = [0, 80], sizes = [16, 8], strides = [1, 1]} : vector<16x96xbf16> to vector<16x8xbf16>
    %91 = vector.shape_cast %90 : vector<16x8xbf16> to vector<1x16x8xbf16>
    "tpu.trace_start"() <{level = 10 : i32, message = "bqd,bkd->bqk"}> : () -> ()
    %cst_35 = arith.constant dense<0.000000e+00> : vector<1x16x16xf32>
    %92 = tpu.matmul %87, %89, %cst_35 {dimension_numbers = #tpu.dot_dimension_numbers<[2], [2], [1], [1], [0, 0, 0, 1, 1, 1], [0], [0]>} : vector<1x16x8xbf16>, vector<1x16x8xbf16>, vector<1x16x16xf32> -> vector<1x16x16xf32>
    "tpu.trace_stop"() : () -> ()
    %cst_36 = arith.constant 0.353553385 : f32
    %93 = vector.broadcast %cst_36 : f32 to vector<1x16x16xf32>
    %94 = arith.mulf %92, %93 : vector<1x16x16xf32>
    %cst_37 = arith.constant dense<0xFF800000> : vector<1x16xf32>
    %95 = vector.multi_reduction <maximumf>, %94, %cst_37 [2] : vector<1x16x16xf32> to vector<1x16xf32>
    %96 = vector.shape_cast %95 : vector<1x16xf32> to vector<1x16x1xf32>
    %97 = vector.broadcast %96 : vector<1x16x1xf32> to vector<1x16x16xf32>
    %98 = arith.subf %94, %97 : vector<1x16x16xf32>
    %99 = math.exp %98 : vector<1x16x16xf32>
    %cst_38 = arith.constant dense<0.000000e+00> : vector<1x16xf32>
    %100 = vector.multi_reduction <add>, %99, %cst_38 [2] : vector<1x16x16xf32> to vector<1x16xf32>
    %101 = vector.shape_cast %100 : vector<1x16xf32> to vector<1x16x1xf32>
    %102 = vector.broadcast %101 : vector<1x16x1xf32> to vector<1x16x16xf32>
    %103 = arith.divf %99, %102 : vector<1x16x16xf32>
    %104 = arith.truncf %103 : vector<1x16x16xf32> to vector<1x16x16xbf16>
    "tpu.trace_start"() <{level = 10 : i32, message = "bqk,bkd->bqd"}> : () -> ()
    %cst_39 = arith.constant dense<0.000000e+00> : vector<1x16x8xf32>
    %105 = tpu.matmul %104, %91, %cst_39 {dimension_numbers = #tpu.dot_dimension_numbers<[2], [1], [1], [2], [0, 0, 0, 1, 1, 2], [0], [0]>} : vector<1x16x16xbf16>, vector<1x16x8xbf16>, vector<1x16x8xf32> -> vector<1x16x8xf32>
    "tpu.trace_stop"() : () -> ()
    %106 = vector.shape_cast %105 : vector<1x16x8xf32> to vector<16x8xf32>
    %107 = vector.extract_strided_slice %43 {offsets = [0, 24], sizes = [16, 8], strides = [1, 1]} : vector<16x96xbf16> to vector<16x8xbf16>
    %108 = vector.shape_cast %107 : vector<16x8xbf16> to vector<1x16x8xbf16>
    %109 = vector.extract_strided_slice %43 {offsets = [0, 56], sizes = [16, 8], strides = [1, 1]} : vector<16x96xbf16> to vector<16x8xbf16>
    %110 = vector.shape_cast %109 : vector<16x8xbf16> to vector<1x16x8xbf16>
    %111 = vector.extract_strided_slice %43 {offsets = [0, 88], sizes = [16, 8], strides = [1, 1]} : vector<16x96xbf16> to vector<16x8xbf16>
    %112 = vector.shape_cast %111 : vector<16x8xbf16> to vector<1x16x8xbf16>
    "tpu.trace_start"() <{level = 10 : i32, message = "bqd,bkd->bqk"}> : () -> ()
    %cst_40 = arith.constant dense<0.000000e+00> : vector<1x16x16xf32>
    %113 = tpu.matmul %108, %110, %cst_40 {dimension_numbers = #tpu.dot_dimension_numbers<[2], [2], [1], [1], [0, 0, 0, 1, 1, 1], [0], [0]>} : vector<1x16x8xbf16>, vector<1x16x8xbf16>, vector<1x16x16xf32> -> vector<1x16x16xf32>
    "tpu.trace_stop"() : () -> ()
    %cst_41 = arith.constant 0.353553385 : f32
    %114 = vector.broadcast %cst_41 : f32 to vector<1x16x16xf32>
    %115 = arith.mulf %113, %114 : vector<1x16x16xf32>
    %cst_42 = arith.constant dense<0xFF800000> : vector<1x16xf32>
    %116 = vector.multi_reduction <maximumf>, %115, %cst_42 [2] : vector<1x16x16xf32> to vector<1x16xf32>
    %117 = vector.shape_cast %116 : vector<1x16xf32> to vector<1x16x1xf32>
    %118 = vector.broadcast %117 : vector<1x16x1xf32> to vector<1x16x16xf32>
    %119 = arith.subf %115, %118 : vector<1x16x16xf32>
    %120 = math.exp %119 : vector<1x16x16xf32>
    %cst_43 = arith.constant dense<0.000000e+00> : vector<1x16xf32>
    %121 = vector.multi_reduction <add>, %120, %cst_43 [2] : vector<1x16x16xf32> to vector<1x16xf32>
    %122 = vector.shape_cast %121 : vector<1x16xf32> to vector<1x16x1xf32>
    %123 = vector.broadcast %122 : vector<1x16x1xf32> to vector<1x16x16xf32>
    %124 = arith.divf %120, %123 : vector<1x16x16xf32>
    %125 = arith.truncf %124 : vector<1x16x16xf32> to vector<1x16x16xbf16>
    "tpu.trace_start"() <{level = 10 : i32, message = "bqk,bkd->bqd"}> : () -> ()
    %cst_44 = arith.constant dense<0.000000e+00> : vector<1x16x8xf32>
    %126 = tpu.matmul %125, %112, %cst_44 {dimension_numbers = #tpu.dot_dimension_numbers<[2], [1], [1], [2], [0, 0, 0, 1, 1, 2], [0], [0]>} : vector<1x16x16xbf16>, vector<1x16x8xbf16>, vector<1x16x8xf32> -> vector<1x16x8xf32>
    "tpu.trace_stop"() : () -> ()
    %127 = vector.shape_cast %126 : vector<1x16x8xf32> to vector<16x8xf32>
    %128 = tpu.concatenate %64, %85, %106, %127 in 1 : vector<16x8xf32>, vector<16x8xf32>, vector<16x8xf32>, vector<16x8xf32> -> vector<16x32xf32>
    %129 = arith.truncf %128 : vector<16x32xf32> to vector<16x32xbf16>
    %c0_45 = arith.constant 0 : index
    %c0_46 = arith.constant 0 : index
    %c0_47 = arith.constant 0 : index
    %130 = vector.load %arg9[%c0_45, %c0_46, %c0_47] : memref<2x32x32xbf16, #tpu.memory_space<vmem>>, vector<1x32x32xbf16>
    %131 = vector.shape_cast %130 : vector<1x32x32xbf16> to vector<32x32xbf16>
    %cst_48 = arith.constant dense<0.000000e+00> : vector<16x32xf32>
    %132 = tpu.matmul %129, %131, %cst_48 {dimension_numbers = #tpu.dot_dimension_numbers<[1], [0], [0], [1], [0, 0, 1, 1], [], []>} : vector<16x32xbf16>, vector<32x32xbf16>, vector<16x32xf32> -> vector<16x32xf32>
    %c0_49 = arith.constant 0 : index
    %c0_50 = arith.constant 0 : index
    %c0_51 = arith.constant 0 : index
    %133 = vector.load %arg10[%c0_49, %c0_50, %c0_51] : memref<2x1x32xf32, #tpu.memory_space<vmem>>, vector<1x1x32xf32>
    %134 = vector.shape_cast %133 : vector<1x1x32xf32> to vector<1x32xf32>
    %135 = vector.broadcast %134 : vector<1x32xf32> to vector<16x32xf32>
    %136 = arith.addf %132, %135 : vector<16x32xf32>
    %137 = arith.addf %8, %136 : vector<16x32xf32>
    %c0_52 = arith.constant 0 : index
    %c0_53 = arith.constant 0 : index
    %c0_54 = arith.constant 0 : index
    %138 = vector.load %arg11[%c0_52, %c0_53, %c0_54] : memref<2x1x32xf32, #tpu.memory_space<vmem>>, vector<1x1x32xf32>
    %139 = vector.shape_cast %138 : vector<1x1x32xf32> to vector<1x32xf32>
    %c0_55 = arith.constant 0 : index
    %c0_56 = arith.constant 0 : index
    %c0_57 = arith.constant 0 : index
    %140 = vector.load %arg12[%c0_55, %c0_56, %c0_57] : memref<2x1x32xf32, #tpu.memory_space<vmem>>, vector<1x1x32xf32>
    %141 = vector.shape_cast %140 : vector<1x1x32xf32> to vector<1x32xf32>
    %cst_58 = arith.constant dense<0.000000e+00> : vector<16xf32>
    %142 = vector.multi_reduction <add>, %137, %cst_58 [1] : vector<16x32xf32> to vector<16xf32>
    %143 = vector.shape_cast %142 : vector<16xf32> to vector<16x1xf32>
    %cst_59 = arith.constant 3.200000e+01 : f32
    %144 = vector.broadcast %cst_59 : f32 to vector<16x1xf32>
    %145 = arith.divf %143, %144 : vector<16x1xf32>
    %146 = vector.broadcast %145 : vector<16x1xf32> to vector<16x32xf32>
    %147 = arith.subf %137, %146 : vector<16x32xf32>
    %148 = arith.mulf %147, %147 : vector<16x32xf32>
    %cst_60 = arith.constant dense<0.000000e+00> : vector<16xf32>
    %149 = vector.multi_reduction <add>, %148, %cst_60 [1] : vector<16x32xf32> to vector<16xf32>
    %150 = vector.shape_cast %149 : vector<16xf32> to vector<16x1xf32>
    %cst_61 = arith.constant 3.200000e+01 : f32
    %151 = vector.broadcast %cst_61 : f32 to vector<16x1xf32>
    %152 = arith.divf %150, %151 : vector<16x1xf32>
    %153 = vector.broadcast %145 : vector<16x1xf32> to vector<16x32xf32>
    %154 = arith.subf %137, %153 : vector<16x32xf32>
    %cst_62 = arith.constant 9.99999974E-6 : f32
    %155 = vector.broadcast %cst_62 : f32 to vector<16x1xf32>
    %156 = arith.addf %152, %155 : vector<16x1xf32>
    %157 = math.rsqrt %156 : vector<16x1xf32>
    %158 = vector.broadcast %157 : vector<16x1xf32> to vector<16x32xf32>
    %159 = arith.mulf %154, %158 : vector<16x32xf32>
    %160 = vector.broadcast %139 : vector<1x32xf32> to vector<16x32xf32>
    %161 = arith.mulf %159, %160 : vector<16x32xf32>
    %162 = vector.broadcast %141 : vector<1x32xf32> to vector<16x32xf32>
    %163 = arith.addf %161, %162 : vector<16x32xf32>
    %164 = arith.truncf %163 : vector<16x32xf32> to vector<16x32xbf16>
    %c0_63 = arith.constant 0 : index
    %c0_64 = arith.constant 0 : index
    %c0_65 = arith.constant 0 : index
    %165 = vector.load %arg13[%c0_63, %c0_64, %c0_65] : memref<2x32x128xbf16, #tpu.memory_space<vmem>>, vector<1x32x128xbf16>
    %166 = vector.shape_cast %165 : vector<1x32x128xbf16> to vector<32x128xbf16>
    %cst_66 = arith.constant dense<0.000000e+00> : vector<16x128xf32>
    %167 = tpu.matmul %164, %166, %cst_66 {dimension_numbers = #tpu.dot_dimension_numbers<[1], [0], [0], [1], [0, 0, 1, 1], [], []>} : vector<16x32xbf16>, vector<32x128xbf16>, vector<16x128xf32> -> vector<16x128xf32>
    %c0_67 = arith.constant 0 : index
    %c0_68 = arith.constant 0 : index
    %c0_69 = arith.constant 0 : index
    %168 = vector.load %arg14[%c0_67, %c0_68, %c0_69] : memref<2x1x128xf32, #tpu.memory_space<vmem>>, vector<1x1x128xf32>
    %169 = vector.shape_cast %168 : vector<1x1x128xf32> to vector<1x128xf32>
    %170 = vector.broadcast %169 : vector<1x128xf32> to vector<16x128xf32>
    %171 = arith.addf %167, %170 : vector<16x128xf32>
    %cst_70 = arith.constant 5.000000e-01 : f32
    %172 = vector.broadcast %cst_70 : f32 to vector<16x128xf32>
    %173 = arith.mulf %172, %171 : vector<16x128xf32>
    %cst_71 = arith.constant 0.707106769 : f32
    %174 = vector.broadcast %cst_71 : f32 to vector<16x128xf32>
    %175 = arith.mulf %171, %174 : vector<16x128xf32>
    %176 = math.absf %175 : vector<16x128xf32>
    %cst_72 = arith.constant 0.327591091 : f32
    %177 = vector.broadcast %cst_72 : f32 to vector<16x128xf32>
    %178 = arith.mulf %177, %176 : vector<16x128xf32>
    %cst_73 = arith.constant 1.000000e+00 : f32
    %179 = vector.broadcast %cst_73 : f32 to vector<16x128xf32>
    %180 = arith.addf %179, %178 : vector<16x128xf32>
    %cst_74 = arith.constant 1.000000e+00 : f32
    %181 = vector.broadcast %cst_74 : f32 to vector<16x128xf32>
    %182 = arith.divf %181, %180 : vector<16x128xf32>
    %cst_75 = arith.constant 1.06140542 : f32
    %183 = vector.broadcast %cst_75 : f32 to vector<16x128xf32>
    %184 = arith.mulf %183, %182 : vector<16x128xf32>
    %cst_76 = arith.constant -1.45315206 : f32
    %185 = vector.broadcast %cst_76 : f32 to vector<16x128xf32>
    %186 = arith.addf %184, %185 : vector<16x128xf32>
    %187 = arith.mulf %186, %182 : vector<16x128xf32>
    %cst_77 = arith.constant 1.42141378 : f32
    %188 = vector.broadcast %cst_77 : f32 to vector<16x128xf32>
    %189 = arith.addf %187, %188 : vector<16x128xf32>
    %190 = arith.mulf %189, %182 : vector<16x128xf32>
    %cst_78 = arith.constant -0.284496725 : f32
    %191 = vector.broadcast %cst_78 : f32 to vector<16x128xf32>
    %192 = arith.addf %190, %191 : vector<16x128xf32>
    %193 = arith.mulf %192, %182 : vector<16x128xf32>
    %cst_79 = arith.constant 0.254829586 : f32
    %194 = vector.broadcast %cst_79 : f32 to vector<16x128xf32>
    %195 = arith.addf %193, %194 : vector<16x128xf32>
    %196 = arith.mulf %195, %182 : vector<16x128xf32>
    %cst_80 = arith.constant 0.000000e+00 : f32
    %197 = vector.broadcast %cst_80 : f32 to vector<16x128xf32>
    %198 = arith.subf %197, %176 : vector<16x128xf32>
    %199 = arith.mulf %198, %176 : vector<16x128xf32>
    %200 = math.exp %199 : vector<16x128xf32>
    %201 = arith.mulf %196, %200 : vector<16x128xf32>
    %cst_81 = arith.constant 1.000000e+00 : f32
    %202 = vector.broadcast %cst_81 : f32 to vector<16x128xf32>
    %203 = arith.subf %202, %201 : vector<16x128xf32>
    %cst_82 = arith.constant 0.000000e+00 : f32
    %204 = vector.broadcast %cst_82 : f32 to vector<16x128xf32>
    %205 = arith.cmpf oge, %175, %204 : vector<16x128xf32>
    %cst_83 = arith.constant 0.000000e+00 : f32
    %206 = vector.broadcast %cst_83 : f32 to vector<16x128xf32>
    %207 = arith.subf %206, %203 : vector<16x128xf32>
    %208 = arith.select %205, %203, %207 : vector<16x128xi1>, vector<16x128xf32>
    %cst_84 = arith.constant 1.000000e+00 : f32
    %209 = vector.broadcast %cst_84 : f32 to vector<16x128xf32>
    %210 = arith.addf %209, %208 : vector<16x128xf32>
    %211 = arith.mulf %173, %210 : vector<16x128xf32>
    %212 = arith.truncf %211 : vector<16x128xf32> to vector<16x128xbf16>
    %c0_85 = arith.constant 0 : index
    %c0_86 = arith.constant 0 : index
    %c0_87 = arith.constant 0 : index
    %213 = vector.load %arg15[%c0_85, %c0_86, %c0_87] : memref<2x128x32xbf16, #tpu.memory_space<vmem>>, vector<1x128x32xbf16>
    %214 = vector.shape_cast %213 : vector<1x128x32xbf16> to vector<128x32xbf16>
    %cst_88 = arith.constant dense<0.000000e+00> : vector<16x32xf32>
    %215 = tpu.matmul %212, %214, %cst_88 {dimension_numbers = #tpu.dot_dimension_numbers<[1], [0], [0], [1], [0, 0, 1, 1], [], []>} : vector<16x128xbf16>, vector<128x32xbf16>, vector<16x32xf32> -> vector<16x32xf32>
    %c0_89 = arith.constant 0 : index
    %c0_90 = arith.constant 0 : index
    %c0_91 = arith.constant 0 : index
    %216 = vector.load %arg16[%c0_89, %c0_90, %c0_91] : memref<2x1x32xf32, #tpu.memory_space<vmem>>, vector<1x1x32xf32>
    %217 = vector.shape_cast %216 : vector<1x1x32xf32> to vector<1x32xf32>
    %218 = vector.broadcast %217 : vector<1x32xf32> to vector<16x32xf32>
    %219 = arith.addf %215, %218 : vector<16x32xf32>
    %220 = arith.addf %137, %219 : vector<16x32xf32>
    %c1 = arith.constant 1 : index
    %c0_92 = arith.constant 0 : index
    %c0_93 = arith.constant 0 : index
    %221 = vector.load %arg5[%c1, %c0_92, %c0_93] : memref<2x1x32xf32, #tpu.memory_space<vmem>>, vector<1x1x32xf32>
    %222 = vector.shape_cast %221 : vector<1x1x32xf32> to vector<1x32xf32>
    %c1_94 = arith.constant 1 : index
    %c0_95 = arith.constant 0 : index
    %c0_96 = arith.constant 0 : index
    %223 = vector.load %arg6[%c1_94, %c0_95, %c0_96] : memref<2x1x32xf32, #tpu.memory_space<vmem>>, vector<1x1x32xf32>
    %224 = vector.shape_cast %223 : vector<1x1x32xf32> to vector<1x32xf32>
    %cst_97 = arith.constant dense<0.000000e+00> : vector<16xf32>
    %225 = vector.multi_reduction <add>, %220, %cst_97 [1] : vector<16x32xf32> to vector<16xf32>
    %226 = vector.shape_cast %225 : vector<16xf32> to vector<16x1xf32>
    %cst_98 = arith.constant 3.200000e+01 : f32
    %227 = vector.broadcast %cst_98 : f32 to vector<16x1xf32>
    %228 = arith.divf %226, %227 : vector<16x1xf32>
    %229 = vector.broadcast %228 : vector<16x1xf32> to vector<16x32xf32>
    %230 = arith.subf %220, %229 : vector<16x32xf32>
    %231 = arith.mulf %230, %230 : vector<16x32xf32>
    %cst_99 = arith.constant dense<0.000000e+00> : vector<16xf32>
    %232 = vector.multi_reduction <add>, %231, %cst_99 [1] : vector<16x32xf32> to vector<16xf32>
    %233 = vector.shape_cast %232 : vector<16xf32> to vector<16x1xf32>
    %cst_100 = arith.constant 3.200000e+01 : f32
    %234 = vector.broadcast %cst_100 : f32 to vector<16x1xf32>
    %235 = arith.divf %233, %234 : vector<16x1xf32>
    %236 = vector.broadcast %228 : vector<16x1xf32> to vector<16x32xf32>
    %237 = arith.subf %220, %236 : vector<16x32xf32>
    %cst_101 = arith.constant 9.99999974E-6 : f32
    %238 = vector.broadcast %cst_101 : f32 to vector<16x1xf32>
    %239 = arith.addf %235, %238 : vector<16x1xf32>
    %240 = math.rsqrt %239 : vector<16x1xf32>
    %241 = vector.broadcast %240 : vector<16x1xf32> to vector<16x32xf32>
    %242 = arith.mulf %237, %241 : vector<16x32xf32>
    %243 = vector.broadcast %222 : vector<1x32xf32> to vector<16x32xf32>
    %244 = arith.mulf %242, %243 : vector<16x32xf32>
    %245 = vector.broadcast %224 : vector<1x32xf32> to vector<16x32xf32>
    %246 = arith.addf %244, %245 : vector<16x32xf32>
    %247 = arith.truncf %246 : vector<16x32xf32> to vector<16x32xbf16>
    %c1_102 = arith.constant 1 : index
    %c0_103 = arith.constant 0 : index
    %c0_104 = arith.constant 0 : index
    %248 = vector.load %arg7[%c1_102, %c0_103, %c0_104] : memref<2x32x96xbf16, #tpu.memory_space<vmem>>, vector<1x32x96xbf16>
    %249 = vector.shape_cast %248 : vector<1x32x96xbf16> to vector<32x96xbf16>
    %cst_105 = arith.constant dense<0.000000e+00> : vector<16x96xf32>
    %250 = tpu.matmul %247, %249, %cst_105 {dimension_numbers = #tpu.dot_dimension_numbers<[1], [0], [0], [1], [0, 0, 1, 1], [], []>} : vector<16x32xbf16>, vector<32x96xbf16>, vector<16x96xf32> -> vector<16x96xf32>
    %c1_106 = arith.constant 1 : index
    %c0_107 = arith.constant 0 : index
    %c0_108 = arith.constant 0 : index
    %251 = vector.load %arg8[%c1_106, %c0_107, %c0_108] : memref<2x1x96xf32, #tpu.memory_space<vmem>>, vector<1x1x96xf32>
    %252 = vector.shape_cast %251 : vector<1x1x96xf32> to vector<1x96xf32>
    %253 = vector.broadcast %252 : vector<1x96xf32> to vector<16x96xf32>
    %254 = arith.addf %250, %253 : vector<16x96xf32>
    %255 = arith.truncf %254 : vector<16x96xf32> to vector<16x96xbf16>
    %256 = vector.extract_strided_slice %255 {offsets = [0, 0], sizes = [16, 8], strides = [1, 1]} : vector<16x96xbf16> to vector<16x8xbf16>
    %257 = vector.shape_cast %256 : vector<16x8xbf16> to vector<1x16x8xbf16>
    %258 = vector.extract_strided_slice %255 {offsets = [0, 32], sizes = [16, 8], strides = [1, 1]} : vector<16x96xbf16> to vector<16x8xbf16>
    %259 = vector.shape_cast %258 : vector<16x8xbf16> to vector<1x16x8xbf16>
    %260 = vector.extract_strided_slice %255 {offsets = [0, 64], sizes = [16, 8], strides = [1, 1]} : vector<16x96xbf16> to vector<16x8xbf16>
    %261 = vector.shape_cast %260 : vector<16x8xbf16> to vector<1x16x8xbf16>
    "tpu.trace_start"() <{level = 10 : i32, message = "bqd,bkd->bqk"}> : () -> ()
    %cst_109 = arith.constant dense<0.000000e+00> : vector<1x16x16xf32>
    %262 = tpu.matmul %257, %259, %cst_109 {dimension_numbers = #tpu.dot_dimension_numbers<[2], [2], [1], [1], [0, 0, 0, 1, 1, 1], [0], [0]>} : vector<1x16x8xbf16>, vector<1x16x8xbf16>, vector<1x16x16xf32> -> vector<1x16x16xf32>
    "tpu.trace_stop"() : () -> ()
    %cst_110 = arith.constant 0.353553385 : f32
    %263 = vector.broadcast %cst_110 : f32 to vector<1x16x16xf32>
    %264 = arith.mulf %262, %263 : vector<1x16x16xf32>
    %cst_111 = arith.constant dense<0xFF800000> : vector<1x16xf32>
    %265 = vector.multi_reduction <maximumf>, %264, %cst_111 [2] : vector<1x16x16xf32> to vector<1x16xf32>
    %266 = vector.shape_cast %265 : vector<1x16xf32> to vector<1x16x1xf32>
    %267 = vector.broadcast %266 : vector<1x16x1xf32> to vector<1x16x16xf32>
    %268 = arith.subf %264, %267 : vector<1x16x16xf32>
    %269 = math.exp %268 : vector<1x16x16xf32>
    %cst_112 = arith.constant dense<0.000000e+00> : vector<1x16xf32>
    %270 = vector.multi_reduction <add>, %269, %cst_112 [2] : vector<1x16x16xf32> to vector<1x16xf32>
    %271 = vector.shape_cast %270 : vector<1x16xf32> to vector<1x16x1xf32>
    %272 = vector.broadcast %271 : vector<1x16x1xf32> to vector<1x16x16xf32>
    %273 = arith.divf %269, %272 : vector<1x16x16xf32>
    %274 = arith.truncf %273 : vector<1x16x16xf32> to vector<1x16x16xbf16>
    "tpu.trace_start"() <{level = 10 : i32, message = "bqk,bkd->bqd"}> : () -> ()
    %cst_113 = arith.constant dense<0.000000e+00> : vector<1x16x8xf32>
    %275 = tpu.matmul %274, %261, %cst_113 {dimension_numbers = #tpu.dot_dimension_numbers<[2], [1], [1], [2], [0, 0, 0, 1, 1, 2], [0], [0]>} : vector<1x16x16xbf16>, vector<1x16x8xbf16>, vector<1x16x8xf32> -> vector<1x16x8xf32>
    "tpu.trace_stop"() : () -> ()
    %276 = vector.shape_cast %275 : vector<1x16x8xf32> to vector<16x8xf32>
    %277 = vector.extract_strided_slice %255 {offsets = [0, 8], sizes = [16, 8], strides = [1, 1]} : vector<16x96xbf16> to vector<16x8xbf16>
    %278 = vector.shape_cast %277 : vector<16x8xbf16> to vector<1x16x8xbf16>
    %279 = vector.extract_strided_slice %255 {offsets = [0, 40], sizes = [16, 8], strides = [1, 1]} : vector<16x96xbf16> to vector<16x8xbf16>
    %280 = vector.shape_cast %279 : vector<16x8xbf16> to vector<1x16x8xbf16>
    %281 = vector.extract_strided_slice %255 {offsets = [0, 72], sizes = [16, 8], strides = [1, 1]} : vector<16x96xbf16> to vector<16x8xbf16>
    %282 = vector.shape_cast %281 : vector<16x8xbf16> to vector<1x16x8xbf16>
    "tpu.trace_start"() <{level = 10 : i32, message = "bqd,bkd->bqk"}> : () -> ()
    %cst_114 = arith.constant dense<0.000000e+00> : vector<1x16x16xf32>
    %283 = tpu.matmul %278, %280, %cst_114 {dimension_numbers = #tpu.dot_dimension_numbers<[2], [2], [1], [1], [0, 0, 0, 1, 1, 1], [0], [0]>} : vector<1x16x8xbf16>, vector<1x16x8xbf16>, vector<1x16x16xf32> -> vector<1x16x16xf32>
    "tpu.trace_stop"() : () -> ()
    %cst_115 = arith.constant 0.353553385 : f32
    %284 = vector.broadcast %cst_115 : f32 to vector<1x16x16xf32>
    %285 = arith.mulf %283, %284 : vector<1x16x16xf32>
    %cst_116 = arith.constant dense<0xFF800000> : vector<1x16xf32>
    %286 = vector.multi_reduction <maximumf>, %285, %cst_116 [2] : vector<1x16x16xf32> to vector<1x16xf32>
    %287 = vector.shape_cast %286 : vector<1x16xf32> to vector<1x16x1xf32>
    %288 = vector.broadcast %287 : vector<1x16x1xf32> to vector<1x16x16xf32>
    %289 = arith.subf %285, %288 : vector<1x16x16xf32>
    %290 = math.exp %289 : vector<1x16x16xf32>
    %cst_117 = arith.constant dense<0.000000e+00> : vector<1x16xf32>
    %291 = vector.multi_reduction <add>, %290, %cst_117 [2] : vector<1x16x16xf32> to vector<1x16xf32>
    %292 = vector.shape_cast %291 : vector<1x16xf32> to vector<1x16x1xf32>
    %293 = vector.broadcast %292 : vector<1x16x1xf32> to vector<1x16x16xf32>
    %294 = arith.divf %290, %293 : vector<1x16x16xf32>
    %295 = arith.truncf %294 : vector<1x16x16xf32> to vector<1x16x16xbf16>
    "tpu.trace_start"() <{level = 10 : i32, message = "bqk,bkd->bqd"}> : () -> ()
    %cst_118 = arith.constant dense<0.000000e+00> : vector<1x16x8xf32>
    %296 = tpu.matmul %295, %282, %cst_118 {dimension_numbers = #tpu.dot_dimension_numbers<[2], [1], [1], [2], [0, 0, 0, 1, 1, 2], [0], [0]>} : vector<1x16x16xbf16>, vector<1x16x8xbf16>, vector<1x16x8xf32> -> vector<1x16x8xf32>
    "tpu.trace_stop"() : () -> ()
    %297 = vector.shape_cast %296 : vector<1x16x8xf32> to vector<16x8xf32>
    %298 = vector.extract_strided_slice %255 {offsets = [0, 16], sizes = [16, 8], strides = [1, 1]} : vector<16x96xbf16> to vector<16x8xbf16>
    %299 = vector.shape_cast %298 : vector<16x8xbf16> to vector<1x16x8xbf16>
    %300 = vector.extract_strided_slice %255 {offsets = [0, 48], sizes = [16, 8], strides = [1, 1]} : vector<16x96xbf16> to vector<16x8xbf16>
    %301 = vector.shape_cast %300 : vector<16x8xbf16> to vector<1x16x8xbf16>
    %302 = vector.extract_strided_slice %255 {offsets = [0, 80], sizes = [16, 8], strides = [1, 1]} : vector<16x96xbf16> to vector<16x8xbf16>
    %303 = vector.shape_cast %302 : vector<16x8xbf16> to vector<1x16x8xbf16>
    "tpu.trace_start"() <{level = 10 : i32, message = "bqd,bkd->bqk"}> : () -> ()
    %cst_119 = arith.constant dense<0.000000e+00> : vector<1x16x16xf32>
    %304 = tpu.matmul %299, %301, %cst_119 {dimension_numbers = #tpu.dot_dimension_numbers<[2], [2], [1], [1], [0, 0, 0, 1, 1, 1], [0], [0]>} : vector<1x16x8xbf16>, vector<1x16x8xbf16>, vector<1x16x16xf32> -> vector<1x16x16xf32>
    "tpu.trace_stop"() : () -> ()
    %cst_120 = arith.constant 0.353553385 : f32
    %305 = vector.broadcast %cst_120 : f32 to vector<1x16x16xf32>
    %306 = arith.mulf %304, %305 : vector<1x16x16xf32>
    %cst_121 = arith.constant dense<0xFF800000> : vector<1x16xf32>
    %307 = vector.multi_reduction <maximumf>, %306, %cst_121 [2] : vector<1x16x16xf32> to vector<1x16xf32>
    %308 = vector.shape_cast %307 : vector<1x16xf32> to vector<1x16x1xf32>
    %309 = vector.broadcast %308 : vector<1x16x1xf32> to vector<1x16x16xf32>
    %310 = arith.subf %306, %309 : vector<1x16x16xf32>
    %311 = math.exp %310 : vector<1x16x16xf32>
    %cst_122 = arith.constant dense<0.000000e+00> : vector<1x16xf32>
    %312 = vector.multi_reduction <add>, %311, %cst_122 [2] : vector<1x16x16xf32> to vector<1x16xf32>
    %313 = vector.shape_cast %312 : vector<1x16xf32> to vector<1x16x1xf32>
    %314 = vector.broadcast %313 : vector<1x16x1xf32> to vector<1x16x16xf32>
    %315 = arith.divf %311, %314 : vector<1x16x16xf32>
    %316 = arith.truncf %315 : vector<1x16x16xf32> to vector<1x16x16xbf16>
    "tpu.trace_start"() <{level = 10 : i32, message = "bqk,bkd->bqd"}> : () -> ()
    %cst_123 = arith.constant dense<0.000000e+00> : vector<1x16x8xf32>
    %317 = tpu.matmul %316, %303, %cst_123 {dimension_numbers = #tpu.dot_dimension_numbers<[2], [1], [1], [2], [0, 0, 0, 1, 1, 2], [0], [0]>} : vector<1x16x16xbf16>, vector<1x16x8xbf16>, vector<1x16x8xf32> -> vector<1x16x8xf32>
    "tpu.trace_stop"() : () -> ()
    %318 = vector.shape_cast %317 : vector<1x16x8xf32> to vector<16x8xf32>
    %319 = vector.extract_strided_slice %255 {offsets = [0, 24], sizes = [16, 8], strides = [1, 1]} : vector<16x96xbf16> to vector<16x8xbf16>
    %320 = vector.shape_cast %319 : vector<16x8xbf16> to vector<1x16x8xbf16>
    %321 = vector.extract_strided_slice %255 {offsets = [0, 56], sizes = [16, 8], strides = [1, 1]} : vector<16x96xbf16> to vector<16x8xbf16>
    %322 = vector.shape_cast %321 : vector<16x8xbf16> to vector<1x16x8xbf16>
    %323 = vector.extract_strided_slice %255 {offsets = [0, 88], sizes = [16, 8], strides = [1, 1]} : vector<16x96xbf16> to vector<16x8xbf16>
    %324 = vector.shape_cast %323 : vector<16x8xbf16> to vector<1x16x8xbf16>
    "tpu.trace_start"() <{level = 10 : i32, message = "bqd,bkd->bqk"}> : () -> ()
    %cst_124 = arith.constant dense<0.000000e+00> : vector<1x16x16xf32>
    %325 = tpu.matmul %320, %322, %cst_124 {dimension_numbers = #tpu.dot_dimension_numbers<[2], [2], [1], [1], [0, 0, 0, 1, 1, 1], [0], [0]>} : vector<1x16x8xbf16>, vector<1x16x8xbf16>, vector<1x16x16xf32> -> vector<1x16x16xf32>
    "tpu.trace_stop"() : () -> ()
    %cst_125 = arith.constant 0.353553385 : f32
    %326 = vector.broadcast %cst_125 : f32 to vector<1x16x16xf32>
    %327 = arith.mulf %325, %326 : vector<1x16x16xf32>
    %cst_126 = arith.constant dense<0xFF800000> : vector<1x16xf32>
    %328 = vector.multi_reduction <maximumf>, %327, %cst_126 [2] : vector<1x16x16xf32> to vector<1x16xf32>
    %329 = vector.shape_cast %328 : vector<1x16xf32> to vector<1x16x1xf32>
    %330 = vector.broadcast %329 : vector<1x16x1xf32> to vector<1x16x16xf32>
    %331 = arith.subf %327, %330 : vector<1x16x16xf32>
    %332 = math.exp %331 : vector<1x16x16xf32>
    %cst_127 = arith.constant dense<0.000000e+00> : vector<1x16xf32>
    %333 = vector.multi_reduction <add>, %332, %cst_127 [2] : vector<1x16x16xf32> to vector<1x16xf32>
    %334 = vector.shape_cast %333 : vector<1x16xf32> to vector<1x16x1xf32>
    %335 = vector.broadcast %334 : vector<1x16x1xf32> to vector<1x16x16xf32>
    %336 = arith.divf %332, %335 : vector<1x16x16xf32>
    %337 = arith.truncf %336 : vector<1x16x16xf32> to vector<1x16x16xbf16>
    "tpu.trace_start"() <{level = 10 : i32, message = "bqk,bkd->bqd"}> : () -> ()
    %cst_128 = arith.constant dense<0.000000e+00> : vector<1x16x8xf32>
    %338 = tpu.matmul %337, %324, %cst_128 {dimension_numbers = #tpu.dot_dimension_numbers<[2], [1], [1], [2], [0, 0, 0, 1, 1, 2], [0], [0]>} : vector<1x16x16xbf16>, vector<1x16x8xbf16>, vector<1x16x8xf32> -> vector<1x16x8xf32>
    "tpu.trace_stop"() : () -> ()
    %339 = vector.shape_cast %338 : vector<1x16x8xf32> to vector<16x8xf32>
    %340 = tpu.concatenate %276, %297, %318, %339 in 1 : vector<16x8xf32>, vector<16x8xf32>, vector<16x8xf32>, vector<16x8xf32> -> vector<16x32xf32>
    %341 = arith.truncf %340 : vector<16x32xf32> to vector<16x32xbf16>
    %c1_129 = arith.constant 1 : index
    %c0_130 = arith.constant 0 : index
    %c0_131 = arith.constant 0 : index
    %342 = vector.load %arg9[%c1_129, %c0_130, %c0_131] : memref<2x32x32xbf16, #tpu.memory_space<vmem>>, vector<1x32x32xbf16>
    %343 = vector.shape_cast %342 : vector<1x32x32xbf16> to vector<32x32xbf16>
    %cst_132 = arith.constant dense<0.000000e+00> : vector<16x32xf32>
    %344 = tpu.matmul %341, %343, %cst_132 {dimension_numbers = #tpu.dot_dimension_numbers<[1], [0], [0], [1], [0, 0, 1, 1], [], []>} : vector<16x32xbf16>, vector<32x32xbf16>, vector<16x32xf32> -> vector<16x32xf32>
    %c1_133 = arith.constant 1 : index
    %c0_134 = arith.constant 0 : index
    %c0_135 = arith.constant 0 : index
    %345 = vector.load %arg10[%c1_133, %c0_134, %c0_135] : memref<2x1x32xf32, #tpu.memory_space<vmem>>, vector<1x1x32xf32>
    %346 = vector.shape_cast %345 : vector<1x1x32xf32> to vector<1x32xf32>
    %347 = vector.broadcast %346 : vector<1x32xf32> to vector<16x32xf32>
    %348 = arith.addf %344, %347 : vector<16x32xf32>
    %349 = arith.addf %220, %348 : vector<16x32xf32>
    %c1_136 = arith.constant 1 : index
    %c0_137 = arith.constant 0 : index
    %c0_138 = arith.constant 0 : index
    %350 = vector.load %arg11[%c1_136, %c0_137, %c0_138] : memref<2x1x32xf32, #tpu.memory_space<vmem>>, vector<1x1x32xf32>
    %351 = vector.shape_cast %350 : vector<1x1x32xf32> to vector<1x32xf32>
    %c1_139 = arith.constant 1 : index
    %c0_140 = arith.constant 0 : index
    %c0_141 = arith.constant 0 : index
    %352 = vector.load %arg12[%c1_139, %c0_140, %c0_141] : memref<2x1x32xf32, #tpu.memory_space<vmem>>, vector<1x1x32xf32>
    %353 = vector.shape_cast %352 : vector<1x1x32xf32> to vector<1x32xf32>
    %cst_142 = arith.constant dense<0.000000e+00> : vector<16xf32>
    %354 = vector.multi_reduction <add>, %349, %cst_142 [1] : vector<16x32xf32> to vector<16xf32>
    %355 = vector.shape_cast %354 : vector<16xf32> to vector<16x1xf32>
    %cst_143 = arith.constant 3.200000e+01 : f32
    %356 = vector.broadcast %cst_143 : f32 to vector<16x1xf32>
    %357 = arith.divf %355, %356 : vector<16x1xf32>
    %358 = vector.broadcast %357 : vector<16x1xf32> to vector<16x32xf32>
    %359 = arith.subf %349, %358 : vector<16x32xf32>
    %360 = arith.mulf %359, %359 : vector<16x32xf32>
    %cst_144 = arith.constant dense<0.000000e+00> : vector<16xf32>
    %361 = vector.multi_reduction <add>, %360, %cst_144 [1] : vector<16x32xf32> to vector<16xf32>
    %362 = vector.shape_cast %361 : vector<16xf32> to vector<16x1xf32>
    %cst_145 = arith.constant 3.200000e+01 : f32
    %363 = vector.broadcast %cst_145 : f32 to vector<16x1xf32>
    %364 = arith.divf %362, %363 : vector<16x1xf32>
    %365 = vector.broadcast %357 : vector<16x1xf32> to vector<16x32xf32>
    %366 = arith.subf %349, %365 : vector<16x32xf32>
    %cst_146 = arith.constant 9.99999974E-6 : f32
    %367 = vector.broadcast %cst_146 : f32 to vector<16x1xf32>
    %368 = arith.addf %364, %367 : vector<16x1xf32>
    %369 = math.rsqrt %368 : vector<16x1xf32>
    %370 = vector.broadcast %369 : vector<16x1xf32> to vector<16x32xf32>
    %371 = arith.mulf %366, %370 : vector<16x32xf32>
    %372 = vector.broadcast %351 : vector<1x32xf32> to vector<16x32xf32>
    %373 = arith.mulf %371, %372 : vector<16x32xf32>
    %374 = vector.broadcast %353 : vector<1x32xf32> to vector<16x32xf32>
    %375 = arith.addf %373, %374 : vector<16x32xf32>
    %376 = arith.truncf %375 : vector<16x32xf32> to vector<16x32xbf16>
    %c1_147 = arith.constant 1 : index
    %c0_148 = arith.constant 0 : index
    %c0_149 = arith.constant 0 : index
    %377 = vector.load %arg13[%c1_147, %c0_148, %c0_149] : memref<2x32x128xbf16, #tpu.memory_space<vmem>>, vector<1x32x128xbf16>
    %378 = vector.shape_cast %377 : vector<1x32x128xbf16> to vector<32x128xbf16>
    %cst_150 = arith.constant dense<0.000000e+00> : vector<16x128xf32>
    %379 = tpu.matmul %376, %378, %cst_150 {dimension_numbers = #tpu.dot_dimension_numbers<[1], [0], [0], [1], [0, 0, 1, 1], [], []>} : vector<16x32xbf16>, vector<32x128xbf16>, vector<16x128xf32> -> vector<16x128xf32>
    %c1_151 = arith.constant 1 : index
    %c0_152 = arith.constant 0 : index
    %c0_153 = arith.constant 0 : index
    %380 = vector.load %arg14[%c1_151, %c0_152, %c0_153] : memref<2x1x128xf32, #tpu.memory_space<vmem>>, vector<1x1x128xf32>
    %381 = vector.shape_cast %380 : vector<1x1x128xf32> to vector<1x128xf32>
    %382 = vector.broadcast %381 : vector<1x128xf32> to vector<16x128xf32>
    %383 = arith.addf %379, %382 : vector<16x128xf32>
    %cst_154 = arith.constant 5.000000e-01 : f32
    %384 = vector.broadcast %cst_154 : f32 to vector<16x128xf32>
    %385 = arith.mulf %384, %383 : vector<16x128xf32>
    %cst_155 = arith.constant 0.707106769 : f32
    %386 = vector.broadcast %cst_155 : f32 to vector<16x128xf32>
    %387 = arith.mulf %383, %386 : vector<16x128xf32>
    %388 = math.absf %387 : vector<16x128xf32>
    %cst_156 = arith.constant 0.327591091 : f32
    %389 = vector.broadcast %cst_156 : f32 to vector<16x128xf32>
    %390 = arith.mulf %389, %388 : vector<16x128xf32>
    %cst_157 = arith.constant 1.000000e+00 : f32
    %391 = vector.broadcast %cst_157 : f32 to vector<16x128xf32>
    %392 = arith.addf %391, %390 : vector<16x128xf32>
    %cst_158 = arith.constant 1.000000e+00 : f32
    %393 = vector.broadcast %cst_158 : f32 to vector<16x128xf32>
    %394 = arith.divf %393, %392 : vector<16x128xf32>
    %cst_159 = arith.constant 1.06140542 : f32
    %395 = vector.broadcast %cst_159 : f32 to vector<16x128xf32>
    %396 = arith.mulf %395, %394 : vector<16x128xf32>
    %cst_160 = arith.constant -1.45315206 : f32
    %397 = vector.broadcast %cst_160 : f32 to vector<16x128xf32>
    %398 = arith.addf %396, %397 : vector<16x128xf32>
    %399 = arith.mulf %398, %394 : vector<16x128xf32>
    %cst_161 = arith.constant 1.42141378 : f32
    %400 = vector.broadcast %cst_161 : f32 to vector<16x128xf32>
    %401 = arith.addf %399, %400 : vector<16x128xf32>
    %402 = arith.mulf %401, %394 : vector<16x128xf32>
    %cst_162 = arith.constant -0.284496725 : f32
    %403 = vector.broadcast %cst_162 : f32 to vector<16x128xf32>
    %404 = arith.addf %402, %403 : vector<16x128xf32>
    %405 = arith.mulf %404, %394 : vector<16x128xf32>
    %cst_163 = arith.constant 0.254829586 : f32
    %406 = vector.broadcast %cst_163 : f32 to vector<16x128xf32>
    %407 = arith.addf %405, %406 : vector<16x128xf32>
    %408 = arith.mulf %407, %394 : vector<16x128xf32>
    %cst_164 = arith.constant 0.000000e+00 : f32
    %409 = vector.broadcast %cst_164 : f32 to vector<16x128xf32>
    %410 = arith.subf %409, %388 : vector<16x128xf32>
    %411 = arith.mulf %410, %388 : vector<16x128xf32>
    %412 = math.exp %411 : vector<16x128xf32>
    %413 = arith.mulf %408, %412 : vector<16x128xf32>
    %cst_165 = arith.constant 1.000000e+00 : f32
    %414 = vector.broadcast %cst_165 : f32 to vector<16x128xf32>
    %415 = arith.subf %414, %413 : vector<16x128xf32>
    %cst_166 = arith.constant 0.000000e+00 : f32
    %416 = vector.broadcast %cst_166 : f32 to vector<16x128xf32>
    %417 = arith.cmpf oge, %387, %416 : vector<16x128xf32>
    %cst_167 = arith.constant 0.000000e+00 : f32
    %418 = vector.broadcast %cst_167 : f32 to vector<16x128xf32>
    %419 = arith.subf %418, %415 : vector<16x128xf32>
    %420 = arith.select %417, %415, %419 : vector<16x128xi1>, vector<16x128xf32>
    %cst_168 = arith.constant 1.000000e+00 : f32
    %421 = vector.broadcast %cst_168 : f32 to vector<16x128xf32>
    %422 = arith.addf %421, %420 : vector<16x128xf32>
    %423 = arith.mulf %385, %422 : vector<16x128xf32>
    %424 = arith.truncf %423 : vector<16x128xf32> to vector<16x128xbf16>
    %c1_169 = arith.constant 1 : index
    %c0_170 = arith.constant 0 : index
    %c0_171 = arith.constant 0 : index
    %425 = vector.load %arg15[%c1_169, %c0_170, %c0_171] : memref<2x128x32xbf16, #tpu.memory_space<vmem>>, vector<1x128x32xbf16>
    %426 = vector.shape_cast %425 : vector<1x128x32xbf16> to vector<128x32xbf16>
    %cst_172 = arith.constant dense<0.000000e+00> : vector<16x32xf32>
    %427 = tpu.matmul %424, %426, %cst_172 {dimension_numbers = #tpu.dot_dimension_numbers<[1], [0], [0], [1], [0, 0, 1, 1], [], []>} : vector<16x128xbf16>, vector<128x32xbf16>, vector<16x32xf32> -> vector<16x32xf32>
    %c1_173 = arith.constant 1 : index
    %c0_174 = arith.constant 0 : index
    %c0_175 = arith.constant 0 : index
    %428 = vector.load %arg16[%c1_173, %c0_174, %c0_175] : memref<2x1x32xf32, #tpu.memory_space<vmem>>, vector<1x1x32xf32>
    %429 = vector.shape_cast %428 : vector<1x1x32xf32> to vector<1x32xf32>
    %430 = vector.broadcast %429 : vector<1x32xf32> to vector<16x32xf32>
    %431 = arith.addf %427, %430 : vector<16x32xf32>
    %432 = arith.addf %349, %431 : vector<16x32xf32>
    %c0_176 = arith.constant 0 : index
    %c0_177 = arith.constant 0 : index
    %433 = vector.load %arg17[%c0_176, %c0_177] : memref<1x32xf32, #tpu.memory_space<vmem>>, vector<1x32xf32>
    %c0_178 = arith.constant 0 : index
    %c0_179 = arith.constant 0 : index
    %434 = vector.load %arg18[%c0_178, %c0_179] : memref<1x32xf32, #tpu.memory_space<vmem>>, vector<1x32xf32>
    %cst_180 = arith.constant dense<0.000000e+00> : vector<16xf32>
    %435 = vector.multi_reduction <add>, %432, %cst_180 [1] : vector<16x32xf32> to vector<16xf32>
    %436 = vector.shape_cast %435 : vector<16xf32> to vector<16x1xf32>
    %cst_181 = arith.constant 3.200000e+01 : f32
    %437 = vector.broadcast %cst_181 : f32 to vector<16x1xf32>
    %438 = arith.divf %436, %437 : vector<16x1xf32>
    %439 = vector.broadcast %438 : vector<16x1xf32> to vector<16x32xf32>
    %440 = arith.subf %432, %439 : vector<16x32xf32>
    %441 = arith.mulf %440, %440 : vector<16x32xf32>
    %cst_182 = arith.constant dense<0.000000e+00> : vector<16xf32>
    %442 = vector.multi_reduction <add>, %441, %cst_182 [1] : vector<16x32xf32> to vector<16xf32>
    %443 = vector.shape_cast %442 : vector<16xf32> to vector<16x1xf32>
    %cst_183 = arith.constant 3.200000e+01 : f32
    %444 = vector.broadcast %cst_183 : f32 to vector<16x1xf32>
    %445 = arith.divf %443, %444 : vector<16x1xf32>
    %446 = vector.broadcast %438 : vector<16x1xf32> to vector<16x32xf32>
    %447 = arith.subf %432, %446 : vector<16x32xf32>
    %cst_184 = arith.constant 9.99999997E-7 : f32
    %448 = vector.broadcast %cst_184 : f32 to vector<16x1xf32>
    %449 = arith.addf %445, %448 : vector<16x1xf32>
    %450 = math.rsqrt %449 : vector<16x1xf32>
    %451 = vector.broadcast %450 : vector<16x1xf32> to vector<16x32xf32>
    %452 = arith.mulf %447, %451 : vector<16x32xf32>
    %453 = vector.broadcast %433 : vector<1x32xf32> to vector<16x32xf32>
    %454 = arith.mulf %452, %453 : vector<16x32xf32>
    %455 = vector.broadcast %434 : vector<1x32xf32> to vector<16x32xf32>
    %456 = arith.addf %454, %455 : vector<16x32xf32>
    %c0_185 = arith.constant 0 : index
    %c0_186 = arith.constant 0 : index
    %457 = vector.load %arg19[%c0_185, %c0_186] : memref<16x32xf32, #tpu.memory_space<vmem>>, vector<16x32xf32>
    tpu.vector_store %arg19[%c0_185, %c0_186], %456 {strides = array<i32>} : memref<16x32xf32, #tpu.memory_space<vmem>>, vector<16x32xf32>,
    return
  }
  func.func @transform_0(%arg0: i32) -> (i32, i32) {
    %c0_i32 = arith.constant 0 : i32
    %c0_i32_0 = arith.constant 0 : i32
    return %arg0, %c0_i32 : i32, i32
  }
  func.func @transform_1(%arg0: i32) -> (i32, i32) {
    %c0_i32 = arith.constant 0 : i32
    %c0_i32_0 = arith.constant 0 : i32
    %c0_i32_1 = arith.constant 0 : i32
    return %c0_i32, %c0_i32_0 : i32, i32
  }
  func.func @transform_2(%arg0: i32) -> (i32, i32) {
    %c0_i32 = arith.constant 0 : i32
    %c0_i32_0 = arith.constant 0 : i32
    %c0_i32_1 = arith.constant 0 : i32
    return %c0_i32, %c0_i32_0 : i32, i32
  }
  func.func @transform_3(%arg0: i32) -> (i32, i32) {
    %c0_i32 = arith.constant 0 : i32
    %c0_i32_0 = arith.constant 0 : i32
    %c0_i32_1 = arith.constant 0 : i32
    return %c0_i32, %c0_i32_0 : i32, i32
  }
  func.func @transform_4(%arg0: i32) -> (i32, i32, i32) {
    %c0_i32 = arith.constant 0 : i32
    %c0_i32_0 = arith.constant 0 : i32
    %c0_i32_1 = arith.constant 0 : i32
    %c0_i32_2 = arith.constant 0 : i32
    return %c0_i32, %c0_i32_0, %c0_i32_1 : i32, i32, i32
  }
  func.func @transform_5(%arg0: i32) -> (i32, i32, i32) {
    %c0_i32 = arith.constant 0 : i32
    %c0_i32_0 = arith.constant 0 : i32
    %c0_i32_1 = arith.constant 0 : i32
    %c0_i32_2 = arith.constant 0 : i32
    return %c0_i32, %c0_i32_0, %c0_i32_1 : i32, i32, i32
  }
  func.func @transform_6(%arg0: i32) -> (i32, i32, i32) {
    %c0_i32 = arith.constant 0 : i32
    %c0_i32_0 = arith.constant 0 : i32
    %c0_i32_1 = arith.constant 0 : i32
    %c0_i32_2 = arith.constant 0 : i32
    return %c0_i32, %c0_i32_0, %c0_i32_1 : i32, i32, i32
  }
  func.func @transform_7(%arg0: i32) -> (i32, i32, i32) {
    %c0_i32 = arith.constant 0 : i32
    %c0_i32_0 = arith.constant 0 : i32
    %c0_i32_1 = arith.constant 0 : i32
    %c0_i32_2 = arith.constant 0 : i32
    return %c0_i32, %c0_i32_0, %c0_i32_1 : i32, i32, i32
  }
  func.func @transform_8(%arg0: i32) -> (i32, i32, i32) {
    %c0_i32 = arith.constant 0 : i32
    %c0_i32_0 = arith.constant 0 : i32
    %c0_i32_1 = arith.constant 0 : i32
    %c0_i32_2 = arith.constant 0 : i32
    return %c0_i32, %c0_i32_0, %c0_i32_1 : i32, i32, i32
  }
  func.func @transform_9(%arg0: i32) -> (i32, i32, i32) {
    %c0_i32 = arith.constant 0 : i32
    %c0_i32_0 = arith.constant 0 : i32
    %c0_i32_1 = arith.constant 0 : i32
    %c0_i32_2 = arith.constant 0 : i32
    return %c0_i32, %c0_i32_0, %c0_i32_1 : i32, i32, i32
  }
  func.func @transform_10(%arg0: i32) -> (i32, i32, i32) {
    %c0_i32 = arith.constant 0 : i32
    %c0_i32_0 = arith.constant 0 : i32
    %c0_i32_1 = arith.constant 0 : i32
    %c0_i32_2 = arith.constant 0 : i32
    return %c0_i32, %c0_i32_0, %c0_i32_1 : i32, i32, i32
  }
  func.func @transform_11(%arg0: i32) -> (i32, i32, i32) {
    %c0_i32 = arith.constant 0 : i32
    %c0_i32_0 = arith.constant 0 : i32
    %c0_i32_1 = arith.constant 0 : i32
    %c0_i32_2 = arith.constant 0 : i32
    return %c0_i32, %c0_i32_0, %c0_i32_1 : i32, i32, i32
  }
  func.func @transform_12(%arg0: i32) -> (i32, i32, i32) {
    %c0_i32 = arith.constant 0 : i32
    %c0_i32_0 = arith.constant 0 : i32
    %c0_i32_1 = arith.constant 0 : i32
    %c0_i32_2 = arith.constant 0 : i32
    return %c0_i32, %c0_i32_0, %c0_i32_1 : i32, i32, i32
  }
  func.func @transform_13(%arg0: i32) -> (i32, i32, i32) {
    %c0_i32 = arith.constant 0 : i32
    %c0_i32_0 = arith.constant 0 : i32
    %c0_i32_1 = arith.constant 0 : i32
    %c0_i32_2 = arith.constant 0 : i32
    return %c0_i32, %c0_i32_0, %c0_i32_1 : i32, i32, i32
  }
  func.func @transform_14(%arg0: i32) -> (i32, i32, i32) {
    %c0_i32 = arith.constant 0 : i32
    %c0_i32_0 = arith.constant 0 : i32
    %c0_i32_1 = arith.constant 0 : i32
    %c0_i32_2 = arith.constant 0 : i32
    return %c0_i32, %c0_i32_0, %c0_i32_1 : i32, i32, i32
  }
  func.func @transform_15(%arg0: i32) -> (i32, i32, i32) {
    %c0_i32 = arith.constant 0 : i32
    %c0_i32_0 = arith.constant 0 : i32
    %c0_i32_1 = arith.constant 0 : i32
    %c0_i32_2 = arith.constant 0 : i32
    return %c0_i32, %c0_i32_0, %c0_i32_1 : i32, i32, i32
  }
  func.func @transform_16(%arg0: i32) -> (i32, i32) {
    %c0_i32 = arith.constant 0 : i32
    %c0_i32_0 = arith.constant 0 : i32
    %c0_i32_1 = arith.constant 0 : i32
    return %c0_i32, %c0_i32_0 : i32, i32
  }
  func.func @transform_17(%arg0: i32) -> (i32, i32) {
    %c0_i32 = arith.constant 0 : i32
    %c0_i32_0 = arith.constant 0 : i32
    %c0_i32_1 = arith.constant 0 : i32
    return %c0_i32, %c0_i32_0 : i32, i32
  }
  func.func @transform_18(%arg0: i32) -> (i32, i32) {
    %c0_i32 = arith.constant 0 : i32
    %c0_i32_0 = arith.constant 0 : i32
    return %arg0, %c0_i32 : i32, i32
  }
}

</mosaic_0001>

<llo_original>
// kernel: vit_forward.1
$region0: #{vit_forward.1}
  #allocation0 [shape = 'u32[]', space=smem, size = 0x4, offset = 0x4, fixed_abs, tag = 'smem constant byte address 0x4 - core index']
  #allocation1 [shape = 'u32[144,128]{1,0:T(1,128)}', space=vmem, size = 0x12000, scoped, tag = 'internal scratch']
  %s0 = inlined_call_operand.vmem [shape: f32[32,64], index: 0, kind: input, shape index: {}]
  %s1 = inlined_call_operand.vmem [shape: bf16[64,32], index: 1, kind: input, shape index: {}]
  %s2 = inlined_call_operand.vmem [shape: f32[1,32], index: 2, kind: input, shape index: {}]
  %s3 = inlined_call_operand.vmem [shape: f32[16,32], index: 3, kind: input, shape index: {}]
  %s4 = inlined_call_operand.vmem [shape: f32[2,1,32], index: 4, kind: input, shape index: {}]
  %s5 = inlined_call_operand.vmem [shape: f32[2,1,32], index: 5, kind: input, shape index: {}]
  %s6 = inlined_call_operand.vmem [shape: bf16[2,32,96], index: 6, kind: input, shape index: {}]
  %s7 = inlined_call_operand.vmem [shape: f32[2,1,96], index: 7, kind: input, shape index: {}]
  %s8 = inlined_call_operand.vmem [shape: bf16[2,32,32], index: 8, kind: input, shape index: {}]
  %s9 = inlined_call_operand.vmem [shape: f32[2,1,32], index: 9, kind: input, shape index: {}]
  %s10 = inlined_call_operand.vmem [shape: f32[2,1,32], index: 10, kind: input, shape index: {}]
  %s11 = inlined_call_operand.vmem [shape: f32[2,1,32], index: 11, kind: input, shape index: {}]
  %s12 = inlined_call_operand.vmem [shape: bf16[2,32,128], index: 12, kind: input, shape index: {}]
  %s13 = inlined_call_operand.vmem [shape: f32[2,1,128], index: 13, kind: input, shape index: {}]
  %s14 = inlined_call_operand.vmem [shape: bf16[2,128,32], index: 14, kind: input, shape index: {}]
  %s15 = inlined_call_operand.vmem [shape: f32[2,1,32], index: 15, kind: input, shape index: {}]
  %s16 = inlined_call_operand.vmem [shape: f32[1,32], index: 16, kind: input, shape index: {}]
  %s17 = inlined_call_operand.vmem [shape: f32[1,32], index: 17, kind: input, shape index: {}]
  %s18 = inlined_call_operand.hbm [shape: f32[32,32], index: 18, kind: output, shape index: {}]
  %s19 = sld [smem:[#allocation0]]
  $region105: #{vit_forward.1} parent=0
    _
  %s21 = ssub.s32 1, %s19
  %s22 = scalar_select 0, %s21, %s19
  $region1: #{vit_forward.1} parent=0
    #allocation2 [shape = 'u8[16384]{0}', space=vmem, size = 0x4000, scoped, tag = 'output window, operand 0']
    #allocation3 [shape = 's32[2]{0}', space=sflag, size = 0x8, scoped, tag = 'scoped memory for vit_forward.1']
    %23 = vsyncpa [#allocation3], 0
    %s24 = scalar_lea.sflag [#allocation3], 1
    %25 = vsyncpa %s24, 0
    loop: start=0, step=1, limit=4
    $region2: #{vit_forward.1} parent=1 // loop_pre_header
      _
    $region3: #{vit_forward.1} parent=1 // loop_header
      %s27 = sphi 0, %s31
      %p28 = scmp.ge.s32.totalorder %s27, 4
      %s37 = sphi 0, %s39
      %s40 = sphi 0, %s37
      %s41 = sphi 0, %s40
      %s57 = sphi 0, %s41
      %s61 = sphi 0, %s61
      %s63 = sphi 0, %s61
      %s64 = sphi 0, %s63
      %s78 = sphi 0, %s64
      %s82 = sphi 0, %s82
      %s84 = sphi 0, %s82
      %s85 = sphi 0, %s84
      %s99 = sphi 0, %s85
      %s103 = sphi 0, %s103
      %s105 = sphi 0, %s103
      %s106 = sphi 0, %s105
      %s120 = sphi 0, %s106
      %s124 = sphi 0, %s124
      %s126 = sphi 0, %s124
      %s127 = sphi 0, %s126
      %s141 = sphi 0, %s127
      %s145 = sphi 0, %s145
      %s147 = sphi 0, %s145
      %s148 = sphi 0, %s147
      %s162 = sphi 0, %s148
      %s166 = sphi 0, %s166
      %s168 = sphi 0, %s166
      %s169 = sphi 0, %s168
      %s183 = sphi 0, %s169
      %s187 = sphi 0, %s187
      %s189 = sphi 0, %s187
      %s190 = sphi 0, %s189
      %s204 = sphi 0, %s190
      %s208 = sphi 0, %s208
      %s210 = sphi 0, %s208
      %s211 = sphi 0, %s210
      %s225 = sphi 0, %s211
      %s229 = sphi 0, %s229
      %s231 = sphi 0, %s229
      %s232 = sphi 0, %s231
      %s246 = sphi 0, %s232
      %s250 = sphi 0, %s250
      %s252 = sphi 0, %s250
      %s253 = sphi 0, %s252
      %s267 = sphi 0, %s253
      %s271 = sphi 0, %s271
      %s273 = sphi 0, %s271
      %s274 = sphi 0, %s273
      %s288 = sphi 0, %s274
      %s292 = sphi 0, %s292
      %s294 = sphi 0, %s292
      %s295 = sphi 0, %s294
      %s309 = sphi 0, %s295
      %s313 = sphi 0, %s313
      %s315 = sphi 0, %s313
      %s316 = sphi 0, %s315
      %s330 = sphi 0, %s316
      %s334 = sphi 0, %s334
      %s336 = sphi 0, %s334
      %s337 = sphi 0, %s336
      %s351 = sphi 0, %s337
      %s355 = sphi 0, %s355
      %s357 = sphi 0, %s355
      %s358 = sphi 0, %s357
      %s372 = sphi 0, %s358
      %s376 = sphi 0, %s376
      %s378 = sphi 0, %s376
      %s379 = sphi 0, %s378
      %s393 = sphi 0, %s379
      %s397 = sphi 0, %s397
      %s399 = sphi 0, %s397
      %s400 = sphi 0, %s399
      %s414 = sphi 0, %s400
      %s420 = sphi 0, %s422
      %s423 = sphi 0, %s420
      %s424 = sphi 0, %s423
      %s440 = sphi 0, %s424
    $region4: #{vit_forward.1} parent=1 // loop_header_branch
      %30 = sbr.rel (%p28) target = $region8
    $region5: #{vit_forward.1} parent=1 // loop_body
      %s32 = ssub.s32 %s27, 1
      %s33 = ssub.s32 %s27, 2
      %s34 = sadd.s32 %s27, 1
      %s35 = ssub.s32 %s27, %s34
      %p36 = scmp.eq.s32.totalorder %s35, 0
      %s38 = sadd.s32 %s37, 1
      %s39 = scalar_select %p36, %s37, %s38
      %p42 = pneg %p36
      %p43 = scmp.eq.s32.totalorder %s27, 1
      %p44 = por %p42, %p43
      %p45 = scmp.ne.s32.totalorder %s37, %s40
      %p46 = scmp.eq.s32.totalorder %s27, 0
      %p47 = por %p45, %p46
      %p48 = scmp.ne.s32.totalorder %s37, %s40
      %p49 = scmp.eq.s32.totalorder %s32, 1
      %p50 = por %p48, %p49
      %p51 = scmp.ne.s32.totalorder %s40, %s41
      %p52 = scmp.eq.s32.totalorder %s32, 0
      %p53 = por %p51, %p52
      %p54 = scmp.ne.s32.totalorder %s40, %s41
      %p55 = scmp.eq.s32.totalorder %s33, 1
      %p56 = por %p54, %p55
      %p58 = scmp.ne.s32.totalorder %s41, %s57
      %p59 = scmp.eq.s32.totalorder %s33, 0
      %p60 = por %p58, %p59
      %s62 = sadd.s32 %s61, 1
      %p65 = scmp.eq.s32.totalorder %s27, 1
      %p66 = scmp.ne.s32.totalorder %s61, %s63
      %p67 = scmp.eq.s32.totalorder %s27, 0
      %p68 = por %p66, %p67
      %p69 = scmp.ne.s32.totalorder %s61, %s63
      %p70 = scmp.eq.s32.totalorder %s32, 1
      %p71 = por %p69, %p70
      %p72 = scmp.ne.s32.totalorder %s63, %s64
      %p73 = scmp.eq.s32.totalorder %s32, 0
      %p74 = por %p72, %p73
      %p75 = scmp.ne.s32.totalorder %s63, %s64
      %p76 = scmp.eq.s32.totalorder %s33, 1
      %p77 = por %p75, %p76
      %p79 = scmp.ne.s32.totalorder %s64, %s78
      %p80 = scmp.eq.s32.totalorder %s33, 0
      %p81 = por %p79, %p80
      %s83 = sadd.s32 %s82, 1
      %p86 = scmp.eq.s32.totalorder %s27, 1
      %p87 = scmp.ne.s32.totalorder %s82, %s84
      %p88 = scmp.eq.s32.totalorder %s27, 0
      %p89 = por %p87, %p88
      %p90 = scmp.ne.s32.totalorder %s82, %s84
      %p91 = scmp.eq.s32.totalorder %s32, 1
      %p92 = por %p90, %p91
      %p93 = scmp.ne.s32.totalorder %s84, %s85
      %p94 = scmp.eq.s32.totalorder %s32, 0
      %p95 = por %p93, %p94
      %p96 = scmp.ne.s32.totalorder %s84, %s85
      %p97 = scmp.eq.s32.totalorder %s33, 1
      %p98 = por %p96, %p97
      %p100 = scmp.ne.s32.totalorder %s85, %s99
      %p101 = scmp.eq.s32.totalorder %s33, 0
      %p102 = por %p100, %p101
      %s104 = sadd.s32 %s103, 1
      %p107 = scmp.eq.s32.totalorder %s27, 1
      %p108 = scmp.ne.s32.totalorder %s103, %s105
      %p109 = scmp.eq.s32.totalorder %s27, 0
      %p110 = por %p108, %p109
      %p111 = scmp.ne.s32.totalorder %s103, %s105
      %p112 = scmp.eq.s32.totalorder %s32, 1
      %p113 = por %p111, %p112
      %p114 = scmp.ne.s32.totalorder %s105, %s106
      %p115 = scmp.eq.s32.totalorder %s32, 0
      %p116 = por %p114, %p115
      %p117 = scmp.ne.s32.totalorder %s105, %s106
      %p118 = scmp.eq.s32.totalorder %s33, 1
      %p119 = por %p117, %p118
      %p121 = scmp.ne.s32.totalorder %s106, %s120
      %p122 = scmp.eq.s32.totalorder %s33, 0
      %p123 = por %p121, %p122
      %s125 = sadd.s32 %s124, 1
      %p128 = scmp.eq.s32.totalorder %s27, 1
      %p129 = scmp.ne.s32.totalorder %s124, %s126
      %p130 = scmp.eq.s32.totalorder %s27, 0
      %p131 = por %p129, %p130
      %p132 = scmp.ne.s32.totalorder %s124, %s126
      %p133 = scmp.eq.s32.totalorder %s32, 1
      %p134 = por %p132, %p133
      %p135 = scmp.ne.s32.totalorder %s126, %s127
      %p136 = scmp.eq.s32.totalorder %s32, 0
      %p137 = por %p135, %p136
      %p138 = scmp.ne.s32.totalorder %s126, %s127
      %p139 = scmp.eq.s32.totalorder %s33, 1
      %p140 = por %p138, %p139
      %p142 = scmp.ne.s32.totalorder %s127, %s141
      %p143 = scmp.eq.s32.totalorder %s33, 0
      %p144 = por %p142, %p143
      %s146 = sadd.s32 %s145, 1
      %p149 = scmp.eq.s32.totalorder %s27, 1
      %p150 = scmp.ne.s32.totalorder %s145, %s147
      %p151 = scmp.eq.s32.totalorder %s27, 0
      %p152 = por %p150, %p151
      %p153 = scmp.ne.s32.totalorder %s145, %s147
      %p154 = scmp.eq.s32.totalorder %s32, 1
      %p155 = por %p153, %p154
      %p156 = scmp.ne.s32.totalorder %s147, %s148
      %p157 = scmp.eq.s32.totalorder %s32, 0
      %p158 = por %p156, %p157
      %p159 = scmp.ne.s32.totalorder %s147, %s148
      %p160 = scmp.eq.s32.totalorder %s33, 1
      %p161 = por %p159, %p160
      %p163 = scmp.ne.s32.totalorder %s148, %s162
      %p164 = scmp.eq.s32.totalorder %s33, 0
      %p165 = por %p163, %p164
      %s167 = sadd.s32 %s166, 1
      %p170 = scmp.eq.s32.totalorder %s27, 1
      %p171 = scmp.ne.s32.totalorder %s166, %s168
      %p172 = scmp.eq.s32.totalorder %s27, 0
      %p173 = por %p171, %p172
      %p174 = scmp.ne.s32.totalorder %s166, %s168
      %p175 = scmp.eq.s32.totalorder %s32, 1
      %p176 = por %p174, %p175
      %p177 = scmp.ne.s32.totalorder %s168, %s169
      %p178 = scmp.eq.s32.totalorder %s32, 0
      %p179 = por %p177, %p178
      %p180 = scmp.ne.s32.totalorder %s168, %s169
      %p181 = scmp.eq.s32.totalorder %s33, 1
      %p182 = por %p180, %p181
      %p184 = scmp.ne.s32.totalorder %s169, %s183
      %p185 = scmp.eq.s32.totalorder %s33, 0
      %p186 = por %p184, %p185
      %s188 = sadd.s32 %s187, 1
      %p191 = scmp.eq.s32.totalorder %s27, 1
      %p192 = scmp.ne.s32.totalorder %s187, %s189
      %p193 = scmp.eq.s32.totalorder %s27, 0
      %p194 = por %p192, %p193
      %p195 = scmp.ne.s32.totalorder %s187, %s189
      %p196 = scmp.eq.s32.totalorder %s32, 1
      %p197 = por %p195, %p196
      %p198 = scmp.ne.s32.totalorder %s189, %s190
      %p199 = scmp.eq.s32.totalorder %s32, 0
      %p200 = por %p198, %p199
      %p201 = scmp.ne.s32.totalorder %s189, %s190
      %p202 = scmp.eq.s32.totalorder %s33, 1
      %p203 = por %p201, %p202
      %p205 = scmp.ne.s32.totalorder %s190, %s204
      %p206 = scmp.eq.s32.totalorder %s33, 0
      %p207 = por %p205, %p206
      %s209 = sadd.s32 %s208, 1
      %p212 = scmp.eq.s32.totalorder %s27, 1
      %p213 = scmp.ne.s32.totalorder %s208, %s210
      %p214 = scmp.eq.s32.totalorder %s27, 0
      %p215 = por %p213, %p214
      %p216 = scmp.ne.s32.totalorder %s208, %s210
      %p217 = scmp.eq.s32.totalorder %s32, 1
      %p218 = por %p216, %p217
      %p219 = scmp.ne.s32.totalorder %s210, %s211
      %p220 = scmp.eq.s32.totalorder %s32, 0
      %p221 = por %p219, %p220
      %p222 = scmp.ne.s32.totalorder %s210, %s211
      %p223 = scmp.eq.s32.totalorder %s33, 1
      %p224 = por %p222, %p223
      %p226 = scmp.ne.s32.totalorder %s211, %s225
      %p227 = scmp.eq.s32.totalorder %s33, 0
      %p228 = por %p226, %p227
      %s230 = sadd.s32 %s229, 1
      %p233 = scmp.eq.s32.totalorder %s27, 1
      %p234 = scmp.ne.s32.totalorder %s229, %s231
      %p235 = scmp.eq.s32.totalorder %s27, 0
      %p236 = por %p234, %p235
      %p237 = scmp.ne.s32.totalorder %s229, %s231
      %p238 = scmp.eq.s32.totalorder %s32, 1
      %p239 = por %p237, %p238
      %p240 = scmp.ne.s32.totalorder %s231, %s232
      %p241 = scmp.eq.s32.totalorder %s32, 0
      %p242 = por %p240, %p241
      %p243 = scmp.ne.s32.totalorder %s231, %s232
      %p244 = scmp.eq.s32.totalorder %s33, 1
      %p245 = por %p243, %p244
      %p247 = scmp.ne.s32.totalorder %s232, %s246
      %p248 = scmp.eq.s32.totalorder %s33, 0
      %p249 = por %p247, %p248
      %s251 = sadd.s32 %s250, 1
      %p254 = scmp.eq.s32.totalorder %s27, 1
      %p255 = scmp.ne.s32.totalorder %s250, %s252
      %p256 = scmp.eq.s32.totalorder %s27, 0
      %p257 = por %p255, %p256
      %p258 = scmp.ne.s32.totalorder %s250, %s252
      %p259 = scmp.eq.s32.totalorder %s32, 1
      %p260 = por %p258, %p259
      %p261 = scmp.ne.s32.totalorder %s252, %s253
      %p262 = scmp.eq.s32.totalorder %s32, 0
      %p263 = por %p261, %p262
      %p264 = scmp.ne.s32.totalorder %s252, %s253
      %p265 = scmp.eq.s32.totalorder %s33, 1
      %p266 = por %p264, %p265
      %p268 = scmp.ne.s32.totalorder %s253, %s267
      %p269 = scmp.eq.s32.totalorder %s33, 0
      %p270 = por %p268, %p269
      %s272 = sadd.s32 %s271, 1
      %p275 = scmp.eq.s32.totalorder %s27, 1
      %p276 = scmp.ne.s32.totalorder %s271, %s273
      %p277 = scmp.eq.s32.totalorder %s27, 0
      %p278 = por %p276, %p277
      %p279 = scmp.ne.s32.totalorder %s271, %s273
      %p280 = scmp.eq.s32.totalorder %s32, 1
      %p281 = por %p279, %p280
      %p282 = scmp.ne.s32.totalorder %s273, %s274
      %p283 = scmp.eq.s32.totalorder %s32, 0
      %p284 = por %p282, %p283
      %p285 = scmp.ne.s32.totalorder %s273, %s274
      %p286 = scmp.eq.s32.totalorder %s33, 1
      %p287 = por %p285, %p286
      %p289 = scmp.ne.s32.totalorder %s274, %s288
      %p290 = scmp.eq.s32.totalorder %s33, 0
      %p291 = por %p289, %p290
      %s293 = sadd.s32 %s292, 1
      %p296 = scmp.eq.s32.totalorder %s27, 1
      %p297 = scmp.ne.s32.totalorder %s292, %s294
      %p298 = scmp.eq.s32.totalorder %s27, 0
      %p299 = por %p297, %p298
      %p300 = scmp.ne.s32.totalorder %s292, %s294
      %p301 = scmp.eq.s32.totalorder %s32, 1
      %p302 = por %p300, %p301
      %p303 = scmp.ne.s32.totalorder %s294, %s295
      %p304 = scmp.eq.s32.totalorder %s32, 0
      %p305 = por %p303, %p304
      %p306 = scmp.ne.s32.totalorder %s294, %s295
      %p307 = scmp.eq.s32.totalorder %s33, 1
      %p308 = por %p306, %p307
      %p310 = scmp.ne.s32.totalorder %s295, %s309
      %p311 = scmp.eq.s32.totalorder %s33, 0
      %p312 = por %p310, %p311
      %s314 = sadd.s32 %s313, 1
      %p317 = scmp.eq.s32.totalorder %s27, 1
      %p318 = scmp.ne.s32.totalorder %s313, %s315
      %p319 = scmp.eq.s32.totalorder %s27, 0
      %p320 = por %p318, %p319
      %p321 = scmp.ne.s32.totalorder %s313, %s315
      %p322 = scmp.eq.s32.totalorder %s32, 1
      %p323 = por %p321, %p322
      %p324 = scmp.ne.s32.totalorder %s315, %s316
      %p325 = scmp.eq.s32.totalorder %s32, 0
      %p326 = por %p324, %p325
      %p327 = scmp.ne.s32.totalorder %s315, %s316
      %p328 = scmp.eq.s32.totalorder %s33, 1
      %p329 = por %p327, %p328
      %p331 = scmp.ne.s32.totalorder %s316, %s330
      %p332 = scmp.eq.s32.totalorder %s33, 0
      %p333 = por %p331, %p332
      %s335 = sadd.s32 %s334, 1
      %p338 = scmp.eq.s32.totalorder %s27, 1
      %p339 = scmp.ne.s32.totalorder %s334, %s336
      %p340 = scmp.eq.s32.totalorder %s27, 0
      %p341 = por %p339, %p340
      %p342 = scmp.ne.s32.totalorder %s334, %s336
      %p343 = scmp.eq.s32.totalorder %s32, 1
      %p344 = por %p342, %p343
      %p345 = scmp.ne.s32.totalorder %s336, %s337
      %p346 = scmp.eq.s32.totalorder %s32, 0
      %p347 = por %p345, %p346
      %p348 = scmp.ne.s32.totalorder %s336, %s337
      %p349 = scmp.eq.s32.totalorder %s33, 1
      %p350 = por %p348, %p349
      %p352 = scmp.ne.s32.totalorder %s337, %s351
      %p353 = scmp.eq.s32.totalorder %s33, 0
      %p354 = por %p352, %p353
      %s356 = sadd.s32 %s355, 1
      %p359 = scmp.eq.s32.totalorder %s27, 1
      %p360 = scmp.ne.s32.totalorder %s355, %s357
      %p361 = scmp.eq.s32.totalorder %s27, 0
      %p362 = por %p360, %p361
      %p363 = scmp.ne.s32.totalorder %s355, %s357
      %p364 = scmp.eq.s32.totalorder %s32, 1
      %p365 = por %p363, %p364
      %p366 = scmp.ne.s32.totalorder %s357, %s358
      %p367 = scmp.eq.s32.totalorder %s32, 0
      %p368 = por %p366, %p367
      %p369 = scmp.ne.s32.totalorder %s357, %s358
      %p370 = scmp.eq.s32.totalorder %s33, 1
      %p371 = por %p369, %p370
      %p373 = scmp.ne.s32.totalorder %s358, %s372
      %p374 = scmp.eq.s32.totalorder %s33, 0
      %p375 = por %p373, %p374
      %s377 = sadd.s32 %s376, 1
      %p380 = scmp.eq.s32.totalorder %s27, 1
      %p381 = scmp.ne.s32.totalorder %s376, %s378
      %p382 = scmp.eq.s32.totalorder %s27, 0
      %p383 = por %p381, %p382
      %p384 = scmp.ne.s32.totalorder %s376, %s378
      %p385 = scmp.eq.s32.totalorder %s32, 1
      %p386 = por %p384, %p385
      %p387 = scmp.ne.s32.totalorder %s378, %s379
      %p388 = scmp.eq.s32.totalorder %s32, 0
      %p389 = por %p387, %p388
      %p390 = scmp.ne.s32.totalorder %s378, %s379
      %p391 = scmp.eq.s32.totalorder %s33, 1
      %p392 = por %p390, %p391
      %p394 = scmp.ne.s32.totalorder %s379, %s393
      %p395 = scmp.eq.s32.totalorder %s33, 0
      %p396 = por %p394, %p395
      %s398 = sadd.s32 %s397, 1
      %p401 = scmp.eq.s32.totalorder %s27, 1
      %p402 = scmp.ne.s32.totalorder %s397, %s399
      %p403 = scmp.eq.s32.totalorder %s27, 0
      %p404 = por %p402, %p403
      %p405 = scmp.ne.s32.totalorder %s397, %s399
      %p406 = scmp.eq.s32.totalorder %s32, 1
      %p407 = por %p405, %p406
      %p408 = scmp.ne.s32.totalorder %s399, %s400
      %p409 = scmp.eq.s32.totalorder %s32, 0
      %p410 = por %p408, %p409
      %p411 = scmp.ne.s32.totalorder %s399, %s400
      %p412 = scmp.eq.s32.totalorder %s33, 1
      %p413 = por %p411, %p412
      %p415 = scmp.ne.s32.totalorder %s400, %s414
      %p416 = scmp.eq.s32.totalorder %s33, 0
      %p417 = por %p415, %p416
      %s418 = ssub.s32 %s27, %s34
      %p419 = scmp.eq.s32.totalorder %s418, 0
      %s421 = sadd.s32 %s420, 1
      %s422 = scalar_select %p419, %s420, %s421
      %p425 = pneg %p419
      %p426 = scmp.eq.s32.totalorder %s27, 1
      %p427 = por %p425, %p426
      %p428 = scmp.ne.s32.totalorder %s420, %s423
      %p429 = scmp.eq.s32.totalorder %s27, 0
      %p430 = por %p428, %p429
      %p431 = scmp.ne.s32.totalorder %s420, %s423
      %p432 = scmp.eq.s32.totalorder %s32, 1
      %p433 = por %p431, %p432
      %p434 = scmp.ne.s32.totalorder %s423, %s424
      %p435 = scmp.eq.s32.totalorder %s32, 0
      %p436 = por %p434, %p435
      %p437 = scmp.ne.s32.totalorder %s423, %s424
      %p438 = scmp.eq.s32.totalorder %s33, 1
      %p439 = por %p437, %p438
      %p441 = scmp.ne.s32.totalorder %s424, %s440
      %p442 = scmp.eq.s32.totalorder %s33, 0
      %p443 = por %p441, %p442
      %p444 = scmp.le.s32.totalorder 1, %s27
      %p445 = scmp.lt.s32.totalorder %s27, 3
      %p446 = pnand %p444, %p445
      %p447 = pneg %p446
      // Predicated region
      $region9: #{vit_forward.1} parent=5 // pred_check
        _
      $region10: #{vit_forward.1} parent=5 // pred_check_branch
        %449 = sbr.rel (%p446) target = $region12
      $region11: #{vit_forward.1} parent=5 // pred_region
        %s450 = ssub.s32 %s27, 1
        // Predicated region
        $region13: #{vit_forward.1} parent=11 // pred_check
          %p451 = pneg %p74
        $region14: #{vit_forward.1} parent=11 // pred_check_branch
          %453 = sbr.rel (%p451) target = $region16
        $region15: #{vit_forward.1} parent=11 // pred_region
          _
        $region16: #{vit_forward.1} parent=11 // pred_fallthru
          _
        // Predicated region
        $region17: #{vit_forward.1} parent=11 // pred_check
          %p454 = pneg %p95
        $region18: #{vit_forward.1} parent=11 // pred_check_branch
          %456 = sbr.rel (%p454) target = $region20
        $region19: #{vit_forward.1} parent=11 // pred_region
          _
        $region20: #{vit_forward.1} parent=11 // pred_fallthru
          _
        // Predicated region
        $region21: #{vit_forward.1} parent=11 // pred_check
          %p457 = pneg %p116
        $region22: #{vit_forward.1} parent=11 // pred_check_branch
          %459 = sbr.rel (%p457) target = $region24
        $region23: #{vit_forward.1} parent=11 // pred_region
          _
        $region24: #{vit_forward.1} parent=11 // pred_fallthru
          _
        // Predicated region
        $region25: #{vit_forward.1} parent=11 // pred_check
          %p460 = pneg %p137
        $region26: #{vit_forward.1} parent=11 // pred_check_branch
          %462 = sbr.rel (%p460) target = $region28
        $region27: #{vit_forward.1} parent=11 // pred_region
          _
        $region28: #{vit_forward.1} parent=11 // pred_fallthru
          _
        // Predicated region
        $region29: #{vit_forward.1} parent=11 // pred_check
          %p463 = pneg %p158
        $region30: #{vit_forward.1} parent=11 // pred_check_branch
          %465 = sbr.rel (%p463) target = $region32
        $region31: #{vit_forward.1} parent=11 // pred_region
          _
        $region32: #{vit_forward.1} parent=11 // pred_fallthru
          _
        // Predicated region
        $region33: #{vit_forward.1} parent=11 // pred_check
          %p466 = pneg %p179
        $region34: #{vit_forward.1} parent=11 // pred_check_branch
          %468 = sbr.rel (%p466) target = $region36
        $region35: #{vit_forward.1} parent=11 // pred_region
          _
        $region36: #{vit_forward.1} parent=11 // pred_fallthru
          _
        // Predicated region
        $region37: #{vit_forward.1} parent=11 // pred_check
          %p469 = pneg %p200
        $region38: #{vit_forward.1} parent=11 // pred_check_branch
          %471 = sbr.rel (%p469) target = $region40
        $region39: #{vit_forward.1} parent=11 // pred_region
          _
        $region40: #{vit_forward.1} parent=11 // pred_fallthru
          _
        // Predicated region
        $region41: #{vit_forward.1} parent=11 // pred_check
          %p472 = pneg %p221
        $region42: #{vit_forward.1} parent=11 // pred_check_branch
          %474 = sbr.rel (%p472) target = $region44
        $region43: #{vit_forward.1} parent=11 // pred_region
          _
        $region44: #{vit_forward.1} parent=11 // pred_fallthru
          _
        // Predicated region
        $region45: #{vit_forward.1} parent=11 // pred_check
          %p475 = pneg %p242
        $region46: #{vit_forward.1} parent=11 // pred_check_branch
          %477 = sbr.rel (%p475) target = $region48
        $region47: #{vit_forward.1} parent=11 // pred_region
          _
        $region48: #{vit_forward.1} parent=11 // pred_fallthru
          _
        // Predicated region
        $region49: #{vit_forward.1} parent=11 // pred_check
          %p478 = pneg %p263
        $region50: #{vit_forward.1} parent=11 // pred_check_branch
          %480 = sbr.rel (%p478) target = $region52
        $region51: #{vit_forward.1} parent=11 // pred_region
          _
        $region52: #{vit_forward.1} parent=11 // pred_fallthru
          _
        // Predicated region
        $region53: #{vit_forward.1} parent=11 // pred_check
          %p481 = pneg %p284
        $region54: #{vit_forward.1} parent=11 // pred_check_branch
          %483 = sbr.rel (%p481) target = $region56
        $region55: #{vit_forward.1} parent=11 // pred_region
          _
        $region56: #{vit_forward.1} parent=11 // pred_fallthru
          _
        // Predicated region
        $region57: #{vit_forward.1} parent=11 // pred_check
          %p484 = pneg %p305
        $region58: #{vit_forward.1} parent=11 // pred_check_branch
          %486 = sbr.rel (%p484) target = $region60
        $region59: #{vit_forward.1} parent=11 // pred_region
          _
        $region60: #{vit_forward.1} parent=11 // pred_fallthru
          _
        // Predicated region
        $region61: #{vit_forward.1} parent=11 // pred_check
          %p487 = pneg %p326
        $region62: #{vit_forward.1} parent=11 // pred_check_branch
          %489 = sbr.rel (%p487) target = $region64
        $region63: #{vit_forward.1} parent=11 // pred_region
          _
        $region64: #{vit_forward.1} parent=11 // pred_fallthru
          _
        // Predicated region
        $region65: #{vit_forward.1} parent=11 // pred_check
          %p490 = pneg %p347
        $region66: #{vit_forward.1} parent=11 // pred_check_branch
          %492 = sbr.rel (%p490) target = $region68
        $region67: #{vit_forward.1} parent=11 // pred_region
          _
        $region68: #{vit_forward.1} parent=11 // pred_fallthru
          _
        // Predicated region
        $region69: #{vit_forward.1} parent=11 // pred_check
          %p493 = pneg %p368
        $region70: #{vit_forward.1} parent=11 // pred_check_branch
          %495 = sbr.rel (%p493) target = $region72
        $region71: #{vit_forward.1} parent=11 // pred_region
          _
        $region72: #{vit_forward.1} parent=11 // pred_fallthru
          _
        // Predicated region
        $region73: #{vit_forward.1} parent=11 // pred_check
          %p496 = pneg %p389
        $region74: #{vit_forward.1} parent=11 // pred_check_branch
          %498 = sbr.rel (%p496) target = $region76
        $region75: #{vit_forward.1} parent=11 // pred_region
          _
        $region76: #{vit_forward.1} parent=11 // pred_fallthru
          _
        // Predicated region
        $region77: #{vit_forward.1} parent=11 // pred_check
          %p499 = pneg %p410
        $region78: #{vit_forward.1} parent=11 // pred_check_branch
          %501 = sbr.rel (%p499) target = $region80
        $region79: #{vit_forward.1} parent=11 // pred_region
          _
        $region80: #{vit_forward.1} parent=11 // pred_fallthru
          _
      $region12: #{vit_forward.1} parent=5 // pred_fallthru
        _
      %p502 = scmp.lt.s32.totalorder %s27, 2
      // Predicated region
      $region81: #{vit_forward.1} parent=5 // pred_check
        %p503 = pneg %p502
      $region82: #{vit_forward.1} parent=5 // pred_check_branch
        %505 = sbr.rel (%p503) target = $region84
      $region83: #{vit_forward.1} parent=5 // pred_region
        // Predicated region
        $region85: #{vit_forward.1} parent=83 // pred_check
          %p506 = pneg %p47
        $region86: #{vit_forward.1} parent=83 // pred_check_branch
          %508 = sbr.rel (%p506) target = $region88
        $region87: #{vit_forward.1} parent=83 // pred_region
          %s509 = smul.u32 2, %s27
          %p510 = scmp.lt.s32.totalorder %s509, 3
          %s511 = scalar_select %p510, %s509, 3
          %s512 = smul.addr %s511, 8
          %s513 = scalar_lea.vmem %s0, %s512
          %s514 = smul.u32 2, %s27
        $region88: #{vit_forward.1} parent=83 // pred_fallthru
          _
      $region84: #{vit_forward.1} parent=5 // pred_fallthru
        _
      %p515 = scmp.le.s32.totalorder 1, %s27
      %p516 = scmp.lt.s32.totalorder %s27, 3
      %p517 = pnand %p515, %p516
      %p518 = pneg %p517
      // Predicated region
      $region89: #{vit_forward.1} parent=5 // pred_check
        _
      $region90: #{vit_forward.1} parent=5 // pred_check_branch
        %520 = sbr.rel (%p517) target = $region92
      $region91: #{vit_forward.1} parent=5 // pred_region
        %s521 = ssub.s32 %s27, 1
        %s522 = smul.u32 2, %s32
        %p523 = scmp.lt.s32.totalorder %s522, 3
        %s524 = scalar_select %p523, %s522, 3
        %s525 = smul.addr %s524, 8
        %s526 = scalar_lea.vmem %s0, %s525
        %p527 = pneg %p53
        %p528 = pneg %p50
        %p529 = pneg %p74
        %p530 = pneg %p71
        %p531 = pneg %p95
        %p532 = pneg %p92
        %p533 = pneg %p116
        %p534 = pneg %p113
        %p535 = pneg %p137
        %p536 = pneg %p134
        %p537 = pneg %p158
        %p538 = pneg %p155
        %p539 = pneg %p179
        %p540 = pneg %p176
        %p541 = pneg %p200
        %p542 = pneg %p197
        %p543 = pneg %p221
        %p544 = pneg %p218
        %p545 = pneg %p242
        %p546 = pneg %p239
        %p547 = pneg %p263
        %p548 = pneg %p260
        %p549 = pneg %p284
        %p550 = pneg %p281
        %p551 = pneg %p305
        %p552 = pneg %p302
        %p553 = pneg %p326
        %p554 = pneg %p323
        %p555 = pneg %p347
        %p556 = pneg %p344
        %p557 = pneg %p368
        %p558 = pneg %p365
        %p559 = pneg %p389
        %p560 = pneg %p386
        %p561 = pneg %p410
        %p562 = pneg %p407
        %p563 = pneg %p436
        %p564 = pneg %p433
        %s565 = sand.u32 %s423, 1
        %s566 = scalar_lea.sflag [#allocation3], %s565
        %s567 = sand.u32 %s423, 1
        %s568 = smul.addr %s567, 16
        %s569 = scalar_lea.vmem [#allocation2], %s568
        %s570 = smul.u32 2, %s32
        %p571 = scmp.lt.s32.totalorder %s570, 3
        %s572 = scalar_select %p571, %s570, 3
        %s573 = smul.addr %s572, 8
        %s574 = scalar_lea.vmem %s0, %s573
        %s575 = smul.u32 2, %s32
        %s576 = smul.u32 2, %s32
        %v578 = vld [vmem:[%s574] sm:$0xff]
        %v579 = vld [vmem:[%s574 + $0x8] sm:$0xff]
        %v580 = vpack.c.bf16 %v579, %v578
        %v581 = vld [vmem:[%s1] sm:$0xf]
        %v582 = vld [vmem:[%s1 + $0x4] sm:$0xf]
        %v583 = vld [vmem:[%s1 + $0x8] sm:$0xf]
        %v584 = vld [vmem:[%s1 + $0xc] sm:$0xf]
        %v585 = vld [vmem:[%s1 + $0x10] sm:$0xf]
        %v586 = vld [vmem:[%s1 + $0x14] sm:$0xf]
        %v587 = vld [vmem:[%s1 + $0x18] sm:$0xf]
        %v588 = vld [vmem:[%s1 + $0x1c] sm:$0xf]
        %v589 = vld [vmem:[%s2] sm:$0x1]
        %v591 = vlaneseq
        %v592 = vshrl.u32 %v591, 7
        %v593 = vsub.s32 0, %v592
        %v594 = vrot.slane %v589, %v593
        %v604 = vunpack.c.l.b16 %v581
        %v605 = vunpack.c.l.b16 %v582
        %v606 = vunpack.c.l.b16 %v583
        %v607 = vunpack.c.l.b16 %v584
        %v608 = vunpack.c.l.b16 %v585
        %v609 = vunpack.c.l.b16 %v586
        %v610 = vunpack.c.l.b16 %v587
        %v611 = vunpack.c.l.b16 %v588
        %v612 = vpack.c.b16 %v605, %v604
        %v613 = vpack.c.b16 %v607, %v606
        %v614 = vpack.c.b16 %v609, %v608
        %v615 = vpack.c.b16 %v611, %v610
        %vm620 = vcmask 523264
        %v622 = vsel %vm620, %v580, 0
        %624 = vmatprep.subr.bf16.mxu0 0
        %625 = vmatpush1.bf16.msra.mxu0 %v612
        %626 = vmatprep.subr.bf16.mxu0 0
        %627 = vmatpush1.bf16.msra.mxu0 %v613
        %628 = vmatprep.subr.bf16.mxu0 0
        %629 = vmatpush1.bf16.msra.mxu0 %v614
        %630 = vmatprep.subr.bf16.mxu0 0
        %631 = vmatpush1.bf16.msra.mxu0 %v615
        %632 = vmatprep.subr.bf16.mxu0 0
        %633 = vmatpush1.bf16.msra.mxu0 0
        %634 = vmatprep.subr.bf16.mxu0 0
        %635 = vmatpush1.bf16.msra.mxu0 0
        %636 = vmatprep.subr.bf16.mxu0 0
        %637 = vmatpush1.bf16.msra.mxu0 0
        %638 = vmatprep.subr.bf16.mxu0 0
        %639 = vmatpush1.bf16.msra.mxu0 0
        %640 = vmatprep.subr.bf16.mxu0 0
        %641 = vmatpush1.bf16.msra.mxu0 0
        %642 = vmatprep.subr.bf16.mxu0 0
        %643 = vmatpush1.bf16.msra.mxu0 0
        %644 = vmatprep.subr.bf16.mxu0 0
        %645 = vmatpush1.bf16.msra.mxu0 0
        %646 = vmatprep.subr.bf16.mxu0 0
        %647 = vmatpush1.bf16.msra.mxu0 0
        %648 = vmatprep.subr.bf16.mxu0 0
        %649 = vmatpush1.bf16.msra.mxu0 0
        %650 = vmatprep.subr.bf16.mxu0 0
        %651 = vmatpush1.bf16.msra.mxu0 0
        %652 = vmatprep.subr.bf16.mxu0 0
        %653 = vmatpush1.bf16.msra.mxu0 0
        %654 = vmatprep.subr.bf16.mxu0 0
        %655 = vmatpush1.bf16.msra.mxu0 0
        %656 = vmatprep.mubr.bf16.mxu0 0
        %657 = vmatmul.mubr.bf16.gmra.mrb[0].mxu0 %v622
        %v658 = vpop.f32.mrb[0].mxu0
        %v659 = vadd.f32 %v594, %v658
        %v660 = vpop.f32.mrb[0].mxu0
        %v661 = vpop.f32.mrb[0].mxu0
        %v662 = vadd.f32 %v594, %v661
        %v663 = vpop.f32.mrb[0].mxu0
        %664 = vdwg.mxu0
        %v665 = vld [vmem:[%s3] sm:$0xff]
        %v666 = vld [vmem:[%s3 + $0x8] sm:$0xff]
        %v667 = vadd.f32 %v659, %v665
        %v668 = vadd.f32 %v662, %v666
        %v669 = vld [vmem:[%s4] sm:$0x1]
        %v670 = vld [vmem:[%s5] sm:$0x1]
        %vm671 = vcmask 261120
        %v672 = vsel %vm671, %v667, 0.0
        %673 = vadd.xlane.f32.xlu0 %v672
        %v674 = vpop.xlane.xlu0 %673
        %v675 = vsel %vm671, %v668, 0.0
        %676 = vadd.xlane.f32.xlu0 %v675
        %v677 = vpop.xlane.xlu0 %676
        %v678 = vrcp.pop 32.0
        %v679 = vmul.f32 %v674, %v678
        %v680 = vmul.f32 %v677, %v678
        %v681 = vsub.f32 %v667, %v679
        %v682 = vsub.f32 %v668, %v680
        %v683 = vmul.f32 %v681, %v681
        %v684 = vmul.f32 %v682, %v682
        %v685 = vsel %vm671, %v683, 0.0
        %686 = vadd.xlane.f32.xlu0 %v685
        %v687 = vpop.xlane.xlu0 %686
        %v688 = vsel %vm671, %v684, 0.0
        %689 = vadd.xlane.f32.xlu0 %v688
        %v690 = vpop.xlane.xlu0 %689
        %v691 = vmul.f32 %v687, %v678
        %v692 = vmul.f32 %v690, %v678
        %v693 = vadd.f32 %v691, 1e-05
        %v694 = vadd.f32 %v692, 1e-05
        %v695 = vrsqrt.pop %v693
        %v696 = vrsqrt.pop %v694
        %v697 = vmul.f32 %v681, %v695
        %v698 = vmul.f32 %v682, %v696
        %v700 = vlaneseq
        %v701 = vshrl.u32 %v700, 7
        %v702 = vsub.s32 0, %v701
        %v703 = vrot.slane %v669, %v702
        %v705 = vmul.f32 %v697, %v703
        %v706 = vmul.f32 %v698, %v703
        %v708 = vlaneseq
        %v709 = vshrl.u32 %v708, 7
        %v710 = vsub.s32 0, %v709
        %v711 = vrot.slane %v670, %v710
        %v713 = vadd.f32 %v705, %v711
        %v714 = vadd.f32 %v706, %v711
        %v715 = vpack.c.bf16 %v714, %v713
        %v716 = vld [vmem:[%s6] sm:$0xf]
        %v717 = vld [vmem:[%s6 + $0x4] sm:$0xf]
        %v718 = vld [vmem:[%s6 + $0x8] sm:$0xf]
        %v719 = vld [vmem:[%s6 + $0xc] sm:$0xf]
        %v720 = vld [vmem:[%s7] sm:$0x1]
        %v722 = vlaneseq
        %v723 = vshrl.u32 %v722, 7
        %v724 = vsub.s32 0, %v723
        %v725 = vrot.slane %v720, %v724
        %v731 = vunpack.c.l.b16 %v716
        %v732 = vunpack.c.l.b16 %v717
        %v733 = vunpack.c.l.b16 %v718
        %v734 = vunpack.c.l.b16 %v719
        %v735 = vpack.c.b16 %v732, %v731
        %v736 = vpack.c.b16 %v734, %v733
        %v740 = vsel %vm671, %v715, 0
        %742 = vmatprep.subr.bf16.mxu0 0
        %743 = vmatpush1.bf16.msra.mxu0 %v735
        %744 = vmatprep.subr.bf16.mxu0 0
        %745 = vmatpush1.bf16.msra.mxu0 %v736
        %746 = vmatprep.subr.bf16.mxu0 0
        %747 = vmatpush1.bf16.msra.mxu0 0
        %748 = vmatprep.subr.bf16.mxu0 0
        %749 = vmatpush1.bf16.msra.mxu0 0
        %750 = vmatprep.subr.bf16.mxu0 0
        %751 = vmatpush1.bf16.msra.mxu0 0
        %752 = vmatprep.subr.bf16.mxu0 0
        %753 = vmatpush1.bf16.msra.mxu0 0
        %754 = vmatprep.subr.bf16.mxu0 0
        %755 = vmatpush1.bf16.msra.mxu0 0
        %756 = vmatprep.subr.bf16.mxu0 0
        %757 = vmatpush1.bf16.msra.mxu0 0
        %758 = vmatprep.subr.bf16.mxu0 0
        %759 = vmatpush1.bf16.msra.mxu0 0
        %760 = vmatprep.subr.bf16.mxu0 0
        %761 = vmatpush1.bf16.msra.mxu0 0
        %762 = vmatprep.subr.bf16.mxu0 0
        %763 = vmatpush1.bf16.msra.mxu0 0
        %764 = vmatprep.subr.bf16.mxu0 0
        %765 = vmatpush1.bf16.msra.mxu0 0
        %766 = vmatprep.subr.bf16.mxu0 0
        %767 = vmatpush1.bf16.msra.mxu0 0
        %768 = vmatprep.subr.bf16.mxu0 0
        %769 = vmatpush1.bf16.msra.mxu0 0
        %770 = vmatprep.subr.bf16.mxu0 0
        %771 = vmatpush1.bf16.msra.mxu0 0
        %772 = vmatprep.subr.bf16.mxu0 0
        %773 = vmatpush1.bf16.msra.mxu0 0
        %774 = vmatprep.mubr.bf16.mxu0 0
        %775 = vmatmul.mubr.bf16.gmra.mrb[0].mxu0 %v740
        %v776 = vpop.f32.mrb[0].mxu0
        %v777 = vadd.f32 %v725, %v776
        %v778 = vpop.f32.mrb[0].mxu0
        %v779 = vpop.f32.mrb[0].mxu0
        %v780 = vadd.f32 %v725, %v779
        %v781 = vpop.f32.mrb[0].mxu0
        %782 = vdwg.mxu0
        %v783 = vpack.c.bf16 %v780, %v777
        %785 = vrot.lane.b32.xlu0 %v783, 96
        %v786 = vpop.permute.xlu0 %785
        %vm787 = vcmask 64512
        %v789 = vsel %vm787, %v783, 0
        %v792 = vsel %vm787, %v786, 0
        %794 = vmatprep.subr.bf16.mxu0 0
        %795 = vmatpush1.bf16.xpose.msra.mxu0 %v792
        %796 = vmatprep.subr.bf16.mxu0 0
        %797 = vmatpush1.bf16.xpose.msra.mxu0 0
        %798 = vmatprep.subr.bf16.mxu0 0
        %799 = vmatpush1.bf16.xpose.msra.mxu0 0
        %800 = vmatprep.subr.bf16.mxu0 0
        %801 = vmatpush1.bf16.xpose.msra.mxu0 0
        %802 = vmatprep.subr.bf16.mxu0 0
        %803 = vmatpush1.bf16.xpose.msra.mxu0 0
        %804 = vmatprep.subr.bf16.mxu0 0
        %805 = vmatpush1.bf16.xpose.msra.mxu0 0
        %806 = vmatprep.subr.bf16.mxu0 0
        %807 = vmatpush1.bf16.xpose.msra.mxu0 0
        %808 = vmatprep.subr.bf16.mxu0 0
        %809 = vmatpush1.bf16.xpose.msra.mxu0 0
        %810 = vmatprep.subr.bf16.mxu0 0
        %811 = vmatpush1.bf16.xpose.msra.mxu0 0
        %812 = vmatprep.subr.bf16.mxu0 0
        %813 = vmatpush1.bf16.xpose.msra.mxu0 0
        %814 = vmatprep.subr.bf16.mxu0 0
        %815 = vmatpush1.bf16.xpose.msra.mxu0 0
        %816 = vmatprep.subr.bf16.mxu0 0
        %817 = vmatpush1.bf16.xpose.msra.mxu0 0
        %818 = vmatprep.subr.bf16.mxu0 0
        %819 = vmatpush1.bf16.xpose.msra.mxu0 0
        %820 = vmatprep.subr.bf16.mxu0 0
        %821 = vmatpush1.bf16.xpose.msra.mxu0 0
        %822 = vmatprep.subr.bf16.mxu0 0
        %823 = vmatpush1.bf16.xpose.msra.mxu0 0
        %824 = vmatprep.subr.bf16.mxu0 0
        %825 = vmatpush1.bf16.xpose.msra.mxu0 0
        %826 = vmatprep.mubr.bf16.mxu0 0
        %827 = vmatmul.mubr.bf16.gmra.mrb[0].mxu0 %v789
        %v828 = vpop.f32.mrb[0].mxu0
        %v829 = vadd.f32 0.0, %v828
        %v830 = vpop.f32.mrb[0].mxu0
        %v831 = vpop.f32.mrb[0].mxu0
        %v832 = vadd.f32 0.0, %v831
        %v833 = vpop.f32.mrb[0].mxu0
        %834 = vdwg.mxu0
        %v835 = vmul.f32 %v829, 0.35355338
        %v836 = vmul.f32 %v832, 0.35355338
        %vm837 = vcmask 130048
        %v838 = vsel %vm837, %v835, -inf
        %839 = vmax.xlane.f32.xlu0 %v838
        %v840 = vpop.xlane.xlu0 %839
        %v841 = vsel %vm837, %v836, -inf
        %842 = vmax.xlane.f32.xlu0 %v841
        %v843 = vpop.xlane.xlu0 %842
        %v844 = vsub.f32 %v835, %v840
        %v845 = vsub.f32 %v836, %v843
        %v846 = vmul.f32 %v844, 1.442695
        %v847 = vpow.pop %v846
        %v848 = vmul.f32 %v845, 1.442695
        %v849 = vpow.pop %v848
        %v850 = vsel %vm837, %v847, 0.0
        %851 = vadd.xlane.f32.xlu0 %v850
        %v852 = vpop.xlane.xlu0 %851
        %v853 = vsel %vm837, %v849, 0.0
        %854 = vadd.xlane.f32.xlu0 %v853
        %v855 = vpop.xlane.xlu0 %854
        %v856 = vrcp.pop %v852
        %v857 = vmul.f32 %v847, %v856
        %v858 = vrcp.pop %v855
        %v859 = vmul.f32 %v849, %v858
        %v860 = vpack.c.bf16 %v859, %v857
        %861 = vrot.lane.b32.xlu0 %v783, 64
        %v862 = vpop.permute.xlu0 %861
        %v865 = vsel %vm837, %v860, 0
        %867 = vmatprep.subr.bf16.mxu0 0
        %868 = vmatpush1.bf16.msra.mxu0 %v862
        %869 = vmatprep.subr.bf16.mxu0 0
        %870 = vmatpush1.bf16.msra.mxu0 0
        %871 = vmatprep.subr.bf16.mxu0 0
        %872 = vmatpush1.bf16.msra.mxu0 0
        %873 = vmatprep.subr.bf16.mxu0 0
        %874 = vmatpush1.bf16.msra.mxu0 0
        %875 = vmatprep.subr.bf16.mxu0 0
        %876 = vmatpush1.bf16.msra.mxu0 0
        %877 = vmatprep.subr.bf16.mxu0 0
        %878 = vmatpush1.bf16.msra.mxu0 0
        %879 = vmatprep.subr.bf16.mxu0 0
        %880 = vmatpush1.bf16.msra.mxu0 0
        %881 = vmatprep.subr.bf16.mxu0 0
        %882 = vmatpush1.bf16.msra.mxu0 0
        %883 = vmatprep.subr.bf16.mxu0 0
        %884 = vmatpush1.bf16.msra.mxu0 0
        %885 = vmatprep.subr.bf16.mxu0 0
        %886 = vmatpush1.bf16.msra.mxu0 0
        %887 = vmatprep.subr.bf16.mxu0 0
        %888 = vmatpush1.bf16.msra.mxu0 0
        %889 = vmatprep.subr.bf16.mxu0 0
        %890 = vmatpush1.bf16.msra.mxu0 0
        %891 = vmatprep.subr.bf16.mxu0 0
        %892 = vmatpush1.bf16.msra.mxu0 0
        %893 = vmatprep.subr.bf16.mxu0 0
        %894 = vmatpush1.bf16.msra.mxu0 0
        %895 = vmatprep.subr.bf16.mxu0 0
        %896 = vmatpush1.bf16.msra.mxu0 0
        %897 = vmatprep.subr.bf16.mxu0 0
        %898 = vmatpush1.bf16.msra.mxu0 0
        %899 = vmatprep.mubr.bf16.mxu0 0
        %900 = vmatmul.mubr.bf16.gmra.mrb[0].mxu0 %v865
        %v901 = vpop.f32.mrb[0].mxu0
        %v902 = vadd.f32 0.0, %v901
        %v903 = vpop.f32.mrb[0].mxu0
        %v904 = vpop.f32.mrb[0].mxu0
        %v905 = vadd.f32 0.0, %v904
        %v906 = vpop.f32.mrb[0].mxu0
        %907 = vdwg.mxu0
        %908 = vrot.lane.b32.xlu0 %v783, 120
        %v909 = vpop.permute.xlu0 %908
        %910 = vrot.lane.b32.xlu0 %v783, 88
        %v911 = vpop.permute.xlu0 %910
        %v913 = vsel %vm787, %v909, 0
        %v916 = vsel %vm787, %v911, 0
        %918 = vmatprep.subr.bf16.mxu0 0
        %919 = vmatpush1.bf16.xpose.msra.mxu0 %v916
        %920 = vmatprep.subr.bf16.mxu0 0
        %921 = vmatpush1.bf16.xpose.msra.mxu0 0
        %922 = vmatprep.subr.bf16.mxu0 0
        %923 = vmatpush1.bf16.xpose.msra.mxu0 0
        %924 = vmatprep.subr.bf16.mxu0 0
        %925 = vmatpush1.bf16.xpose.msra.mxu0 0
        %926 = vmatprep.subr.bf16.mxu0 0
        %927 = vmatpush1.bf16.xpose.msra.mxu0 0
        %928 = vmatprep.subr.bf16.mxu0 0
        %929 = vmatpush1.bf16.xpose.msra.mxu0 0
        %930 = vmatprep.subr.bf16.mxu0 0
        %931 = vmatpush1.bf16.xpose.msra.mxu0 0
        %932 = vmatprep.subr.bf16.mxu0 0
        %933 = vmatpush1.bf16.xpose.msra.mxu0 0
        %934 = vmatprep.subr.bf16.mxu0 0
        %935 = vmatpush1.bf16.xpose.msra.mxu0 0
        %936 = vmatprep.subr.bf16.mxu0 0
        %937 = vmatpush1.bf16.xpose.msra.mxu0 0
        %938 = vmatprep.subr.bf16.mxu0 0
        %939 = vmatpush1.bf16.xpose.msra.mxu0 0
        %940 = vmatprep.subr.bf16.mxu0 0
        %941 = vmatpush1.bf16.xpose.msra.mxu0 0
        %942 = vmatprep.subr.bf16.mxu0 0
        %943 = vmatpush1.bf16.xpose.msra.mxu0 0
        %944 = vmatprep.subr.bf16.mxu0 0
        %945 = vmatpush1.bf16.xpose.msra.mxu0 0
        %946 = vmatprep.subr.bf16.mxu0 0
        %947 = vmatpush1.bf16.xpose.msra.mxu0 0
        %948 = vmatprep.subr.bf16.mxu0 0
        %949 = vmatpush1.bf16.xpose.msra.mxu0 0
        %950 = vmatprep.mubr.bf16.mxu0 0
        %951 = vmatmul.mubr.bf16.gmra.mrb[0].mxu0 %v913
        %v952 = vpop.f32.mrb[0].mxu0
        %v953 = vadd.f32 0.0, %v952
        %v954 = vpop.f32.mrb[0].mxu0
        %v955 = vpop.f32.mrb[0].mxu0
        %v956 = vadd.f32 0.0, %v955
        %v957 = vpop.f32.mrb[0].mxu0
        %958 = vdwg.mxu0
        %v959 = vmul.f32 %v953, 0.35355338
        %v960 = vmul.f32 %v956, 0.35355338
        %v961 = vsel %vm837, %v959, -inf
        %962 = vmax.xlane.f32.xlu0 %v961
        %v963 = vpop.xlane.xlu0 %962
        %v964 = vsel %vm837, %v960, -inf
        %965 = vmax.xlane.f32.xlu0 %v964
        %v966 = vpop.xlane.xlu0 %965
        %v967 = vsub.f32 %v959, %v963
        %v968 = vsub.f32 %v960, %v966
        %v969 = vmul.f32 %v967, 1.442695
        %v970 = vpow.pop %v969
        %v971 = vmul.f32 %v968, 1.442695
        %v972 = vpow.pop %v971
        %v973 = vsel %vm837, %v970, 0.0
        %974 = vadd.xlane.f32.xlu0 %v973
        %v975 = vpop.xlane.xlu0 %974
        %v976 = vsel %vm837, %v972, 0.0
        %977 = vadd.xlane.f32.xlu0 %v976
        %v978 = vpop.xlane.xlu0 %977
        %v979 = vrcp.pop %v975
        %v980 = vmul.f32 %v970, %v979
        %v981 = vrcp.pop %v978
        %v982 = vmul.f32 %v972, %v981
        %v983 = vpack.c.bf16 %v982, %v980
        %984 = vrot.lane.b32.xlu0 %v783, 56
        %v985 = vpop.permute.xlu0 %984
        %v988 = vsel %vm837, %v983, 0
        %990 = vmatprep.subr.bf16.mxu0 0
        %991 = vmatpush1.bf16.msra.mxu0 %v985
        %992 = vmatprep.subr.bf16.mxu0 0
        %993 = vmatpush1.bf16.msra.mxu0 0
        %994 = vmatprep.subr.bf16.mxu0 0
        %995 = vmatpush1.bf16.msra.mxu0 0
        %996 = vmatprep.subr.bf16.mxu0 0
        %997 = vmatpush1.bf16.msra.mxu0 0
        %998 = vmatprep.subr.bf16.mxu0 0
        %999 = vmatpush1.bf16.msra.mxu0 0
        %1000 = vmatprep.subr.bf16.mxu0 0
        %1001 = vmatpush1.bf16.msra.mxu0 0
        %1002 = vmatprep.subr.bf16.mxu0 0
        %1003 = vmatpush1.bf16.msra.mxu0 0
        %1004 = vmatprep.subr.bf16.mxu0 0
        %1005 = vmatpush1.bf16.msra.mxu0 0
        %1006 = vmatprep.subr.bf16.mxu0 0
        %1007 = vmatpush1.bf16.msra.mxu0 0
        %1008 = vmatprep.subr.bf16.mxu0 0
        %1009 = vmatpush1.bf16.msra.mxu0 0
        %1010 = vmatprep.subr.bf16.mxu0 0
        %1011 = vmatpush1.bf16.msra.mxu0 0
        %1012 = vmatprep.subr.bf16.mxu0 0
        %1013 = vmatpush1.bf16.msra.mxu0 0
        %1014 = vmatprep.subr.bf16.mxu0 0
        %1015 = vmatpush1.bf16.msra.mxu0 0
        %1016 = vmatprep.subr.bf16.mxu0 0
        %1017 = vmatpush1.bf16.msra.mxu0 0
        %1018 = vmatprep.subr.bf16.mxu0 0
        %1019 = vmatpush1.bf16.msra.mxu0 0
        %1020 = vmatprep.subr.bf16.mxu0 0
        %1021 = vmatpush1.bf16.msra.mxu0 0
        %1022 = vmatprep.mubr.bf16.mxu0 0
        %1023 = vmatmul.mubr.bf16.gmra.mrb[0].mxu0 %v988
        %v1024 = vpop.f32.mrb[0].mxu0
        %v1025 = vadd.f32 0.0, %v1024
        %v1026 = vpop.f32.mrb[0].mxu0
        %v1027 = vpop.f32.mrb[0].mxu0
        %v1028 = vadd.f32 0.0, %v1027
        %v1029 = vpop.f32.mrb[0].mxu0
        %1030 = vdwg.mxu0
        %1031 = vrot.lane.b32.xlu0 %v783, 112
        %v1032 = vpop.permute.xlu0 %1031
        %1033 = vrot.lane.b32.xlu0 %v783, 80
        %v1034 = vpop.permute.xlu0 %1033
        %v1036 = vsel %vm787, %v1032, 0
        %v1039 = vsel %vm787, %v1034, 0
        %1041 = vmatprep.subr.bf16.mxu0 0
        %1042 = vmatpush1.bf16.xpose.msra.mxu0 %v1039
        %1043 = vmatprep.subr.bf16.mxu0 0
        %1044 = vmatpush1.bf16.xpose.msra.mxu0 0
        %1045 = vmatprep.subr.bf16.mxu0 0
        %1046 = vmatpush1.bf16.xpose.msra.mxu0 0
        %1047 = vmatprep.subr.bf16.mxu0 0
        %1048 = vmatpush1.bf16.xpose.msra.mxu0 0
        %1049 = vmatprep.subr.bf16.mxu0 0
        %1050 = vmatpush1.bf16.xpose.msra.mxu0 0
        %1051 = vmatprep.subr.bf16.mxu0 0
        %1052 = vmatpush1.bf16.xpose.msra.mxu0 0
        %1053 = vmatprep.subr.bf16.mxu0 0
        %1054 = vmatpush1.bf16.xpose.msra.mxu0 0
        %1055 = vmatprep.subr.bf16.mxu0 0
        %1056 = vmatpush1.bf16.xpose.msra.mxu0 0
        %1057 = vmatprep.subr.bf16.mxu0 0
        %1058 = vmatpush1.bf16.xpose.msra.mxu0 0
        %1059 = vmatprep.subr.bf16.mxu0 0
        %1060 = vmatpush1.bf16.xpose.msra.mxu0 0
        %1061 = vmatprep.subr.bf16.mxu0 0
        %1062 = vmatpush1.bf16.xpose.msra.mxu0 0
        %1063 = vmatprep.subr.bf16.mxu0 0
        %1064 = vmatpush1.bf16.xpose.msra.mxu0 0
        %1065 = vmatprep.subr.bf16.mxu0 0
        %1066 = vmatpush1.bf16.xpose.msra.mxu0 0
        %1067 = vmatprep.subr.bf16.mxu0 0
        %1068 = vmatpush1.bf16.xpose.msra.mxu0 0
        %1069 = vmatprep.subr.bf16.mxu0 0
        %1070 = vmatpush1.bf16.xpose.msra.mxu0 0
        %1071 = vmatprep.subr.bf16.mxu0 0
        %1072 = vmatpush1.bf16.xpose.msra.mxu0 0
        %1073 = vmatprep.mubr.bf16.mxu0 0
        %1074 = vmatmul.mubr.bf16.gmra.mrb[0].mxu0 %v1036
        %v1075 = vpop.f32.mrb[0].mxu0
        %v1076 = vadd.f32 0.0, %v1075
        %v1077 = vpop.f32.mrb[0].mxu0
        %v1078 = vpop.f32.mrb[0].mxu0
        %v1079 = vadd.f32 0.0, %v1078
        %v1080 = vpop.f32.mrb[0].mxu0
        %1081 = vdwg.mxu0
        %v1082 = vmul.f32 %v1076, 0.35355338
        %v1083 = vmul.f32 %v1079, 0.35355338
        %v1084 = vsel %vm837, %v1082, -inf
        %1085 = vmax.xlane.f32.xlu0 %v1084
        %v1086 = vpop.xlane.xlu0 %1085
        %v1087 = vsel %vm837, %v1083, -inf
        %1088 = vmax.xlane.f32.xlu0 %v1087
        %v1089 = vpop.xlane.xlu0 %1088
        %v1090 = vsub.f32 %v1082, %v1086
        %v1091 = vsub.f32 %v1083, %v1089
        %v1092 = vmul.f32 %v1090, 1.442695
        %v1093 = vpow.pop %v1092
        %v1094 = vmul.f32 %v1091, 1.442695
        %v1095 = vpow.pop %v1094
        %v1096 = vsel %vm837, %v1093, 0.0
        %1097 = vadd.xlane.f32.xlu0 %v1096
        %v1098 = vpop.xlane.xlu0 %1097
        %v1099 = vsel %vm837, %v1095, 0.0
        %1100 = vadd.xlane.f32.xlu0 %v1099
        %v1101 = vpop.xlane.xlu0 %1100
        %v1102 = vrcp.pop %v1098
        %v1103 = vmul.f32 %v1093, %v1102
        %v1104 = vrcp.pop %v1101
        %v1105 = vmul.f32 %v1095, %v1104
        %v1106 = vpack.c.bf16 %v1105, %v1103
        %1107 = vrot.lane.b32.xlu0 %v783, 48
        %v1108 = vpop.permute.xlu0 %1107
        %v1111 = vsel %vm837, %v1106, 0
        %1113 = vmatprep.subr.bf16.mxu0 0
        %1114 = vmatpush1.bf16.msra.mxu0 %v1108
        %1115 = vmatprep.subr.bf16.mxu0 0
        %1116 = vmatpush1.bf16.msra.mxu0 0
        %1117 = vmatprep.subr.bf16.mxu0 0
        %1118 = vmatpush1.bf16.msra.mxu0 0
        %1119 = vmatprep.subr.bf16.mxu0 0
        %1120 = vmatpush1.bf16.msra.mxu0 0
        %1121 = vmatprep.subr.bf16.mxu0 0
        %1122 = vmatpush1.bf16.msra.mxu0 0
        %1123 = vmatprep.subr.bf16.mxu0 0
        %1124 = vmatpush1.bf16.msra.mxu0 0
        %1125 = vmatprep.subr.bf16.mxu0 0
        %1126 = vmatpush1.bf16.msra.mxu0 0
        %1127 = vmatprep.subr.bf16.mxu0 0
        %1128 = vmatpush1.bf16.msra.mxu0 0
        %1129 = vmatprep.subr.bf16.mxu0 0
        %1130 = vmatpush1.bf16.msra.mxu0 0
        %1131 = vmatprep.subr.bf16.mxu0 0
        %1132 = vmatpush1.bf16.msra.mxu0 0
        %1133 = vmatprep.subr.bf16.mxu0 0
        %1134 = vmatpush1.bf16.msra.mxu0 0
        %1135 = vmatprep.subr.bf16.mxu0 0
        %1136 = vmatpush1.bf16.msra.mxu0 0
        %1137 = vmatprep.subr.bf16.mxu0 0
        %1138 = vmatpush1.bf16.msra.mxu0 0
        %1139 = vmatprep.subr.bf16.mxu0 0
        %1140 = vmatpush1.bf16.msra.mxu0 0
        %1141 = vmatprep.subr.bf16.mxu0 0
        %1142 = vmatpush1.bf16.msra.mxu0 0
        %1143 = vmatprep.subr.bf16.mxu0 0
        %1144 = vmatpush1.bf16.msra.mxu0 0
        %1145 = vmatprep.mubr.bf16.mxu0 0
        %1146 = vmatmul.mubr.bf16.gmra.mrb[0].mxu0 %v1111
        %v1147 = vpop.f32.mrb[0].mxu0
        %v1148 = vadd.f32 0.0, %v1147
        %v1149 = vpop.f32.mrb[0].mxu0
        %v1150 = vpop.f32.mrb[0].mxu0
        %v1151 = vadd.f32 0.0, %v1150
        %v1152 = vpop.f32.mrb[0].mxu0
        %1153 = vdwg.mxu0
        %1154 = vrot.lane.b32.xlu0 %v783, 104
        %v1155 = vpop.permute.xlu0 %1154
        %1156 = vrot.lane.b32.xlu0 %v783, 72
        %v1157 = vpop.permute.xlu0 %1156
        %v1159 = vsel %vm787, %v1155, 0
        %v1162 = vsel %vm787, %v1157, 0
        %1164 = vmatprep.subr.bf16.mxu0 0
        %1165 = vmatpush1.bf16.xpose.msra.mxu0 %v1162
        %1166 = vmatprep.subr.bf16.mxu0 0
        %1167 = vmatpush1.bf16.xpose.msra.mxu0 0
        %1168 = vmatprep.subr.bf16.mxu0 0
        %1169 = vmatpush1.bf16.xpose.msra.mxu0 0
        %1170 = vmatprep.subr.bf16.mxu0 0
        %1171 = vmatpush1.bf16.xpose.msra.mxu0 0
        %1172 = vmatprep.subr.bf16.mxu0 0
        %1173 = vmatpush1.bf16.xpose.msra.mxu0 0
        %1174 = vmatprep.subr.bf16.mxu0 0
        %1175 = vmatpush1.bf16.xpose.msra.mxu0 0
        %1176 = vmatprep.subr.bf16.mxu0 0
        %1177 = vmatpush1.bf16.xpose.msra.mxu0 0
        %1178 = vmatprep.subr.bf16.mxu0 0
        %1179 = vmatpush1.bf16.xpose.msra.mxu0 0
        %1180 = vmatprep.subr.bf16.mxu0 0
        %1181 = vmatpush1.bf16.xpose.msra.mxu0 0
        %1182 = vmatprep.subr.bf16.mxu0 0
        %1183 = vmatpush1.bf16.xpose.msra.mxu0 0
        %1184 = vmatprep.subr.bf16.mxu0 0
        %1185 = vmatpush1.bf16.xpose.msra.mxu0 0
        %1186 = vmatprep.subr.bf16.mxu0 0
        %1187 = vmatpush1.bf16.xpose.msra.mxu0 0
        %1188 = vmatprep.subr.bf16.mxu0 0
        %1189 = vmatpush1.bf16.xpose.msra.mxu0 0
        %1190 = vmatprep.subr.bf16.mxu0 0
        %1191 = vmatpush1.bf16.xpose.msra.mxu0 0
        %1192 = vmatprep.subr.bf16.mxu0 0
        %1193 = vmatpush1.bf16.xpose.msra.mxu0 0
        %1194 = vmatprep.subr.bf16.mxu0 0
        %1195 = vmatpush1.bf16.xpose.msra.mxu0 0
        %1196 = vmatprep.mubr.bf16.mxu0 0
        %1197 = vmatmul.mubr.bf16.gmra.mrb[0].mxu0 %v1159
        %v1198 = vpop.f32.mrb[0].mxu0
        %v1199 = vadd.f32 0.0, %v1198
        %v1200 = vpop.f32.mrb[0].mxu0
        %v1201 = vpop.f32.mrb[0].mxu0
        %v1202 = vadd.f32 0.0, %v1201
        %v1203 = vpop.f32.mrb[0].mxu0
        %1204 = vdwg.mxu0
        %v1205 = vmul.f32 %v1199, 0.35355338
        %v1206 = vmul.f32 %v1202, 0.35355338
        %v1207 = vsel %vm837, %v1205, -inf
        %1208 = vmax.xlane.f32.xlu0 %v1207
        %v1209 = vpop.xlane.xlu0 %1208
        %v1210 = vsel %vm837, %v1206, -inf
        %1211 = vmax.xlane.f32.xlu0 %v1210
        %v1212 = vpop.xlane.xlu0 %1211
        %v1213 = vsub.f32 %v1205, %v1209
        %v1214 = vsub.f32 %v1206, %v1212
        %v1215 = vmul.f32 %v1213, 1.442695
        %v1216 = vpow.pop %v1215
        %v1217 = vmul.f32 %v1214, 1.442695
        %v1218 = vpow.pop %v1217
        %v1219 = vsel %vm837, %v1216, 0.0
        %1220 = vadd.xlane.f32.xlu0 %v1219
        %v1221 = vpop.xlane.xlu0 %1220
        %v1222 = vsel %vm837, %v1218, 0.0
        %1223 = vadd.xlane.f32.xlu0 %v1222
        %v1224 = vpop.xlane.xlu0 %1223
        %v1225 = vrcp.pop %v1221
        %v1226 = vmul.f32 %v1216, %v1225
        %v1227 = vrcp.pop %v1224
        %v1228 = vmul.f32 %v1218, %v1227
        %v1229 = vpack.c.bf16 %v1228, %v1226
        %1230 = vrot.lane.b32.xlu0 %v783, 40
        %v1231 = vpop.permute.xlu0 %1230
        %v1234 = vsel %vm837, %v1229, 0
        %1236 = vmatprep.subr.bf16.mxu0 0
        %1237 = vmatpush1.bf16.msra.mxu0 %v1231
        %1238 = vmatprep.subr.bf16.mxu0 0
        %1239 = vmatpush1.bf16.msra.mxu0 0
        %1240 = vmatprep.subr.bf16.mxu0 0
        %1241 = vmatpush1.bf16.msra.mxu0 0
        %1242 = vmatprep.subr.bf16.mxu0 0
        %1243 = vmatpush1.bf16.msra.mxu0 0
        %1244 = vmatprep.subr.bf16.mxu0 0
        %1245 = vmatpush1.bf16.msra.mxu0 0
        %1246 = vmatprep.subr.bf16.mxu0 0
        %1247 = vmatpush1.bf16.msra.mxu0 0
        %1248 = vmatprep.subr.bf16.mxu0 0
        %1249 = vmatpush1.bf16.msra.mxu0 0
        %1250 = vmatprep.subr.bf16.mxu0 0
        %1251 = vmatpush1.bf16.msra.mxu0 0
        %1252 = vmatprep.subr.bf16.mxu0 0
        %1253 = vmatpush1.bf16.msra.mxu0 0
        %1254 = vmatprep.subr.bf16.mxu0 0
        %1255 = vmatpush1.bf16.msra.mxu0 0
        %1256 = vmatprep.subr.bf16.mxu0 0
        %1257 = vmatpush1.bf16.msra.mxu0 0
        %1258 = vmatprep.subr.bf16.mxu0 0
        %1259 = vmatpush1.bf16.msra.mxu0 0
        %1260 = vmatprep.subr.bf16.mxu0 0
        %1261 = vmatpush1.bf16.msra.mxu0 0
        %1262 = vmatprep.subr.bf16.mxu0 0
        %1263 = vmatpush1.bf16.msra.mxu0 0
        %1264 = vmatprep.subr.bf16.mxu0 0
        %1265 = vmatpush1.bf16.msra.mxu0 0
        %1266 = vmatprep.subr.bf16.mxu0 0
        %1267 = vmatpush1.bf16.msra.mxu0 0
        %1268 = vmatprep.mubr.bf16.mxu0 0
        %1269 = vmatmul.mubr.bf16.gmra.mrb[0].mxu0 %v1234
        %v1270 = vpop.f32.mrb[0].mxu0
        %v1271 = vadd.f32 0.0, %v1270
        %v1272 = vpop.f32.mrb[0].mxu0
        %v1273 = vpop.f32.mrb[0].mxu0
        %v1274 = vadd.f32 0.0, %v1273
        %v1275 = vpop.f32.mrb[0].mxu0
        %1276 = vdwg.mxu0
        %1279 = vrot.lane.b32.xlu0 %v1025, 8
        %v1280 = vpop.permute.xlu0 %1279
        %1281 = vrot.lane.b32.xlu0 %v1028, 8
        %v1282 = vpop.permute.xlu0 %1281
        %1287 = vrot.lane.b32.xlu0 %v1148, 16
        %v1288 = vpop.permute.xlu0 %1287
        %1289 = vrot.lane.b32.xlu0 %v1151, 16
        %v1290 = vpop.permute.xlu0 %1289
        %1295 = vrot.lane.b32.xlu0 %v1271, 24
        %v1296 = vpop.permute.xlu0 %1295
        %1297 = vrot.lane.b32.xlu0 %v1274, 24
        %v1298 = vpop.permute.xlu0 %1297
        %v1301 = vsel %vm787, %v902, %v1280
        %v1302 = vsel %vm787, %v905, %v1282
        %v1303 = vsel %vm837, %v1301, %v1288
        %v1304 = vsel %vm837, %v1302, %v1290
        %vm1305 = vcmask 195584
        %v1306 = vsel %vm1305, %v1303, %v1296
        %v1307 = vsel %vm1305, %v1304, %v1298
        %v1308 = vpack.c.bf16 %v1307, %v1306
        %v1309 = vld [vmem:[%s8] sm:$0xf]
        %v1310 = vld [vmem:[%s8 + $0x4] sm:$0xf]
        %v1311 = vld [vmem:[%s8 + $0x8] sm:$0xf]
        %v1312 = vld [vmem:[%s8 + $0xc] sm:$0xf]
        %v1313 = vld [vmem:[%s9] sm:$0x1]
        %v1315 = vlaneseq
        %v1316 = vshrl.u32 %v1315, 7
        %v1317 = vsub.s32 0, %v1316
        %v1318 = vrot.slane %v1313, %v1317
        %v1324 = vunpack.c.l.b16 %v1309
        %v1325 = vunpack.c.l.b16 %v1310
        %v1326 = vunpack.c.l.b16 %v1311
        %v1327 = vunpack.c.l.b16 %v1312
        %v1328 = vpack.c.b16 %v1325, %v1324
        %v1329 = vpack.c.b16 %v1327, %v1326
        %v1333 = vsel %vm671, %v1308, 0
        %1335 = vmatprep.subr.bf16.mxu0 0
        %1336 = vmatpush1.bf16.msra.mxu0 %v1328
        %1337 = vmatprep.subr.bf16.mxu0 0
        %1338 = vmatpush1.bf16.msra.mxu0 %v1329
        %1339 = vmatprep.subr.bf16.mxu0 0
        %1340 = vmatpush1.bf16.msra.mxu0 0
        %1341 = vmatprep.subr.bf16.mxu0 0
        %1342 = vmatpush1.bf16.msra.mxu0 0
        %1343 = vmatprep.subr.bf16.mxu0 0
        %1344 = vmatpush1.bf16.msra.mxu0 0
        %1345 = vmatprep.subr.bf16.mxu0 0
        %1346 = vmatpush1.bf16.msra.mxu0 0
        %1347 = vmatprep.subr.bf16.mxu0 0
        %1348 = vmatpush1.bf16.msra.mxu0 0
        %1349 = vmatprep.subr.bf16.mxu0 0
        %1350 = vmatpush1.bf16.msra.mxu0 0
        %1351 = vmatprep.subr.bf16.mxu0 0
        %1352 = vmatpush1.bf16.msra.mxu0 0
        %1353 = vmatprep.subr.bf16.mxu0 0
        %1354 = vmatpush1.bf16.msra.mxu0 0
        %1355 = vmatprep.subr.bf16.mxu0 0
        %1356 = vmatpush1.bf16.msra.mxu0 0
        %1357 = vmatprep.subr.bf16.mxu0 0
        %1358 = vmatpush1.bf16.msra.mxu0 0
        %1359 = vmatprep.subr.bf16.mxu0 0
        %1360 = vmatpush1.bf16.msra.mxu0 0
        %1361 = vmatprep.subr.bf16.mxu0 0
        %1362 = vmatpush1.bf16.msra.mxu0 0
        %1363 = vmatprep.subr.bf16.mxu0 0
        %1364 = vmatpush1.bf16.msra.mxu0 0
        %1365 = vmatprep.subr.bf16.mxu0 0
        %1366 = vmatpush1.bf16.msra.mxu0 0
        %1367 = vmatprep.mubr.bf16.mxu0 0
        %1368 = vmatmul.mubr.bf16.gmra.mrb[0].mxu0 %v1333
        %v1369 = vpop.f32.mrb[0].mxu0
        %v1370 = vadd.f32 %v1318, %v1369
        %v1371 = vpop.f32.mrb[0].mxu0
        %v1372 = vpop.f32.mrb[0].mxu0
        %v1373 = vadd.f32 %v1318, %v1372
        %v1374 = vpop.f32.mrb[0].mxu0
        %1375 = vdwg.mxu0
        %v1376 = vadd.f32 %v667, %v1370
        %v1377 = vadd.f32 %v668, %v1373
        %v1378 = vld [vmem:[%s10] sm:$0x1]
        %v1379 = vld [vmem:[%s11] sm:$0x1]
        %v1380 = vsel %vm671, %v1376, 0.0
        %1381 = vadd.xlane.f32.xlu0 %v1380
        %v1382 = vpop.xlane.xlu0 %1381
        %v1383 = vsel %vm671, %v1377, 0.0
        %1384 = vadd.xlane.f32.xlu0 %v1383
        %v1385 = vpop.xlane.xlu0 %1384
        %v1386 = vmul.f32 %v1382, %v678
        %v1387 = vmul.f32 %v1385, %v678
        %v1388 = vsub.f32 %v1376, %v1386
        %v1389 = vsub.f32 %v1377, %v1387
        %v1390 = vmul.f32 %v1388, %v1388
        %v1391 = vmul.f32 %v1389, %v1389
        %v1392 = vsel %vm671, %v1390, 0.0
        %1393 = vadd.xlane.f32.xlu0 %v1392
        %v1394 = vpop.xlane.xlu0 %1393
        %v1395 = vsel %vm671, %v1391, 0.0
        %1396 = vadd.xlane.f32.xlu0 %v1395
        %v1397 = vpop.xlane.xlu0 %1396
        %v1398 = vmul.f32 %v1394, %v678
        %v1399 = vmul.f32 %v1397, %v678
        %v1400 = vadd.f32 %v1398, 1e-05
        %v1401 = vadd.f32 %v1399, 1e-05
        %v1402 = vrsqrt.pop %v1400
        %v1403 = vrsqrt.pop %v1401
        %v1404 = vmul.f32 %v1388, %v1402
        %v1405 = vmul.f32 %v1389, %v1403
        %v1407 = vlaneseq
        %v1408 = vshrl.u32 %v1407, 7
        %v1409 = vsub.s32 0, %v1408
        %v1410 = vrot.slane %v1378, %v1409
        %v1412 = vmul.f32 %v1404, %v1410
        %v1413 = vmul.f32 %v1405, %v1410
        %v1415 = vlaneseq
        %v1416 = vshrl.u32 %v1415, 7
        %v1417 = vsub.s32 0, %v1416
        %v1418 = vrot.slane %v1379, %v1417
        %v1420 = vadd.f32 %v1412, %v1418
        %v1421 = vadd.f32 %v1413, %v1418
        %v1422 = vpack.c.bf16 %v1421, %v1420
        %v1423 = vld [vmem:[%s12] sm:$0xf]
        %v1424 = vld [vmem:[%s12 + $0x4] sm:$0xf]
        %v1425 = vld [vmem:[%s12 + $0x8] sm:$0xf]
        %v1426 = vld [vmem:[%s12 + $0xc] sm:$0xf]
        %v1427 = vld [vmem:[%s13] sm:$0x1]
        %v1429 = vlaneseq
        %v1430 = vshrl.u32 %v1429, 7
        %v1431 = vsub.s32 0, %v1430
        %v1432 = vrot.slane %v1427, %v1431
        %v1438 = vunpack.c.l.b16 %v1423
        %v1439 = vunpack.c.l.b16 %v1424
        %v1440 = vunpack.c.l.b16 %v1425
        %v1441 = vunpack.c.l.b16 %v1426
        %v1442 = vpack.c.b16 %v1439, %v1438
        %v1443 = vpack.c.b16 %v1441, %v1440
        %v1447 = vsel %vm671, %v1422, 0
        %1449 = vmatprep.subr.bf16.mxu0 0
        %1450 = vmatpush1.bf16.msra.mxu0 %v1442
        %1451 = vmatprep.subr.bf16.mxu0 0
        %1452 = vmatpush1.bf16.msra.mxu0 %v1443
        %1453 = vmatprep.subr.bf16.mxu0 0
        %1454 = vmatpush1.bf16.msra.mxu0 0
        %1455 = vmatprep.subr.bf16.mxu0 0
        %1456 = vmatpush1.bf16.msra.mxu0 0
        %1457 = vmatprep.subr.bf16.mxu0 0
        %1458 = vmatpush1.bf16.msra.mxu0 0
        %1459 = vmatprep.subr.bf16.mxu0 0
        %1460 = vmatpush1.bf16.msra.mxu0 0
        %1461 = vmatprep.subr.bf16.mxu0 0
        %1462 = vmatpush1.bf16.msra.mxu0 0
        %1463 = vmatprep.subr.bf16.mxu0 0
        %1464 = vmatpush1.bf16.msra.mxu0 0
        %1465 = vmatprep.subr.bf16.mxu0 0
        %1466 = vmatpush1.bf16.msra.mxu0 0
        %1467 = vmatprep.subr.bf16.mxu0 0
        %1468 = vmatpush1.bf16.msra.mxu0 0
        %1469 = vmatprep.subr.bf16.mxu0 0
        %1470 = vmatpush1.bf16.msra.mxu0 0
        %1471 = vmatprep.subr.bf16.mxu0 0
        %1472 = vmatpush1.bf16.msra.mxu0 0
        %1473 = vmatprep.subr.bf16.mxu0 0
        %1474 = vmatpush1.bf16.msra.mxu0 0
        %1475 = vmatprep.subr.bf16.mxu0 0
        %1476 = vmatpush1.bf16.msra.mxu0 0
        %1477 = vmatprep.subr.bf16.mxu0 0
        %1478 = vmatpush1.bf16.msra.mxu0 0
        %1479 = vmatprep.subr.bf16.mxu0 0
        %1480 = vmatpush1.bf16.msra.mxu0 0
        %1481 = vmatprep.mubr.bf16.mxu0 0
        %1482 = vmatmul.mubr.bf16.gmra.mrb[0].mxu0 %v1447
        %v1483 = vpop.f32.mrb[0].mxu0
        %v1484 = vadd.f32 %v1432, %v1483
        %v1485 = vpop.f32.mrb[0].mxu0
        %v1486 = vpop.f32.mrb[0].mxu0
        %v1487 = vadd.f32 %v1432, %v1486
        %v1488 = vpop.f32.mrb[0].mxu0
        %1489 = vdwg.mxu0
        %v1490 = vmul.f32 %v1484, 0.5
        %v1491 = vmul.f32 %v1487, 0.5
        %v1492 = vmul.f32 %v1484, 0.70710677
        %v1493 = vmul.f32 %v1487, 0.70710677
        %v1494 = vand.u32 2147483647, %v1492
        %v1495 = vand.u32 2147483647, %v1493
        %v1496 = vmul.f32 %v1494, 0.3275911
        %v1497 = vmul.f32 %v1495, 0.3275911
        %v1498 = vadd.f32 %v1496, 1.0
        %v1499 = vadd.f32 %v1497, 1.0
        %v1500 = vrcp.pop %v1498
        %v1501 = vmul.f32 1.0, %v1500
        %v1502 = vrcp.pop %v1499
        %v1503 = vmul.f32 1.0, %v1502
        %v1504 = vmul.f32 %v1501, 1.0614054
        %v1505 = vmul.f32 %v1503, 1.0614054
        %v1506 = vadd.f32 %v1504, -1.4531521
        %v1507 = vadd.f32 %v1505, -1.4531521
        %v1508 = vmul.f32 %v1506, %v1501
        %v1509 = vmul.f32 %v1507, %v1503
        %v1510 = vadd.f32 %v1508, 1.4214138
        %v1511 = vadd.f32 %v1509, 1.4214138
        %v1512 = vmul.f32 %v1510, %v1501
        %v1513 = vmul.f32 %v1511, %v1503
        %v1514 = vadd.f32 %v1512, -0.28449672
        %v1515 = vadd.f32 %v1513, -0.28449672
        %v1516 = vmul.f32 %v1514, %v1501
        %v1517 = vmul.f32 %v1515, %v1503
        %v1518 = vadd.f32 %v1516, 0.2548296
        %v1519 = vadd.f32 %v1517, 0.2548296
        %v1520 = vmul.f32 %v1518, %v1501
        %v1521 = vmul.f32 %v1519, %v1503
        %v1522 = vsub.f32 0.0, %v1494
        %v1523 = vsub.f32 0.0, %v1495
        %v1524 = vmul.f32 %v1522, %v1494
        %v1525 = vmul.f32 %v1523, %v1495
        %v1526 = vmul.f32 %v1524, 1.442695
        %v1527 = vpow.pop %v1526
        %v1528 = vmul.f32 %v1525, 1.442695
        %v1529 = vpow.pop %v1528
        %v1530 = vmul.f32 %v1520, %v1527
        %v1531 = vmul.f32 %v1521, %v1529
        %v1532 = vsub.f32 1.0, %v1530
        %v1533 = vsub.f32 1.0, %v1531
        %vm1534 = vcmp.ge.f32.partialorder %v1492, 0.0
        %vm1535 = vcmp.ge.f32.partialorder %v1493, 0.0
        %v1536 = vsub.f32 0.0, %v1532
        %v1537 = vsub.f32 0.0, %v1533
        %v1538 = vsel %vm1534, %v1532, %v1536
        %v1539 = vsel %vm1535, %v1533, %v1537
        %v1540 = vadd.f32 %v1538, 1.0
        %v1541 = vadd.f32 %v1539, 1.0
        %v1542 = vmul.f32 %v1490, %v1540
        %v1543 = vmul.f32 %v1491, %v1541
        %v1544 = vpack.c.bf16 %v1543, %v1542
        %v1545 = vld [vmem:[%s14] sm:$0xf]
        %v1546 = vld [vmem:[%s14 + $0x4] sm:$0xf]
        %v1547 = vld [vmem:[%s14 + $0x8] sm:$0xf]
        %v1548 = vld [vmem:[%s14 + $0xc] sm:$0xf]
        %v1549 = vld [vmem:[%s14 + $0x10] sm:$0xf]
        %v1550 = vld [vmem:[%s14 + $0x14] sm:$0xf]
        %v1551 = vld [vmem:[%s14 + $0x18] sm:$0xf]
        %v1552 = vld [vmem:[%s14 + $0x1c] sm:$0xf]
        %v1553 = vld [vmem:[%s14 + $0x20] sm:$0xf]
        %v1554 = vld [vmem:[%s14 + $0x24] sm:$0xf]
        %v1555 = vld [vmem:[%s14 + $0x28] sm:$0xf]
        %v1556 = vld [vmem:[%s14 + $0x2c] sm:$0xf]
        %v1557 = vld [vmem:[%s14 + $0x30] sm:$0xf]
        %v1558 = vld [vmem:[%s14 + $0x34] sm:$0xf]
        %v1559 = vld [vmem:[%s14 + $0x38] sm:$0xf]
        %v1560 = vld [vmem:[%s14 + $0x3c] sm:$0xf]
        %v1561 = vld [vmem:[%s15] sm:$0x1]
        %v1563 = vlaneseq
        %v1564 = vshrl.u32 %v1563, 7
        %v1565 = vsub.s32 0, %v1564
        %v1566 = vrot.slane %v1561, %v1565
        %v1584 = vunpack.c.l.b16 %v1545
        %v1585 = vunpack.c.l.b16 %v1546
        %v1586 = vunpack.c.l.b16 %v1547
        %v1587 = vunpack.c.l.b16 %v1548
        %v1588 = vunpack.c.l.b16 %v1549
        %v1589 = vunpack.c.l.b16 %v1550
        %v1590 = vunpack.c.l.b16 %v1551
        %v1591 = vunpack.c.l.b16 %v1552
        %v1592 = vunpack.c.l.b16 %v1553
        %v1593 = vunpack.c.l.b16 %v1554
        %v1594 = vunpack.c.l.b16 %v1555
        %v1595 = vunpack.c.l.b16 %v1556
        %v1596 = vunpack.c.l.b16 %v1557
        %v1597 = vunpack.c.l.b16 %v1558
        %v1598 = vunpack.c.l.b16 %v1559
        %v1599 = vunpack.c.l.b16 %v1560
        %v1600 = vpack.c.b16 %v1585, %v1584
        %v1601 = vpack.c.b16 %v1587, %v1586
        %v1602 = vpack.c.b16 %v1589, %v1588
        %v1603 = vpack.c.b16 %v1591, %v1590
        %v1604 = vpack.c.b16 %v1593, %v1592
        %v1605 = vpack.c.b16 %v1595, %v1594
        %v1606 = vpack.c.b16 %v1597, %v1596
        %v1607 = vpack.c.b16 %v1599, %v1598
        %1616 = vmatprep.subr.bf16.mxu0 0
        %1617 = vmatpush1.bf16.msra.mxu0 %v1600
        %1618 = vmatprep.subr.bf16.mxu0 0
        %1619 = vmatpush1.bf16.msra.mxu0 %v1601
        %1620 = vmatprep.subr.bf16.mxu0 0
        %1621 = vmatpush1.bf16.msra.mxu0 %v1602
        %1622 = vmatprep.subr.bf16.mxu0 0
        %1623 = vmatpush1.bf16.msra.mxu0 %v1603
        %1624 = vmatprep.subr.bf16.mxu0 0
        %1625 = vmatpush1.bf16.msra.mxu0 %v1604
        %1626 = vmatprep.subr.bf16.mxu0 0
        %1627 = vmatpush1.bf16.msra.mxu0 %v1605
        %1628 = vmatprep.subr.bf16.mxu0 0
        %1629 = vmatpush1.bf16.msra.mxu0 %v1606
        %1630 = vmatprep.subr.bf16.mxu0 0
        %1631 = vmatpush1.bf16.msra.mxu0 %v1607
        %1632 = vmatprep.subr.bf16.mxu0 0
        %1633 = vmatpush1.bf16.msra.mxu0 0
        %1634 = vmatprep.subr.bf16.mxu0 0
        %1635 = vmatpush1.bf16.msra.mxu0 0
        %1636 = vmatprep.subr.bf16.mxu0 0
        %1637 = vmatpush1.bf16.msra.mxu0 0
        %1638 = vmatprep.subr.bf16.mxu0 0
        %1639 = vmatpush1.bf16.msra.mxu0 0
        %1640 = vmatprep.subr.bf16.mxu0 0
        %1641 = vmatpush1.bf16.msra.mxu0 0
        %1642 = vmatprep.subr.bf16.mxu0 0
        %1643 = vmatpush1.bf16.msra.mxu0 0
        %1644 = vmatprep.subr.bf16.mxu0 0
        %1645 = vmatpush1.bf16.msra.mxu0 0
        %1646 = vmatprep.subr.bf16.mxu0 0
        %1647 = vmatpush1.bf16.msra.mxu0 0
        %1648 = vmatprep.mubr.bf16.mxu0 0
        %1649 = vmatmul.mubr.bf16.gmra.mrb[0].mxu0 %v1544
        %v1650 = vpop.f32.mrb[0].mxu0
        %v1651 = vadd.f32 %v1566, %v1650
        %v1652 = vpop.f32.mrb[0].mxu0
        %v1653 = vpop.f32.mrb[0].mxu0
        %v1654 = vadd.f32 %v1566, %v1653
        %v1655 = vpop.f32.mrb[0].mxu0
        %1656 = vdwg.mxu0
        %v1657 = vadd.f32 %v1376, %v1651
        %v1658 = vadd.f32 %v1377, %v1654
        %s1659 = scalar_lea.vmem %s4, 1
        %v1660 = vld [vmem:[%s1659] sm:$0x1]
        %s1661 = scalar_lea.vmem %s5, 1
        %v1662 = vld [vmem:[%s1661] sm:$0x1]
        %v1663 = vsel %vm671, %v1657, 0.0
        %1664 = vadd.xlane.f32.xlu0 %v1663
        %v1665 = vpop.xlane.xlu0 %1664
        %v1666 = vsel %vm671, %v1658, 0.0
        %1667 = vadd.xlane.f32.xlu0 %v1666
        %v1668 = vpop.xlane.xlu0 %1667
        %v1669 = vmul.f32 %v1665, %v678
        %v1670 = vmul.f32 %v1668, %v678
        %v1671 = vsub.f32 %v1657, %v1669
        %v1672 = vsub.f32 %v1658, %v1670
        %v1673 = vmul.f32 %v1671, %v1671
        %v1674 = vmul.f32 %v1672, %v1672
        %v1675 = vsel %vm671, %v1673, 0.0
        %1676 = vadd.xlane.f32.xlu0 %v1675
        %v1677 = vpop.xlane.xlu0 %1676
        %v1678 = vsel %vm671, %v1674, 0.0
        %1679 = vadd.xlane.f32.xlu0 %v1678
        %v1680 = vpop.xlane.xlu0 %1679
        %v1681 = vmul.f32 %v1677, %v678
        %v1682 = vmul.f32 %v1680, %v678
        %v1683 = vadd.f32 %v1681, 1e-05
        %v1684 = vadd.f32 %v1682, 1e-05
        %v1685 = vrsqrt.pop %v1683
        %v1686 = vrsqrt.pop %v1684
        %v1687 = vmul.f32 %v1671, %v1685
        %v1688 = vmul.f32 %v1672, %v1686
        %v1690 = vlaneseq
        %v1691 = vshrl.u32 %v1690, 7
        %v1692 = vsub.s32 0, %v1691
        %v1693 = vrot.slane %v1660, %v1692
        %v1695 = vmul.f32 %v1687, %v1693
        %v1696 = vmul.f32 %v1688, %v1693
        %v1698 = vlaneseq
        %v1699 = vshrl.u32 %v1698, 7
        %v1700 = vsub.s32 0, %v1699
        %v1701 = vrot.slane %v1662, %v1700
        %v1703 = vadd.f32 %v1695, %v1701
        %v1704 = vadd.f32 %v1696, %v1701
        %v1705 = vpack.c.bf16 %v1704, %v1703
        %s1706 = scalar_lea.vmem %s6, 16
        %v1707 = vld [vmem:[%s1706] sm:$0xf]
        %v1708 = vld [vmem:[%s1706 + $0x4] sm:$0xf]
        %v1709 = vld [vmem:[%s1706 + $0x8] sm:$0xf]
        %v1710 = vld [vmem:[%s1706 + $0xc] sm:$0xf]
        %s1711 = scalar_lea.vmem %s7, 1
        %v1712 = vld [vmem:[%s1711] sm:$0x1]
        %v1714 = vlaneseq
        %v1715 = vshrl.u32 %v1714, 7
        %v1716 = vsub.s32 0, %v1715
        %v1717 = vrot.slane %v1712, %v1716
        %v1723 = vunpack.c.l.b16 %v1707
        %v1724 = vunpack.c.l.b16 %v1708
        %v1725 = vunpack.c.l.b16 %v1709
        %v1726 = vunpack.c.l.b16 %v1710
        %v1727 = vpack.c.b16 %v1724, %v1723
        %v1728 = vpack.c.b16 %v1726, %v1725
        %v1732 = vsel %vm671, %v1705, 0
        %1734 = vmatprep.subr.bf16.mxu0 0
        %1735 = vmatpush1.bf16.msra.mxu0 %v1727
        %1736 = vmatprep.subr.bf16.mxu0 0
        %1737 = vmatpush1.bf16.msra.mxu0 %v1728
        %1738 = vmatprep.subr.bf16.mxu0 0
        %1739 = vmatpush1.bf16.msra.mxu0 0
        %1740 = vmatprep.subr.bf16.mxu0 0
        %1741 = vmatpush1.bf16.msra.mxu0 0
        %1742 = vmatprep.subr.bf16.mxu0 0
        %1743 = vmatpush1.bf16.msra.mxu0 0
        %1744 = vmatprep.subr.bf16.mxu0 0
        %1745 = vmatpush1.bf16.msra.mxu0 0
        %1746 = vmatprep.subr.bf16.mxu0 0
        %1747 = vmatpush1.bf16.msra.mxu0 0
        %1748 = vmatprep.subr.bf16.mxu0 0
        %1749 = vmatpush1.bf16.msra.mxu0 0
        %1750 = vmatprep.subr.bf16.mxu0 0
        %1751 = vmatpush1.bf16.msra.mxu0 0
        %1752 = vmatprep.subr.bf16.mxu0 0
        %1753 = vmatpush1.bf16.msra.mxu0 0
        %1754 = vmatprep.subr.bf16.mxu0 0
        %1755 = vmatpush1.bf16.msra.mxu0 0
        %1756 = vmatprep.subr.bf16.mxu0 0
        %1757 = vmatpush1.bf16.msra.mxu0 0
        %1758 = vmatprep.subr.bf16.mxu0 0
        %1759 = vmatpush1.bf16.msra.mxu0 0
        %1760 = vmatprep.subr.bf16.mxu0 0
        %1761 = vmatpush1.bf16.msra.mxu0 0
        %1762 = vmatprep.subr.bf16.mxu0 0
        %1763 = vmatpush1.bf16.msra.mxu0 0
        %1764 = vmatprep.subr.bf16.mxu0 0
        %1765 = vmatpush1.bf16.msra.mxu0 0
        %1766 = vmatprep.mubr.bf16.mxu0 0
        %1767 = vmatmul.mubr.bf16.gmra.mrb[0].mxu0 %v1732
        %v1768 = vpop.f32.mrb[0].mxu0
        %v1769 = vadd.f32 %v1717, %v1768
        %v1770 = vpop.f32.mrb[0].mxu0
        %v1771 = vpop.f32.mrb[0].mxu0
        %v1772 = vadd.f32 %v1717, %v1771
        %v1773 = vpop.f32.mrb[0].mxu0
        %1774 = vdwg.mxu0
        %v1775 = vpack.c.bf16 %v1772, %v1769
        %1777 = vrot.lane.b32.xlu0 %v1775, 96
        %v1778 = vpop.permute.xlu0 %1777
        %v1780 = vsel %vm787, %v1775, 0
        %v1783 = vsel %vm787, %v1778, 0
        %1785 = vmatprep.subr.bf16.mxu0 0
        %1786 = vmatpush1.bf16.xpose.msra.mxu0 %v1783
        %1787 = vmatprep.subr.bf16.mxu0 0
        %1788 = vmatpush1.bf16.xpose.msra.mxu0 0
        %1789 = vmatprep.subr.bf16.mxu0 0
        %1790 = vmatpush1.bf16.xpose.msra.mxu0 0
        %1791 = vmatprep.subr.bf16.mxu0 0
        %1792 = vmatpush1.bf16.xpose.msra.mxu0 0
        %1793 = vmatprep.subr.bf16.mxu0 0
        %1794 = vmatpush1.bf16.xpose.msra.mxu0 0
        %1795 = vmatprep.subr.bf16.mxu0 0
        %1796 = vmatpush1.bf16.xpose.msra.mxu0 0
        %1797 = vmatprep.subr.bf16.mxu0 0
        %1798 = vmatpush1.bf16.xpose.msra.mxu0 0
        %1799 = vmatprep.subr.bf16.mxu0 0
        %1800 = vmatpush1.bf16.xpose.msra.mxu0 0
        %1801 = vmatprep.subr.bf16.mxu0 0
        %1802 = vmatpush1.bf16.xpose.msra.mxu0 0
        %1803 = vmatprep.subr.bf16.mxu0 0
        %1804 = vmatpush1.bf16.xpose.msra.mxu0 0
        %1805 = vmatprep.subr.bf16.mxu0 0
        %1806 = vmatpush1.bf16.xpose.msra.mxu0 0
        %1807 = vmatprep.subr.bf16.mxu0 0
        %1808 = vmatpush1.bf16.xpose.msra.mxu0 0
        %1809 = vmatprep.subr.bf16.mxu0 0
        %1810 = vmatpush1.bf16.xpose.msra.mxu0 0
        %1811 = vmatprep.subr.bf16.mxu0 0
        %1812 = vmatpush1.bf16.xpose.msra.mxu0 0
        %1813 = vmatprep.subr.bf16.mxu0 0
        %1814 = vmatpush1.bf16.xpose.msra.mxu0 0
        %1815 = vmatprep.subr.bf16.mxu0 0
        %1816 = vmatpush1.bf16.xpose.msra.mxu0 0
        %1817 = vmatprep.mubr.bf16.mxu0 0
        %1818 = vmatmul.mubr.bf16.gmra.mrb[0].mxu0 %v1780
        %v1819 = vpop.f32.mrb[0].mxu0
        %v1820 = vadd.f32 0.0, %v1819
        %v1821 = vpop.f32.mrb[0].mxu0
        %v1822 = vpop.f32.mrb[0].mxu0
        %v1823 = vadd.f32 0.0, %v1822
        %v1824 = vpop.f32.mrb[0].mxu0
        %1825 = vdwg.mxu0
        %v1826 = vmul.f32 %v1820, 0.35355338
        %v1827 = vmul.f32 %v1823, 0.35355338
        %v1828 = vsel %vm837, %v1826, -inf
        %1829 = vmax.xlane.f32.xlu0 %v1828
        %v1830 = vpop.xlane.xlu0 %1829
        %v1831 = vsel %vm837, %v1827, -inf
        %1832 = vmax.xlane.f32.xlu0 %v1831
        %v1833 = vpop.xlane.xlu0 %1832
        %v1834 = vsub.f32 %v1826, %v1830
        %v1835 = vsub.f32 %v1827, %v1833
        %v1836 = vmul.f32 %v1834, 1.442695
        %v1837 = vpow.pop %v1836
        %v1838 = vmul.f32 %v1835, 1.442695
        %v1839 = vpow.pop %v1838
        %v1840 = vsel %vm837, %v1837, 0.0
        %1841 = vadd.xlane.f32.xlu0 %v1840
        %v1842 = vpop.xlane.xlu0 %1841
        %v1843 = vsel %vm837, %v1839, 0.0
        %1844 = vadd.xlane.f32.xlu0 %v1843
        %v1845 = vpop.xlane.xlu0 %1844
        %v1846 = vrcp.pop %v1842
        %v1847 = vmul.f32 %v1837, %v1846
        %v1848 = vrcp.pop %v1845
        %v1849 = vmul.f32 %v1839, %v1848
        %v1850 = vpack.c.bf16 %v1849, %v1847
        %1851 = vrot.lane.b32.xlu0 %v1775, 64
        %v1852 = vpop.permute.xlu0 %1851
        %v1855 = vsel %vm837, %v1850, 0
        %1857 = vmatprep.subr.bf16.mxu0 0
        %1858 = vmatpush1.bf16.msra.mxu0 %v1852
        %1859 = vmatprep.subr.bf16.mxu0 0
        %1860 = vmatpush1.bf16.msra.mxu0 0
        %1861 = vmatprep.subr.bf16.mxu0 0
        %1862 = vmatpush1.bf16.msra.mxu0 0
        %1863 = vmatprep.subr.bf16.mxu0 0
        %1864 = vmatpush1.bf16.msra.mxu0 0
        %1865 = vmatprep.subr.bf16.mxu0 0
        %1866 = vmatpush1.bf16.msra.mxu0 0
        %1867 = vmatprep.subr.bf16.mxu0 0
        %1868 = vmatpush1.bf16.msra.mxu0 0
        %1869 = vmatprep.subr.bf16.mxu0 0
        %1870 = vmatpush1.bf16.msra.mxu0 0
        %1871 = vmatprep.subr.bf16.mxu0 0
        %1872 = vmatpush1.bf16.msra.mxu0 0
        %1873 = vmatprep.subr.bf16.mxu0 0
        %1874 = vmatpush1.bf16.msra.mxu0 0
        %1875 = vmatprep.subr.bf16.mxu0 0
        %1876 = vmatpush1.bf16.msra.mxu0 0
        %1877 = vmatprep.subr.bf16.mxu0 0
        %1878 = vmatpush1.bf16.msra.mxu0 0
        %1879 = vmatprep.subr.bf16.mxu0 0
        %1880 = vmatpush1.bf16.msra.mxu0 0
        %1881 = vmatprep.subr.bf16.mxu0 0
        %1882 = vmatpush1.bf16.msra.mxu0 0
        %1883 = vmatprep.subr.bf16.mxu0 0
        %1884 = vmatpush1.bf16.msra.mxu0 0
        %1885 = vmatprep.subr.bf16.mxu0 0
        %1886 = vmatpush1.bf16.msra.mxu0 0
        %1887 = vmatprep.subr.bf16.mxu0 0
        %1888 = vmatpush1.bf16.msra.mxu0 0
        %1889 = vmatprep.mubr.bf16.mxu0 0
        %1890 = vmatmul.mubr.bf16.gmra.mrb[0].mxu0 %v1855
        %v1891 = vpop.f32.mrb[0].mxu0
        %v1892 = vadd.f32 0.0, %v1891
        %v1893 = vpop.f32.mrb[0].mxu0
        %v1894 = vpop.f32.mrb[0].mxu0
        %v1895 = vadd.f32 0.0, %v1894
        %v1896 = vpop.f32.mrb[0].mxu0
        %1897 = vdwg.mxu0
        %1898 = vrot.lane.b32.xlu0 %v1775, 120
        %v1899 = vpop.permute.xlu0 %1898
        %1900 = vrot.lane.b32.xlu0 %v1775, 88
        %v1901 = vpop.permute.xlu0 %1900
        %v1903 = vsel %vm787, %v1899, 0
        %v1906 = vsel %vm787, %v1901, 0
        %1908 = vmatprep.subr.bf16.mxu0 0
        %1909 = vmatpush1.bf16.xpose.msra.mxu0 %v1906
        %1910 = vmatprep.subr.bf16.mxu0 0
        %1911 = vmatpush1.bf16.xpose.msra.mxu0 0
        %1912 = vmatprep.subr.bf16.mxu0 0
        %1913 = vmatpush1.bf16.xpose.msra.mxu0 0
        %1914 = vmatprep.subr.bf16.mxu0 0
        %1915 = vmatpush1.bf16.xpose.msra.mxu0 0
        %1916 = vmatprep.subr.bf16.mxu0 0
        %1917 = vmatpush1.bf16.xpose.msra.mxu0 0
        %1918 = vmatprep.subr.bf16.mxu0 0
        %1919 = vmatpush1.bf16.xpose.msra.mxu0 0
        %1920 = vmatprep.subr.bf16.mxu0 0
        %1921 = vmatpush1.bf16.xpose.msra.mxu0 0
        %1922 = vmatprep.subr.bf16.mxu0 0
        %1923 = vmatpush1.bf16.xpose.msra.mxu0 0
        %1924 = vmatprep.subr.bf16.mxu0 0
        %1925 = vmatpush1.bf16.xpose.msra.mxu0 0
        %1926 = vmatprep.subr.bf16.mxu0 0
        %1927 = vmatpush1.bf16.xpose.msra.mxu0 0
        %1928 = vmatprep.subr.bf16.mxu0 0
        %1929 = vmatpush1.bf16.xpose.msra.mxu0 0
        %1930 = vmatprep.subr.bf16.mxu0 0
        %1931 = vmatpush1.bf16.xpose.msra.mxu0 0
        %1932 = vmatprep.subr.bf16.mxu0 0
        %1933 = vmatpush1.bf16.xpose.msra.mxu0 0
        %1934 = vmatprep.subr.bf16.mxu0 0
        %1935 = vmatpush1.bf16.xpose.msra.mxu0 0
        %1936 = vmatprep.subr.bf16.mxu0 0
        %1937 = vmatpush1.bf16.xpose.msra.mxu0 0
        %1938 = vmatprep.subr.bf16.mxu0 0
        %1939 = vmatpush1.bf16.xpose.msra.mxu0 0
        %1940 = vmatprep.mubr.bf16.mxu0 0
        %1941 = vmatmul.mubr.bf16.gmra.mrb[0].mxu0 %v1903
        %v1942 = vpop.f32.mrb[0].mxu0
        %v1943 = vadd.f32 0.0, %v1942
        %v1944 = vpop.f32.mrb[0].mxu0
        %v1945 = vpop.f32.mrb[0].mxu0
        %v1946 = vadd.f32 0.0, %v1945
        %v1947 = vpop.f32.mrb[0].mxu0
        %1948 = vdwg.mxu0
        %v1949 = vmul.f32 %v1943, 0.35355338
        %v1950 = vmul.f32 %v1946, 0.35355338
        %v1951 = vsel %vm837, %v1949, -inf
        %1952 = vmax.xlane.f32.xlu0 %v1951
        %v1953 = vpop.xlane.xlu0 %1952
        %v1954 = vsel %vm837, %v1950, -inf
        %1955 = vmax.xlane.f32.xlu0 %v1954
        %v1956 = vpop.xlane.xlu0 %1955
        %v1957 = vsub.f32 %v1949, %v1953
        %v1958 = vsub.f32 %v1950, %v1956
        %v1959 = vmul.f32 %v1957, 1.442695
        %v1960 = vpow.pop %v1959
        %v1961 = vmul.f32 %v1958, 1.442695
        %v1962 = vpow.pop %v1961
        %v1963 = vsel %vm837, %v1960, 0.0
        %1964 = vadd.xlane.f32.xlu0 %v1963
        %v1965 = vpop.xlane.xlu0 %1964
        %v1966 = vsel %vm837, %v1962, 0.0
        %1967 = vadd.xlane.f32.xlu0 %v1966
        %v1968 = vpop.xlane.xlu0 %1967
        %v1969 = vrcp.pop %v1965
        %v1970 = vmul.f32 %v1960, %v1969
        %v1971 = vrcp.pop %v1968
        %v1972 = vmul.f32 %v1962, %v1971
        %v1973 = vpack.c.bf16 %v1972, %v1970
        %1974 = vrot.lane.b32.xlu0 %v1775, 56
        %v1975 = vpop.permute.xlu0 %1974
        %v1978 = vsel %vm837, %v1973, 0
        %1980 = vmatprep.subr.bf16.mxu0 0
        %1981 = vmatpush1.bf16.msra.mxu0 %v1975
        %1982 = vmatprep.subr.bf16.mxu0 0
        %1983 = vmatpush1.bf16.msra.mxu0 0
        %1984 = vmatprep.subr.bf16.mxu0 0
        %1985 = vmatpush1.bf16.msra.mxu0 0
        %1986 = vmatprep.subr.bf16.mxu0 0
        %1987 = vmatpush1.bf16.msra.mxu0 0
        %1988 = vmatprep.subr.bf16.mxu0 0
        %1989 = vmatpush1.bf16.msra.mxu0 0
        %1990 = vmatprep.subr.bf16.mxu0 0
        %1991 = vmatpush1.bf16.msra.mxu0 0
        %1992 = vmatprep.subr.bf16.mxu0 0
        %1993 = vmatpush1.bf16.msra.mxu0 0
        %1994 = vmatprep.subr.bf16.mxu0 0
        %1995 = vmatpush1.bf16.msra.mxu0 0
        %1996 = vmatprep.subr.bf16.mxu0 0
        %1997 = vmatpush1.bf16.msra.mxu0 0
        %1998 = vmatprep.subr.bf16.mxu0 0
        %1999 = vmatpush1.bf16.msra.mxu0 0
        %2000 = vmatprep.subr.bf16.mxu0 0
        %2001 = vmatpush1.bf16.msra.mxu0 0
        %2002 = vmatprep.subr.bf16.mxu0 0
        %2003 = vmatpush1.bf16.msra.mxu0 0
        %2004 = vmatprep.subr.bf16.mxu0 0
        %2005 = vmatpush1.bf16.msra.mxu0 0
        %2006 = vmatprep.subr.bf16.mxu0 0
        %2007 = vmatpush1.bf16.msra.mxu0 0
        %2008 = vmatprep.subr.bf16.mxu0 0
        %2009 = vmatpush1.bf16.msra.mxu0 0
        %2010 = vmatprep.subr.bf16.mxu0 0
        %2011 = vmatpush1.bf16.msra.mxu0 0
        %2012 = vmatprep.mubr.bf16.mxu0 0
        %2013 = vmatmul.mubr.bf16.gmra.mrb[0].mxu0 %v1978
        %v2014 = vpop.f32.mrb[0].mxu0
        %v2015 = vadd.f32 0.0, %v2014
        %v2016 = vpop.f32.mrb[0].mxu0
        %v2017 = vpop.f32.mrb[0].mxu0
        %v2018 = vadd.f32 0.0, %v2017
        %v2019 = vpop.f32.mrb[0].mxu0
        %2020 = vdwg.mxu0
        %2021 = vrot.lane.b32.xlu0 %v1775, 112
        %v2022 = vpop.permute.xlu0 %2021
        %2023 = vrot.lane.b32.xlu0 %v1775, 80
        %v2024 = vpop.permute.xlu0 %2023
        %v2026 = vsel %vm787, %v2022, 0
        %v2029 = vsel %vm787, %v2024, 0
        %2031 = vmatprep.subr.bf16.mxu0 0
        %2032 = vmatpush1.bf16.xpose.msra.mxu0 %v2029
        %2033 = vmatprep.subr.bf16.mxu0 0
        %2034 = vmatpush1.bf16.xpose.msra.mxu0 0
        %2035 = vmatprep.subr.bf16.mxu0 0
        %2036 = vmatpush1.bf16.xpose.msra.mxu0 0
        %2037 = vmatprep.subr.bf16.mxu0 0
        %2038 = vmatpush1.bf16.xpose.msra.mxu0 0
        %2039 = vmatprep.subr.bf16.mxu0 0
        %2040 = vmatpush1.bf16.xpose.msra.mxu0 0
        %2041 = vmatprep.subr.bf16.mxu0 0
        %2042 = vmatpush1.bf16.xpose.msra.mxu0 0
        %2043 = vmatprep.subr.bf16.mxu0 0
        %2044 = vmatpush1.bf16.xpose.msra.mxu0 0
        %2045 = vmatprep.subr.bf16.mxu0 0
        %2046 = vmatpush1.bf16.xpose.msra.mxu0 0
        %2047 = vmatprep.subr.bf16.mxu0 0
        %2048 = vmatpush1.bf16.xpose.msra.mxu0 0
        %2049 = vmatprep.subr.bf16.mxu0 0
        %2050 = vmatpush1.bf16.xpose.msra.mxu0 0
        %2051 = vmatprep.subr.bf16.mxu0 0
        %2052 = vmatpush1.bf16.xpose.msra.mxu0 0
        %2053 = vmatprep.subr.bf16.mxu0 0
        %2054 = vmatpush1.bf16.xpose.msra.mxu0 0
        %2055 = vmatprep.subr.bf16.mxu0 0
        %2056 = vmatpush1.bf16.xpose.msra.mxu0 0
        %2057 = vmatprep.subr.bf16.mxu0 0
        %2058 = vmatpush1.bf16.xpose.msra.mxu0 0
        %2059 = vmatprep.subr.bf16.mxu0 0
        %2060 = vmatpush1.bf16.xpose.msra.mxu0 0
        %2061 = vmatprep.subr.bf16.mxu0 0
        %2062 = vmatpush1.bf16.xpose.msra.mxu0 0
        %2063 = vmatprep.mubr.bf16.mxu0 0
        %2064 = vmatmul.mubr.bf16.gmra.mrb[0].mxu0 %v2026
        %v2065 = vpop.f32.mrb[0].mxu0
        %v2066 = vadd.f32 0.0, %v2065
        %v2067 = vpop.f32.mrb[0].mxu0
        %v2068 = vpop.f32.mrb[0].mxu0
        %v2069 = vadd.f32 0.0, %v2068
        %v2070 = vpop.f32.mrb[0].mxu0
        %2071 = vdwg.mxu0
        %v2072 = vmul.f32 %v2066, 0.35355338
        %v2073 = vmul.f32 %v2069, 0.35355338
        %v2074 = vsel %vm837, %v2072, -inf
        %2075 = vmax.xlane.f32.xlu0 %v2074
        %v2076 = vpop.xlane.xlu0 %2075
        %v2077 = vsel %vm837, %v2073, -inf
        %2078 = vmax.xlane.f32.xlu0 %v2077
        %v2079 = vpop.xlane.xlu0 %2078
        %v2080 = vsub.f32 %v2072, %v2076
        %v2081 = vsub.f32 %v2073, %v2079
        %v2082 = vmul.f32 %v2080, 1.442695
        %v2083 = vpow.pop %v2082
        %v2084 = vmul.f32 %v2081, 1.442695
        %v2085 = vpow.pop %v2084
        %v2086 = vsel %vm837, %v2083, 0.0
        %2087 = vadd.xlane.f32.xlu0 %v2086
        %v2088 = vpop.xlane.xlu0 %2087
        %v2089 = vsel %vm837, %v2085, 0.0
        %2090 = vadd.xlane.f32.xlu0 %v2089
        %v2091 = vpop.xlane.xlu0 %2090
        %v2092 = vrcp.pop %v2088
        %v2093 = vmul.f32 %v2083, %v2092
        %v2094 = vrcp.pop %v2091
        %v2095 = vmul.f32 %v2085, %v2094
        %v2096 = vpack.c.bf16 %v2095, %v2093
        %2097 = vrot.lane.b32.xlu0 %v1775, 48
        %v2098 = vpop.permute.xlu0 %2097
        %v2101 = vsel %vm837, %v2096, 0
        %2103 = vmatprep.subr.bf16.mxu0 0
        %2104 = vmatpush1.bf16.msra.mxu0 %v2098
        %2105 = vmatprep.subr.bf16.mxu0 0
        %2106 = vmatpush1.bf16.msra.mxu0 0
        %2107 = vmatprep.subr.bf16.mxu0 0
        %2108 = vmatpush1.bf16.msra.mxu0 0
        %2109 = vmatprep.subr.bf16.mxu0 0
        %2110 = vmatpush1.bf16.msra.mxu0 0
        %2111 = vmatprep.subr.bf16.mxu0 0
        %2112 = vmatpush1.bf16.msra.mxu0 0
        %2113 = vmatprep.subr.bf16.mxu0 0
        %2114 = vmatpush1.bf16.msra.mxu0 0
        %2115 = vmatprep.subr.bf16.mxu0 0
        %2116 = vmatpush1.bf16.msra.mxu0 0
        %2117 = vmatprep.subr.bf16.mxu0 0
        %2118 = vmatpush1.bf16.msra.mxu0 0
        %2119 = vmatprep.subr.bf16.mxu0 0
        %2120 = vmatpush1.bf16.msra.mxu0 0
        %2121 = vmatprep.subr.bf16.mxu0 0
        %2122 = vmatpush1.bf16.msra.mxu0 0
        %2123 = vmatprep.subr.bf16.mxu0 0
        %2124 = vmatpush1.bf16.msra.mxu0 0
        %2125 = vmatprep.subr.bf16.mxu0 0
        %2126 = vmatpush1.bf16.msra.mxu0 0
        %2127 = vmatprep.subr.bf16.mxu0 0
        %2128 = vmatpush1.bf16.msra.mxu0 0
        %2129 = vmatprep.subr.bf16.mxu0 0
        %2130 = vmatpush1.bf16.msra.mxu0 0
        %2131 = vmatprep.subr.bf16.mxu0 0
        %2132 = vmatpush1.bf16.msra.mxu0 0
        %2133 = vmatprep.subr.bf16.mxu0 0
        %2134 = vmatpush1.bf16.msra.mxu0 0
        %2135 = vmatprep.mubr.bf16.mxu0 0
        %2136 = vmatmul.mubr.bf16.gmra.mrb[0].mxu0 %v2101
        %v2137 = vpop.f32.mrb[0].mxu0
        %v2138 = vadd.f32 0.0, %v2137
        %v2139 = vpop.f32.mrb[0].mxu0
        %v2140 = vpop.f32.mrb[0].mxu0
        %v2141 = vadd.f32 0.0, %v2140
        %v2142 = vpop.f32.mrb[0].mxu0
        %2143 = vdwg.mxu0
        %2144 = vrot.lane.b32.xlu0 %v1775, 104
        %v2145 = vpop.permute.xlu0 %2144
        %2146 = vrot.lane.b32.xlu0 %v1775, 72
        %v2147 = vpop.permute.xlu0 %2146
        %v2149 = vsel %vm787, %v2145, 0
        %v2152 = vsel %vm787, %v2147, 0
        %2154 = vmatprep.subr.bf16.mxu0 0
        %2155 = vmatpush1.bf16.xpose.msra.mxu0 %v2152
        %2156 = vmatprep.subr.bf16.mxu0 0
        %2157 = vmatpush1.bf16.xpose.msra.mxu0 0
        %2158 = vmatprep.subr.bf16.mxu0 0
        %2159 = vmatpush1.bf16.xpose.msra.mxu0 0
        %2160 = vmatprep.subr.bf16.mxu0 0
        %2161 = vmatpush1.bf16.xpose.msra.mxu0 0
        %2162 = vmatprep.subr.bf16.mxu0 0
        %2163 = vmatpush1.bf16.xpose.msra.mxu0 0
        %2164 = vmatprep.subr.bf16.mxu0 0
        %2165 = vmatpush1.bf16.xpose.msra.mxu0 0
        %2166 = vmatprep.subr.bf16.mxu0 0
        %2167 = vmatpush1.bf16.xpose.msra.mxu0 0
        %2168 = vmatprep.subr.bf16.mxu0 0
        %2169 = vmatpush1.bf16.xpose.msra.mxu0 0
        %2170 = vmatprep.subr.bf16.mxu0 0
        %2171 = vmatpush1.bf16.xpose.msra.mxu0 0
        %2172 = vmatprep.subr.bf16.mxu0 0
        %2173 = vmatpush1.bf16.xpose.msra.mxu0 0
        %2174 = vmatprep.subr.bf16.mxu0 0
        %2175 = vmatpush1.bf16.xpose.msra.mxu0 0
        %2176 = vmatprep.subr.bf16.mxu0 0
        %2177 = vmatpush1.bf16.xpose.msra.mxu0 0
        %2178 = vmatprep.subr.bf16.mxu0 0
        %2179 = vmatpush1.bf16.xpose.msra.mxu0 0
        %2180 = vmatprep.subr.bf16.mxu0 0
        %2181 = vmatpush1.bf16.xpose.msra.mxu0 0
        %2182 = vmatprep.subr.bf16.mxu0 0
        %2183 = vmatpush1.bf16.xpose.msra.mxu0 0
        %2184 = vmatprep.subr.bf16.mxu0 0
        %2185 = vmatpush1.bf16.xpose.msra.mxu0 0
        %2186 = vmatprep.mubr.bf16.mxu0 0
        %2187 = vmatmul.mubr.bf16.gmra.mrb[0].mxu0 %v2149
        %v2188 = vpop.f32.mrb[0].mxu0
        %v2189 = vadd.f32 0.0, %v2188
        %v2190 = vpop.f32.mrb[0].mxu0
        %v2191 = vpop.f32.mrb[0].mxu0
        %v2192 = vadd.f32 0.0, %v2191
        %v2193 = vpop.f32.mrb[0].mxu0
        %2194 = vdwg.mxu0
        %v2195 = vmul.f32 %v2189, 0.35355338
        %v2196 = vmul.f32 %v2192, 0.35355338
        %v2197 = vsel %vm837, %v2195, -inf
        %2198 = vmax.xlane.f32.xlu0 %v2197
        %v2199 = vpop.xlane.xlu0 %2198
        %v2200 = vsel %vm837, %v2196, -inf
        %2201 = vmax.xlane.f32.xlu0 %v2200
        %v2202 = vpop.xlane.xlu0 %2201
        %v2203 = vsub.f32 %v2195, %v2199
        %v2204 = vsub.f32 %v2196, %v2202
        %v2205 = vmul.f32 %v2203, 1.442695
        %v2206 = vpow.pop %v2205
        %v2207 = vmul.f32 %v2204, 1.442695
        %v2208 = vpow.pop %v2207
        %v2209 = vsel %vm837, %v2206, 0.0
        %2210 = vadd.xlane.f32.xlu0 %v2209
        %v2211 = vpop.xlane.xlu0 %2210
        %v2212 = vsel %vm837, %v2208, 0.0
        %2213 = vadd.xlane.f32.xlu0 %v2212
        %v2214 = vpop.xlane.xlu0 %2213
        %v2215 = vrcp.pop %v2211
        %v2216 = vmul.f32 %v2206, %v2215
        %v2217 = vrcp.pop %v2214
        %v2218 = vmul.f32 %v2208, %v2217
        %v2219 = vpack.c.bf16 %v2218, %v2216
        %2220 = vrot.lane.b32.xlu0 %v1775, 40
        %v2221 = vpop.permute.xlu0 %2220
        %v2224 = vsel %vm837, %v2219, 0
        %2226 = vmatprep.subr.bf16.mxu0 0
        %2227 = vmatpush1.bf16.msra.mxu0 %v2221
        %2228 = vmatprep.subr.bf16.mxu0 0
        %2229 = vmatpush1.bf16.msra.mxu0 0
        %2230 = vmatprep.subr.bf16.mxu0 0
        %2231 = vmatpush1.bf16.msra.mxu0 0
        %2232 = vmatprep.subr.bf16.mxu0 0
        %2233 = vmatpush1.bf16.msra.mxu0 0
        %2234 = vmatprep.subr.bf16.mxu0 0
        %2235 = vmatpush1.bf16.msra.mxu0 0
        %2236 = vmatprep.subr.bf16.mxu0 0
        %2237 = vmatpush1.bf16.msra.mxu0 0
        %2238 = vmatprep.subr.bf16.mxu0 0
        %2239 = vmatpush1.bf16.msra.mxu0 0
        %2240 = vmatprep.subr.bf16.mxu0 0
        %2241 = vmatpush1.bf16.msra.mxu0 0
        %2242 = vmatprep.subr.bf16.mxu0 0
        %2243 = vmatpush1.bf16.msra.mxu0 0
        %2244 = vmatprep.subr.bf16.mxu0 0
        %2245 = vmatpush1.bf16.msra.mxu0 0
        %2246 = vmatprep.subr.bf16.mxu0 0
        %2247 = vmatpush1.bf16.msra.mxu0 0
        %2248 = vmatprep.subr.bf16.mxu0 0
        %2249 = vmatpush1.bf16.msra.mxu0 0
        %2250 = vmatprep.subr.bf16.mxu0 0
        %2251 = vmatpush1.bf16.msra.mxu0 0
        %2252 = vmatprep.subr.bf16.mxu0 0
        %2253 = vmatpush1.bf16.msra.mxu0 0
        %2254 = vmatprep.subr.bf16.mxu0 0
        %2255 = vmatpush1.bf16.msra.mxu0 0
        %2256 = vmatprep.subr.bf16.mxu0 0
        %2257 = vmatpush1.bf16.msra.mxu0 0
        %2258 = vmatprep.mubr.bf16.mxu0 0
        %2259 = vmatmul.mubr.bf16.gmra.mrb[0].mxu0 %v2224
        %v2260 = vpop.f32.mrb[0].mxu0
        %v2261 = vadd.f32 0.0, %v2260
        %v2262 = vpop.f32.mrb[0].mxu0
        %v2263 = vpop.f32.mrb[0].mxu0
        %v2264 = vadd.f32 0.0, %v2263
        %v2265 = vpop.f32.mrb[0].mxu0
        %2266 = vdwg.mxu0
        %2269 = vrot.lane.b32.xlu0 %v2015, 8
        %v2270 = vpop.permute.xlu0 %2269
        %2271 = vrot.lane.b32.xlu0 %v2018, 8
        %v2272 = vpop.permute.xlu0 %2271
        %2277 = vrot.lane.b32.xlu0 %v2138, 16
        %v2278 = vpop.permute.xlu0 %2277
        %2279 = vrot.lane.b32.xlu0 %v2141, 16
        %v2280 = vpop.permute.xlu0 %2279
        %2285 = vrot.lane.b32.xlu0 %v2261, 24
        %v2286 = vpop.permute.xlu0 %2285
        %2287 = vrot.lane.b32.xlu0 %v2264, 24
        %v2288 = vpop.permute.xlu0 %2287
        %v2291 = vsel %vm787, %v1892, %v2270
        %v2292 = vsel %vm787, %v1895, %v2272
        %v2293 = vsel %vm837, %v2291, %v2278
        %v2294 = vsel %vm837, %v2292, %v2280
        %v2295 = vsel %vm1305, %v2293, %v2286
        %v2296 = vsel %vm1305, %v2294, %v2288
        %v2297 = vpack.c.bf16 %v2296, %v2295
        %s2298 = scalar_lea.vmem %s8, 16
        %v2299 = vld [vmem:[%s2298] sm:$0xf]
        %v2300 = vld [vmem:[%s2298 + $0x4] sm:$0xf]
        %v2301 = vld [vmem:[%s2298 + $0x8] sm:$0xf]
        %v2302 = vld [vmem:[%s2298 + $0xc] sm:$0xf]
        %s2303 = scalar_lea.vmem %s9, 1
        %v2304 = vld [vmem:[%s2303] sm:$0x1]
        %v2306 = vlaneseq
        %v2307 = vshrl.u32 %v2306, 7
        %v2308 = vsub.s32 0, %v2307
        %v2309 = vrot.slane %v2304, %v2308
        %v2315 = vunpack.c.l.b16 %v2299
        %v2316 = vunpack.c.l.b16 %v2300
        %v2317 = vunpack.c.l.b16 %v2301
        %v2318 = vunpack.c.l.b16 %v2302
        %v2319 = vpack.c.b16 %v2316, %v2315
        %v2320 = vpack.c.b16 %v2318, %v2317
        %v2324 = vsel %vm671, %v2297, 0
        %2326 = vmatprep.subr.bf16.mxu0 0
        %2327 = vmatpush1.bf16.msra.mxu0 %v2319
        %2328 = vmatprep.subr.bf16.mxu0 0
        %2329 = vmatpush1.bf16.msra.mxu0 %v2320
        %2330 = vmatprep.subr.bf16.mxu0 0
        %2331 = vmatpush1.bf16.msra.mxu0 0
        %2332 = vmatprep.subr.bf16.mxu0 0
        %2333 = vmatpush1.bf16.msra.mxu0 0
        %2334 = vmatprep.subr.bf16.mxu0 0
        %2335 = vmatpush1.bf16.msra.mxu0 0
        %2336 = vmatprep.subr.bf16.mxu0 0
        %2337 = vmatpush1.bf16.msra.mxu0 0
        %2338 = vmatprep.subr.bf16.mxu0 0
        %2339 = vmatpush1.bf16.msra.mxu0 0
        %2340 = vmatprep.subr.bf16.mxu0 0
        %2341 = vmatpush1.bf16.msra.mxu0 0
        %2342 = vmatprep.subr.bf16.mxu0 0
        %2343 = vmatpush1.bf16.msra.mxu0 0
        %2344 = vmatprep.subr.bf16.mxu0 0
        %2345 = vmatpush1.bf16.msra.mxu0 0
        %2346 = vmatprep.subr.bf16.mxu0 0
        %2347 = vmatpush1.bf16.msra.mxu0 0
        %2348 = vmatprep.subr.bf16.mxu0 0
        %2349 = vmatpush1.bf16.msra.mxu0 0
        %2350 = vmatprep.subr.bf16.mxu0 0
        %2351 = vmatpush1.bf16.msra.mxu0 0
        %2352 = vmatprep.subr.bf16.mxu0 0
        %2353 = vmatpush1.bf16.msra.mxu0 0
        %2354 = vmatprep.subr.bf16.mxu0 0
        %2355 = vmatpush1.bf16.msra.mxu0 0
        %2356 = vmatprep.subr.bf16.mxu0 0
        %2357 = vmatpush1.bf16.msra.mxu0 0
        %2358 = vmatprep.mubr.bf16.mxu0 0
        %2359 = vmatmul.mubr.bf16.gmra.mrb[0].mxu0 %v2324
        %v2360 = vpop.f32.mrb[0].mxu0
        %v2361 = vadd.f32 %v2309, %v2360
        %v2362 = vpop.f32.mrb[0].mxu0
        %v2363 = vpop.f32.mrb[0].mxu0
        %v2364 = vadd.f32 %v2309, %v2363
        %v2365 = vpop.f32.mrb[0].mxu0
        %2366 = vdwg.mxu0
        %v2367 = vadd.f32 %v1657, %v2361
        %v2368 = vadd.f32 %v1658, %v2364
        %s2369 = scalar_lea.vmem %s10, 1
        %v2370 = vld [vmem:[%s2369] sm:$0x1]
        %s2371 = scalar_lea.vmem %s11, 1
        %v2372 = vld [vmem:[%s2371] sm:$0x1]
        %v2373 = vsel %vm671, %v2367, 0.0
        %2374 = vadd.xlane.f32.xlu0 %v2373
        %v2375 = vpop.xlane.xlu0 %2374
        %v2376 = vsel %vm671, %v2368, 0.0
        %2377 = vadd.xlane.f32.xlu0 %v2376
        %v2378 = vpop.xlane.xlu0 %2377
        %v2379 = vmul.f32 %v2375, %v678
        %v2380 = vmul.f32 %v2378, %v678
        %v2381 = vsub.f32 %v2367, %v2379
        %v2382 = vsub.f32 %v2368, %v2380
        %v2383 = vmul.f32 %v2381, %v2381
        %v2384 = vmul.f32 %v2382, %v2382
        %v2385 = vsel %vm671, %v2383, 0.0
        %2386 = vadd.xlane.f32.xlu0 %v2385
        %v2387 = vpop.xlane.xlu0 %2386
        %v2388 = vsel %vm671, %v2384, 0.0
        %2389 = vadd.xlane.f32.xlu0 %v2388
        %v2390 = vpop.xlane.xlu0 %2389
        %v2391 = vmul.f32 %v2387, %v678
        %v2392 = vmul.f32 %v2390, %v678
        %v2393 = vadd.f32 %v2391, 1e-05
        %v2394 = vadd.f32 %v2392, 1e-05
        %v2395 = vrsqrt.pop %v2393
        %v2396 = vrsqrt.pop %v2394
        %v2397 = vmul.f32 %v2381, %v2395
        %v2398 = vmul.f32 %v2382, %v2396
        %v2400 = vlaneseq
        %v2401 = vshrl.u32 %v2400, 7
        %v2402 = vsub.s32 0, %v2401
        %v2403 = vrot.slane %v2370, %v2402
        %v2405 = vmul.f32 %v2397, %v2403
        %v2406 = vmul.f32 %v2398, %v2403
        %v2408 = vlaneseq
        %v2409 = vshrl.u32 %v2408, 7
        %v2410 = vsub.s32 0, %v2409
        %v2411 = vrot.slane %v2372, %v2410
        %v2413 = vadd.f32 %v2405, %v2411
        %v2414 = vadd.f32 %v2406, %v2411
        %v2415 = vpack.c.bf16 %v2414, %v2413
        %s2416 = scalar_lea.vmem %s12, 16
        %v2417 = vld [vmem:[%s2416] sm:$0xf]
        %v2418 = vld [vmem:[%s2416 + $0x4] sm:$0xf]
        %v2419 = vld [vmem:[%s2416 + $0x8] sm:$0xf]
        %v2420 = vld [vmem:[%s2416 + $0xc] sm:$0xf]
        %s2421 = scalar_lea.vmem %s13, 1
        %v2422 = vld [vmem:[%s2421] sm:$0x1]
        %v2424 = vlaneseq
        %v2425 = vshrl.u32 %v2424, 7
        %v2426 = vsub.s32 0, %v2425
        %v2427 = vrot.slane %v2422, %v2426
        %v2433 = vunpack.c.l.b16 %v2417
        %v2434 = vunpack.c.l.b16 %v2418
        %v2435 = vunpack.c.l.b16 %v2419
        %v2436 = vunpack.c.l.b16 %v2420
        %v2437 = vpack.c.b16 %v2434, %v2433
        %v2438 = vpack.c.b16 %v2436, %v2435
        %v2442 = vsel %vm671, %v2415, 0
        %2444 = vmatprep.subr.bf16.mxu0 0
        %2445 = vmatpush1.bf16.msra.mxu0 %v2437
        %2446 = vmatprep.subr.bf16.mxu0 0
        %2447 = vmatpush1.bf16.msra.mxu0 %v2438
        %2448 = vmatprep.subr.bf16.mxu0 0
        %2449 = vmatpush1.bf16.msra.mxu0 0
        %2450 = vmatprep.subr.bf16.mxu0 0
        %2451 = vmatpush1.bf16.msra.mxu0 0
        %2452 = vmatprep.subr.bf16.mxu0 0
        %2453 = vmatpush1.bf16.msra.mxu0 0
        %2454 = vmatprep.subr.bf16.mxu0 0
        %2455 = vmatpush1.bf16.msra.mxu0 0
        %2456 = vmatprep.subr.bf16.mxu0 0
        %2457 = vmatpush1.bf16.msra.mxu0 0
        %2458 = vmatprep.subr.bf16.mxu0 0
        %2459 = vmatpush1.bf16.msra.mxu0 0
        %2460 = vmatprep.subr.bf16.mxu0 0
        %2461 = vmatpush1.bf16.msra.mxu0 0
        %2462 = vmatprep.subr.bf16.mxu0 0
        %2463 = vmatpush1.bf16.msra.mxu0 0
        %2464 = vmatprep.subr.bf16.mxu0 0
        %2465 = vmatpush1.bf16.msra.mxu0 0
        %2466 = vmatprep.subr.bf16.mxu0 0
        %2467 = vmatpush1.bf16.msra.mxu0 0
        %2468 = vmatprep.subr.bf16.mxu0 0
        %2469 = vmatpush1.bf16.msra.mxu0 0
        %2470 = vmatprep.subr.bf16.mxu0 0
        %2471 = vmatpush1.bf16.msra.mxu0 0
        %2472 = vmatprep.subr.bf16.mxu0 0
        %2473 = vmatpush1.bf16.msra.mxu0 0
        %2474 = vmatprep.subr.bf16.mxu0 0
        %2475 = vmatpush1.bf16.msra.mxu0 0
        %2476 = vmatprep.mubr.bf16.mxu0 0
        %2477 = vmatmul.mubr.bf16.gmra.mrb[0].mxu0 %v2442
        %v2478 = vpop.f32.mrb[0].mxu0
        %v2479 = vadd.f32 %v2427, %v2478
        %v2480 = vpop.f32.mrb[0].mxu0
        %v2481 = vpop.f32.mrb[0].mxu0
        %v2482 = vadd.f32 %v2427, %v2481
        %v2483 = vpop.f32.mrb[0].mxu0
        %2484 = vdwg.mxu0
        %v2485 = vmul.f32 %v2479, 0.5
        %v2486 = vmul.f32 %v2482, 0.5
        %v2487 = vmul.f32 %v2479, 0.70710677
        %v2488 = vmul.f32 %v2482, 0.70710677
        %v2489 = vand.u32 2147483647, %v2487
        %v2490 = vand.u32 2147483647, %v2488
        %v2491 = vmul.f32 %v2489, 0.3275911
        %v2492 = vmul.f32 %v2490, 0.3275911
        %v2493 = vadd.f32 %v2491, 1.0
        %v2494 = vadd.f32 %v2492, 1.0
        %v2495 = vrcp.pop %v2493
        %v2496 = vmul.f32 1.0, %v2495
        %v2497 = vrcp.pop %v2494
        %v2498 = vmul.f32 1.0, %v2497
        %v2499 = vmul.f32 %v2496, 1.0614054
        %v2500 = vmul.f32 %v2498, 1.0614054
        %v2501 = vadd.f32 %v2499, -1.4531521
        %v2502 = vadd.f32 %v2500, -1.4531521
        %v2503 = vmul.f32 %v2501, %v2496
        %v2504 = vmul.f32 %v2502, %v2498
        %v2505 = vadd.f32 %v2503, 1.4214138
        %v2506 = vadd.f32 %v2504, 1.4214138
        %v2507 = vmul.f32 %v2505, %v2496
        %v2508 = vmul.f32 %v2506, %v2498
        %v2509 = vadd.f32 %v2507, -0.28449672
        %v2510 = vadd.f32 %v2508, -0.28449672
        %v2511 = vmul.f32 %v2509, %v2496
        %v2512 = vmul.f32 %v2510, %v2498
        %v2513 = vadd.f32 %v2511, 0.2548296
        %v2514 = vadd.f32 %v2512, 0.2548296
        %v2515 = vmul.f32 %v2513, %v2496
        %v2516 = vmul.f32 %v2514, %v2498
        %v2517 = vsub.f32 0.0, %v2489
        %v2518 = vsub.f32 0.0, %v2490
        %v2519 = vmul.f32 %v2517, %v2489
        %v2520 = vmul.f32 %v2518, %v2490
        %v2521 = vmul.f32 %v2519, 1.442695
        %v2522 = vpow.pop %v2521
        %v2523 = vmul.f32 %v2520, 1.442695
        %v2524 = vpow.pop %v2523
        %v2525 = vmul.f32 %v2515, %v2522
        %v2526 = vmul.f32 %v2516, %v2524
        %v2527 = vsub.f32 1.0, %v2525
        %v2528 = vsub.f32 1.0, %v2526
        %vm2529 = vcmp.ge.f32.partialorder %v2487, 0.0
        %vm2530 = vcmp.ge.f32.partialorder %v2488, 0.0
        %v2531 = vsub.f32 0.0, %v2527
        %v2532 = vsub.f32 0.0, %v2528
        %v2533 = vsel %vm2529, %v2527, %v2531
        %v2534 = vsel %vm2530, %v2528, %v2532
        %v2535 = vadd.f32 %v2533, 1.0
        %v2536 = vadd.f32 %v2534, 1.0
        %v2537 = vmul.f32 %v2485, %v2535
        %v2538 = vmul.f32 %v2486, %v2536
        %v2539 = vpack.c.bf16 %v2538, %v2537
        %s2540 = scalar_lea.vmem %s14, 64
        %v2541 = vld [vmem:[%s2540] sm:$0xf]
        %v2542 = vld [vmem:[%s2540 + $0x4] sm:$0xf]
        %v2543 = vld [vmem:[%s2540 + $0x8] sm:$0xf]
        %v2544 = vld [vmem:[%s2540 + $0xc] sm:$0xf]
        %v2545 = vld [vmem:[%s2540 + $0x10] sm:$0xf]
        %v2546 = vld [vmem:[%s2540 + $0x14] sm:$0xf]
        %v2547 = vld [vmem:[%s2540 + $0x18] sm:$0xf]
        %v2548 = vld [vmem:[%s2540 + $0x1c] sm:$0xf]
        %v2549 = vld [vmem:[%s2540 + $0x20] sm:$0xf]
        %v2550 = vld [vmem:[%s2540 + $0x24] sm:$0xf]
        %v2551 = vld [vmem:[%s2540 + $0x28] sm:$0xf]
        %v2552 = vld [vmem:[%s2540 + $0x2c] sm:$0xf]
        %v2553 = vld [vmem:[%s2540 + $0x30] sm:$0xf]
        %v2554 = vld [vmem:[%s2540 + $0x34] sm:$0xf]
        %v2555 = vld [vmem:[%s2540 + $0x38] sm:$0xf]
        %v2556 = vld [vmem:[%s2540 + $0x3c] sm:$0xf]
        %s2557 = scalar_lea.vmem %s15, 1
        %v2558 = vld [vmem:[%s2557] sm:$0x1]
        %v2560 = vlaneseq
        %v2561 = vshrl.u32 %v2560, 7
        %v2562 = vsub.s32 0, %v2561
        %v2563 = vrot.slane %v2558, %v2562
        %v2581 = vunpack.c.l.b16 %v2541
        %v2582 = vunpack.c.l.b16 %v2542
        %v2583 = vunpack.c.l.b16 %v2543
        %v2584 = vunpack.c.l.b16 %v2544
        %v2585 = vunpack.c.l.b16 %v2545
        %v2586 = vunpack.c.l.b16 %v2546
        %v2587 = vunpack.c.l.b16 %v2547
        %v2588 = vunpack.c.l.b16 %v2548
        %v2589 = vunpack.c.l.b16 %v2549
        %v2590 = vunpack.c.l.b16 %v2550
        %v2591 = vunpack.c.l.b16 %v2551
        %v2592 = vunpack.c.l.b16 %v2552
        %v2593 = vunpack.c.l.b16 %v2553
        %v2594 = vunpack.c.l.b16 %v2554
        %v2595 = vunpack.c.l.b16 %v2555
        %v2596 = vunpack.c.l.b16 %v2556
        %v2597 = vpack.c.b16 %v2582, %v2581
        %v2598 = vpack.c.b16 %v2584, %v2583
        %v2599 = vpack.c.b16 %v2586, %v2585
        %v2600 = vpack.c.b16 %v2588, %v2587
        %v2601 = vpack.c.b16 %v2590, %v2589
        %v2602 = vpack.c.b16 %v2592, %v2591
        %v2603 = vpack.c.b16 %v2594, %v2593
        %v2604 = vpack.c.b16 %v2596, %v2595
        %2613 = vmatprep.subr.bf16.mxu0 0
        %2614 = vmatpush1.bf16.msra.mxu0 %v2597
        %2615 = vmatprep.subr.bf16.mxu0 0
        %2616 = vmatpush1.bf16.msra.mxu0 %v2598
        %2617 = vmatprep.subr.bf16.mxu0 0
        %2618 = vmatpush1.bf16.msra.mxu0 %v2599
        %2619 = vmatprep.subr.bf16.mxu0 0
        %2620 = vmatpush1.bf16.msra.mxu0 %v2600
        %2621 = vmatprep.subr.bf16.mxu0 0
        %2622 = vmatpush1.bf16.msra.mxu0 %v2601
        %2623 = vmatprep.subr.bf16.mxu0 0
        %2624 = vmatpush1.bf16.msra.mxu0 %v2602
        %2625 = vmatprep.subr.bf16.mxu0 0
        %2626 = vmatpush1.bf16.msra.mxu0 %v2603
        %2627 = vmatprep.subr.bf16.mxu0 0
        %2628 = vmatpush1.bf16.msra.mxu0 %v2604
        %2629 = vmatprep.subr.bf16.mxu0 0
        %2630 = vmatpush1.bf16.msra.mxu0 0
        %2631 = vmatprep.subr.bf16.mxu0 0
        %2632 = vmatpush1.bf16.msra.mxu0 0
        %2633 = vmatprep.subr.bf16.mxu0 0
        %2634 = vmatpush1.bf16.msra.mxu0 0
        %2635 = vmatprep.subr.bf16.mxu0 0
        %2636 = vmatpush1.bf16.msra.mxu0 0
        %2637 = vmatprep.subr.bf16.mxu0 0
        %2638 = vmatpush1.bf16.msra.mxu0 0
        %2639 = vmatprep.subr.bf16.mxu0 0
        %2640 = vmatpush1.bf16.msra.mxu0 0
        %2641 = vmatprep.subr.bf16.mxu0 0
        %2642 = vmatpush1.bf16.msra.mxu0 0
        %2643 = vmatprep.subr.bf16.mxu0 0
        %2644 = vmatpush1.bf16.msra.mxu0 0
        %2645 = vmatprep.mubr.bf16.mxu0 0
        %2646 = vmatmul.mubr.bf16.gmra.mrb[0].mxu0 %v2539
        %v2647 = vpop.f32.mrb[0].mxu0
        %v2648 = vadd.f32 %v2563, %v2647
        %v2649 = vpop.f32.mrb[0].mxu0
        %v2650 = vpop.f32.mrb[0].mxu0
        %v2651 = vadd.f32 %v2563, %v2650
        %v2652 = vpop.f32.mrb[0].mxu0
        %2653 = vdwg.mxu0
        %v2654 = vadd.f32 %v2367, %v2648
        %v2655 = vadd.f32 %v2368, %v2651
        %v2656 = vld [vmem:[%s16] sm:$0x1]
        %v2657 = vld [vmem:[%s17] sm:$0x1]
        %v2658 = vsel %vm671, %v2654, 0.0
        %2659 = vadd.xlane.f32.xlu0 %v2658
        %v2660 = vpop.xlane.xlu0 %2659
        %v2661 = vsel %vm671, %v2655, 0.0
        %2662 = vadd.xlane.f32.xlu0 %v2661
        %v2663 = vpop.xlane.xlu0 %2662
        %v2664 = vmul.f32 %v2660, %v678
        %v2665 = vmul.f32 %v2663, %v678
        %v2666 = vsub.f32 %v2654, %v2664
        %v2667 = vsub.f32 %v2655, %v2665
        %v2668 = vmul.f32 %v2666, %v2666
        %v2669 = vmul.f32 %v2667, %v2667
        %v2670 = vsel %vm671, %v2668, 0.0
        %2671 = vadd.xlane.f32.xlu0 %v2670
        %v2672 = vpop.xlane.xlu0 %2671
        %v2673 = vsel %vm671, %v2669, 0.0
        %2674 = vadd.xlane.f32.xlu0 %v2673
        %v2675 = vpop.xlane.xlu0 %2674
        %v2676 = vmul.f32 %v2672, %v678
        %v2677 = vmul.f32 %v2675, %v678
        %v2678 = vadd.f32 %v2676, 1e-06
        %v2679 = vadd.f32 %v2677, 1e-06
        %v2680 = vrsqrt.pop %v2678
        %v2681 = vrsqrt.pop %v2679
        %v2682 = vmul.f32 %v2666, %v2680
        %v2683 = vmul.f32 %v2667, %v2681
        %v2685 = vlaneseq
        %v2686 = vshrl.u32 %v2685, 7
        %v2687 = vsub.s32 0, %v2686
        %v2688 = vrot.slane %v2656, %v2687
        %v2690 = vmul.f32 %v2682, %v2688
        %v2691 = vmul.f32 %v2683, %v2688
        %v2693 = vlaneseq
        %v2694 = vshrl.u32 %v2693, 7
        %v2695 = vsub.s32 0, %v2694
        %v2696 = vrot.slane %v2657, %v2695
        %v2698 = vadd.f32 %v2690, %v2696
        %v2699 = vadd.f32 %v2691, %v2696
        %2700 = vst.msk [vmem:[%s569] sm:$0xff] %vm671, %v2698
        %2701 = vst.msk [vmem:[%s569 + $0x8] sm:$0xff] %vm671, %v2699
        %s2702 = sand.u32 %s423, 1
        %s2703 = scalar_lea.sflag [#allocation3], %s2702
        %s2704 = sand.u32 %s423, 1
        %s2705 = smul.addr %s2704, 16
        %s2706 = scalar_lea.vmem [#allocation2], %s2705
        // Predicated region
        $region93: #{vit_forward.1} parent=91 // pred_check
          %p2707 = pneg %p433
        $region94: #{vit_forward.1} parent=91 // pred_check_branch
          %2709 = sbr.rel (%p2707) target = $region96
        $region95: #{vit_forward.1} parent=91 // pred_region
          %s2710 = smul.u32 2, %s32
          %s2712 = ssub.s32 256, 256
          %2713 = vsyncadd %s2703, %s2712
          %s2714 = smul.addr %s2710, 128
          %s2715 = scalar_lea.hbm %s18, %s2714
          %s2716 = sshll.u32 %s2706, 4
          %s2717 = int_to_ptr.vmem [resolvable:$true] %s2716
          %2722 = dma.vmem_to_hbm [thread:$0]  %s2717, 256, %s2715, %s2703, 128, 128, 8
        $region96: #{vit_forward.1} parent=91 // pred_fallthru
          _
      $region92: #{vit_forward.1} parent=5 // pred_fallthru
        _
      %p2723 = scmp.le.s32.totalorder 2, %s27
      // Predicated region
      $region97: #{vit_forward.1} parent=5 // pred_check
        %p2724 = pneg %p2723
      $region98: #{vit_forward.1} parent=5 // pred_check_branch
        %2726 = sbr.rel (%p2724) target = $region100
      $region99: #{vit_forward.1} parent=5 // pred_region
        %s2727 = ssub.s32 %s27, 2
        // Predicated region
        $region101: #{vit_forward.1} parent=99 // pred_check
          %p2728 = pneg %p439
        $region102: #{vit_forward.1} parent=99 // pred_check_branch
          %2730 = sbr.rel (%p2728) target = $region104
        $region103: #{vit_forward.1} parent=99 // pred_region
          %s2731 = sand.u32 %s424, 1
          %s2732 = scalar_lea.sflag [#allocation3], %s2731
          %s2733 = sand.u32 %s424, 1
          %s2734 = smul.addr %s2733, 16
          %s2735 = scalar_lea.vmem [#allocation2], %s2734
          %2736 = dma.done %s2732, 256
        $region104: #{vit_forward.1} parent=99 // pred_fallthru
          _
      $region100: #{vit_forward.1} parent=5 // pred_fallthru
        _
    $region6: #{vit_forward.1} parent=1 // loop_footer
      %s31 = sadd.s32 1, %s27
    $region7: #{vit_forward.1} parent=1 // loop_footer_branch
      %26 = sbr.rel target = $region3
    $region8: #{vit_forward.1} parent=1 // loop_exit
      _
    %2737 = vsyncpa [#allocation3], 1
    %s2738 = scalar_lea.sflag [#allocation3], 1
    %2739 = vsyncpa %s2738, 1

</llo_original>
